<compile_context>
chip_gen: v6e
topology: v6e:2x2x1
jax: 0.10.0
libtpu: 0.0.40
codegen_flags: <defaults>
</compile_context>

<pallas_src>
import numpy as np
import jax
import jax.numpy as jnp
from jax import lax
from jax.experimental import pallas as pl
from jax.experimental.pallas import tpu as pltpu


def _round_up(v, m):
    return (v + m - 1) // m * m


# ----------------------------------------------------------------------------
# Kernel: forward pass for a tile of `bt` samples per grid step.
# ----------------------------------------------------------------------------
def make_baseline_kernel(bt):
    BT16, BT8 = bt * 16, bt * 8
    bf16 = jnp.bfloat16

    def mm(a, b):
        # bf16 MXU operands, f32 accumulation.
        return jnp.dot(a.astype(bf16), b, preferred_element_type=jnp.float32)

    def kernel(xre_ref, xro_ref,            # (bt*16, 180) im2row even/odd rows (bf16)
               H1_ref, b1_ref,              # (180, 192) bf16, (1, 192) f32
               C1_ref,                      # (192, 256) fused pool1 selector (bf16)
               H2_ref, b2_ref,              # (5, 128, 192) bf16, (1, 192) f32
               C2_ref,                      # (192, 256) fused pool2 selector (bf16)
               W1b_ref, fb1_ref,            # (6, 128, 32) bf16, (1, 32) f32
               W2T_ref, fb2_ref,            # (32, 16) bf16,  (1, 16) f32
               W3T_ref, fb3_ref,            # (16, 2) bf16,   (1, 2) f32
               out_ref,                     # (bt, 2) f32
               p1_ref, p2_ref):             # VMEM scratch (f32, 128 lanes)

        # Zero the 8-row overrun pad of p1 once.  Content is a don't-care for
        # correctness (it only feeds per-sample conv2 output rows >= 12 which
        # pool2 / fc1 discard); zeroing keeps those rows deterministic.
        @pl.when(pl.program_id(0) == 0)
        def _():
            p1_ref[pl.ds(BT16, 8), :] = jnp.zeros((8, 128), jnp.float32)

        # ---- conv1 (1->6, 5x5, channel-fused) + bias + ReLU + row max -------
        # xre/xro hold the input rows feeding even/odd conv1 output rows, with
        # the 5 kernel-row shifts concatenated along the lane axis (im2row).
        ae = jnp.maximum(mm(xre_ref[...], H1_ref[...]) + b1_ref[...], 0.0)
        ao = jnp.maximum(mm(xro_ref[...], H1_ref[...]) + b1_ref[...], 0.0)
        rp1 = jnp.maximum(ae, ao)                               # (bt*16, 192)

        # ---- pool1 column max: ONE fused selector matmul ---------------------
        # phase-0 columns land in lanes [0,96), phase-1 in [128,224); max the
        # two vreg-aligned 128-lane halves.  Lanes 96..127 stay zero.
        r1 = mm(rp1, C1_ref[...])                               # (bt*16, 256)
        p1_ref[pl.ds(0, BT16), :] = jnp.maximum(r1[:, :128], r1[:, 128:])

        # ---- conv2 (6->16, 5x5, channel-fused) into even/odd row accumulators
        # Sample n owns rows [n*16, n*16+16) of p1.  A stride-2 read starting
        # at offset `off + ki` yields rows n*16 + 2q + off + ki for m = n*8+q,
        # i.e. the kernel-row-shifted slab feeding conv2 output rows 2q+off.
        # Reads past a sample's slab (q >= 6) only feed discarded rows.
        def conv2_rows(off):
            acc = mm(p1_ref[pl.ds(off, BT8, stride=2), :], H2_ref[0])
            for ki in range(1, 5):   # chained accumulate (MRB-friendly on v7x)
                acc = acc + mm(p1_ref[pl.ds(off + ki, BT8, stride=2), :], H2_ref[ki])
            return acc

        acc_e = conv2_rows(0)                                   # even output rows
        acc_o = conv2_rows(1)                                   # odd output rows
        # pool2 row max + bias + ReLU entirely in registers (no a2 round-trip).
        rp2 = jnp.maximum(jnp.maximum(acc_e, acc_o) + b2_ref[...], 0.0)  # (bt*8,192)

        # ---- pool2 column max: ONE fused selector matmul ---------------------
        r2 = mm(rp2, C2_ref[...])                               # (bt*8, 256)
        p2_ref[...] = jnp.maximum(r2[:, :128], r2[:, 128:])     # (bt*8, 128)

        # ---- fc1 (576->32) over the whole tile + ReLU -------------------------
        # p2[n*8 + i, co*6 + j] = pooled2[n, co, i, j]; rows i=0..5 are valid.
        h = fb1_ref[...]                                        # (1, 32)
        for i in range(6):
            h = h + mm(p2_ref[pl.ds(i, bt, stride=8), :], W1b_ref[i])
        h = jnp.maximum(h, 0.0)                                 # (bt, 32)

        # ---- fc2 (32->16) + ReLU, fc3 (16->2) ---------------------------------
        h = jnp.maximum(mm(h, W2T_ref[...]) + fb2_ref[...], 0.0)
        out_ref[...] = mm(h, W3T_ref[...]) + fb3_ref[...]

    return kernel


# ----------------------------------------------------------------------------
# Host-side parameter preprocessing (weight re-layout only).
# ----------------------------------------------------------------------------
def _conv1_weight_stack(w1):                     # (6,1,5,5) -> (180, 192) bf16
    w = np.asarray(w1, np.float32)
    H = np.zeros((5, 36, 6 * 32), np.float32)
    for co in range(6):
        for ki in range(5):
            for kj in range(5):
                for j in range(32):
                    H[ki, j + kj, co * 32 + j] = w[co, 0, ki, kj]
    return jnp.asarray(H.reshape(5 * 36, 6 * 32), jnp.bfloat16)


def _conv2_weight_stack(w2):                     # (16,6,5,5) -> (5, 128, 192) bf16
    w = np.asarray(w2, np.float32)
    H = np.zeros((5, 128, 16 * 12), np.float32)  # K padded 96 -> 128 (zero rows)
    for co in range(16):
        for ci in range(6):
            for ki in range(5):
                for kj in range(5):
                    for j in range(12):
                        H[ki, ci * 16 + j + kj, co * 12 + j] = w[co, ci, ki, kj]
    return jnp.asarray(H, jnp.bfloat16)


def _col_pool_selector(n_ch, width):             # fused selector -> (192, 256) bf16
    half = width // 2
    C = np.zeros((n_ch * width, 256), np.float32)
    for c in range(n_ch):
        for j in range(half):
            C[c * width + 2 * j,       c * half + j] = 1.0        # phase 0
            C[c * width + 2 * j + 1, 128 + c * half + j] = 1.0    # phase 1
    return jnp.asarray(C, jnp.bfloat16)


def prepare_params(w1, b1, w2, b2, fw1, fb1, fw2, fb2, fw3, fb3):
    # fc1 weight re-layout: W1b[i, co*6+j, k] = fw1[k, co*36 + i*6 + j]; padded
    # to 128 input lanes (rows 96..127 zero to match the 128-lane pooled maps).
    W1b = np.zeros((6, 128, 32), np.float32)
    W1b[:, :96, :] = np.transpose(
        np.asarray(fw1, np.float32).reshape(32, 16, 6, 6), (2, 1, 3, 0)
    ).reshape(6, 96, 32)
    return dict(
        H1=_conv1_weight_stack(w1),
        b1=jnp.asarray(np.repeat(np.asarray(b1, np.float32), 32)[None, :]),
        C1=_col_pool_selector(6, 32),
        H2=_conv2_weight_stack(w2),
        b2=jnp.asarray(np.repeat(np.asarray(b2, np.float32), 12)[None, :]),
        C2=_col_pool_selector(16, 12),
        W1b=jnp.asarray(W1b, jnp.bfloat16),
        fb1=jnp.asarray(fb1, jnp.float32).reshape(1, 32),
        W2T=jnp.asarray(np.asarray(fw2, np.float32).T, jnp.bfloat16),
        fb2=jnp.asarray(fb2, jnp.float32).reshape(1, 16),
        W3T=jnp.asarray(np.asarray(fw3, np.float32).T, jnp.bfloat16),
        fb3=jnp.asarray(fb3, jnp.float32).reshape(1, 2),
    )


# ----------------------------------------------------------------------------
# Wrapper: batch-tiled pallas_call.
# ----------------------------------------------------------------------------
def baseline_forward(x_nchw, p, block_batch=128):
    N = x_nchw.shape[0]
    assert x_nchw.shape[1:] == (1, 36, 36), "expects NCHW input (N, 1, 36, 36)"
    x = x_nchw[:, 0, :, :].astype(jnp.float32)            # (N, 36, 36)

    # Batch tile: multiple of 8, capped at block_batch, and (for moderate N)
    # small enough that the parallel grid axis has >= 2 steps (dual TC on v7x).
    bt = min(block_batch, max(8, _round_up((N + 1) // 2, 8)))
    n_pad = _round_up(N, bt)
    if n_pad != N:
        x = jnp.pad(x, ((0, n_pad - N), (0, 0), (0, 0)))
    x = x.astype(jnp.bfloat16)     # bf16 feed: halves im2row HBM bytes, MXU-native
    # TODO(synk): on v5e the ~9x im2row HBM amplification could be removed
    # entirely by streaming raw pixels and doing conv1 in-kernel like conv2.

    # Host/XLA-side im2row: for even (ph=0) / odd (ph=1) conv1 output rows,
    # concatenate the 5 kernel-row-shifted input slabs along the lane axis.
    def im2row(ph):
        slabs = [x[:, ph + ki: ph + ki + 31: 2, :] for ki in range(5)]
        return jnp.concatenate(slabs, axis=2).reshape(n_pad * 16, 180)

    xre, xro = im2row(0), im2row(1)

    const = lambda shape: pl.BlockSpec(shape, lambda b, _s=shape: (0,) * len(_s))

    out = pl.pallas_call(
        make_baseline_kernel(bt),
        grid=(n_pad // bt,),
        in_specs=[
            pl.BlockSpec((bt * 16, 180), lambda b: (b, 0)),   # xre
            pl.BlockSpec((bt * 16, 180), lambda b: (b, 0)),   # xro
            const((180, 192)), const((1, 192)),               # H1, b1
            const((192, 256)),                                # C1 (fused)
            const((5, 128, 192)), const((1, 192)),            # H2, b2
            const((192, 256)),                                # C2 (fused)
            const((6, 128, 32)), const((1, 32)),              # W1b, fb1
            const((32, 16)), const((1, 16)),                  # W2T, fb2
            const((16, 2)), const((1, 2)),                    # W3T, fb3
        ],
        out_specs=pl.BlockSpec((bt, 2), lambda b: (b, 0)),
        out_shape=jax.ShapeDtypeStruct((n_pad, 2), jnp.float32),
        scratch_shapes=[
            pltpu.VMEM((bt * 16 + 8, 128), jnp.float32),   # pool1 map (+8 pad rows)
            pltpu.VMEM((bt * 8, 128), jnp.float32),        # pool2 map
        ],
        compiler_params=pltpu.CompilerParams(
            dimension_semantics=("parallel",),
            vmem_limit_bytes=64 * 1024 * 1024,
        ),
    )(xre, xro, p["H1"], p["b1"], p["C1"], p["H2"], p["b2"], p["C2"],
      p["W1b"], p["fb1"], p["W2T"], p["fb2"], p["W3T"], p["fb3"])

    return out[:N]


# ----------------------------------------------------------------------------
# Pure-JAX reference (independent implementation for validation).
# ----------------------------------------------------------------------------
def reference_forward(x, w1, b1, w2, b2, fw1, fb1, fw2, fb2, fw3, fb3):
    dn = ("NCHW", "OIHW", "NCHW")
    z = lax.conv_general_dilated(x, w1, (1, 1), "VALID", dimension_numbers=dn)
    z = jnp.maximum(z + b1[None, :, None, None], 0.0)
    z = lax.reduce_window(z, -jnp.inf, lax.max, (1, 1, 2, 2), (1, 1, 2, 2), "VALID")
    z = lax.conv_general_dilated(z, w2, (1, 1), "VALID", dimension_numbers=dn)
    z = jnp.maximum(z + b2[None, :, None, None], 0.0)
    z = lax.reduce_window(z, -jnp.inf, lax.max, (1, 1, 2, 2), (1, 1, 2, 2), "VALID")
    f = z.reshape(z.shape[0], 16 * 6 * 6)
    h = jnp.maximum(f @ fw1.T + fb1, 0.0)
    h = jnp.maximum(h @ fw2.T + fb2, 0.0)
    return h @ fw3.T + fb3


if __name__ == "__main__":
    key = jax.random.PRNGKey(0)
    ks = jax.random.split(key, 12)

    def uinit(k, shape, fan_in):
        bound = 1.0 / np.sqrt(fan_in)
        return jax.random.uniform(k, shape, jnp.float32, -bound, bound)

    # Parameters (deterministic, PyTorch default-init style bounds).
    w1 = uinit(ks[0], (6, 1, 5, 5), 25);    b1 = uinit(ks[1], (6,), 25)
    w2 = uinit(ks[2], (16, 6, 5, 5), 150);  b2 = uinit(ks[3], (16,), 150)
    fw1 = uinit(ks[4], (32, 576), 576);     fb1 = uinit(ks[5], (32,), 576)
    fw2 = uinit(ks[6], (16, 32), 32);       fb2 = uinit(ks[7], (16,), 32)
    fw3 = uinit(ks[8], (2, 16), 16);        fb3 = uinit(ks[9], (2,), 16)

    params = prepare_params(w1, b1, w2, b2, fw1, fb1, fw2, fb2, fw3, fb3)

    # Input: NCHW, spatial 36x36 (required so the flatten is 16*6*6).
    x_small = jax.random.normal(ks[10], (2, 1, 36, 36), jnp.float32)
    out_small = jax.block_until_ready(baseline_forward(x_small, params))
    ref_small = jax.block_until_ready(
        reference_forward(x_small, w1, b1, w2, b2, fw1, fb1, fw2, fb2, fw3, fb3))
    np.testing.assert_allclose(np.asarray(out_small), np.asarray(ref_small),
                               rtol=2e-2, atol=2e-2)

    # Larger batch exercising multiple grid steps and batch padding.
    x_big = jax.random.normal(ks[11], (70, 1, 36, 36), jnp.float32)
    out_big = jax.block_until_ready(baseline_forward(x_big, params))
    ref_big = jax.block_until_ready(
        reference_forward(x_big, w1, b1, w2, b2, fw1, fb1, fw2, fb2, fw3, fb3))
    np.testing.assert_allclose(np.asarray(out_big), np.asarray(ref_big),
                               rtol=2e-2, atol=2e-2)

    assert out_small.shape == (2, 2) and out_big.shape == (70, 2)
    print("KERNEL_OK")
</pallas_src>

<mosaic_0001>
module attributes {stable_mosaic.version = 11 : i64} {
  func.func @kernel(%arg0: i32, %arg1: memref<128x180xbf16, #tpu.memory_space<vmem>>, %arg2: memref<128x180xbf16, #tpu.memory_space<vmem>>, %arg3: memref<180x192xbf16, #tpu.memory_space<vmem>>, %arg4: memref<1x192xf32, #tpu.memory_space<vmem>>, %arg5: memref<192x256xbf16, #tpu.memory_space<vmem>>, %arg6: memref<5x128x192xbf16, #tpu.memory_space<vmem>>, %arg7: memref<1x192xf32, #tpu.memory_space<vmem>>, %arg8: memref<192x256xbf16, #tpu.memory_space<vmem>>, %arg9: memref<6x128x32xbf16, #tpu.memory_space<vmem>>, %arg10: memref<1x32xf32, #tpu.memory_space<vmem>>, %arg11: memref<32x16xbf16, #tpu.memory_space<vmem>>, %arg12: memref<1x16xf32, #tpu.memory_space<vmem>>, %arg13: memref<16x2xbf16, #tpu.memory_space<vmem>>, %arg14: memref<1x2xf32, #tpu.memory_space<vmem>>, %arg15: memref<8x2xf32, #tpu.memory_space<vmem>>, %arg16: memref<136x128xf32, #tpu.memory_space<vmem>>, %arg17: memref<64x128xf32, #tpu.memory_space<vmem>>) attributes {dimension_semantics = [#tpu.dimension_semantics<parallel>], iteration_bounds = array<i64: 1>, scalar_prefetch = 0 : i64, scratch_operands = 2 : i64, tpu.core_type = #tpu.core_type<tc>, window_params = [{transform_indices = @transform_0, window_bounds = array<i64: 128, 180>}, {transform_indices = @transform_1, window_bounds = array<i64: 128, 180>}, {pipeline_mode = #tpu.pipeline_mode<synchronous>, transform_indices = @transform_2, window_bounds = array<i64: 180, 192>}, {pipeline_mode = #tpu.pipeline_mode<synchronous>, transform_indices = @transform_3, window_bounds = array<i64: 1, 192>}, {pipeline_mode = #tpu.pipeline_mode<synchronous>, transform_indices = @transform_4, window_bounds = array<i64: 192, 256>}, {pipeline_mode = #tpu.pipeline_mode<synchronous>, transform_indices = @transform_5, window_bounds = array<i64: 5, 128, 192>}, {pipeline_mode = #tpu.pipeline_mode<synchronous>, transform_indices = @transform_6, window_bounds = array<i64: 1, 192>}, {pipeline_mode = #tpu.pipeline_mode<synchronous>, transform_indices = @transform_7, window_bounds = array<i64: 192, 256>}, {pipeline_mode = #tpu.pipeline_mode<synchronous>, transform_indices = @transform_8, window_bounds = array<i64: 6, 128, 32>}, {pipeline_mode = #tpu.pipeline_mode<synchronous>, transform_indices = @transform_9, window_bounds = array<i64: 1, 32>}, {pipeline_mode = #tpu.pipeline_mode<synchronous>, transform_indices = @transform_10, window_bounds = array<i64: 32, 16>}, {pipeline_mode = #tpu.pipeline_mode<synchronous>, transform_indices = @transform_11, window_bounds = array<i64: 1, 16>}, {pipeline_mode = #tpu.pipeline_mode<synchronous>, transform_indices = @transform_12, window_bounds = array<i64: 16, 2>}, {pipeline_mode = #tpu.pipeline_mode<synchronous>, transform_indices = @transform_13, window_bounds = array<i64: 1, 2>}, {transform_indices = @transform_14, window_bounds = array<i64: 8, 2>}]} {
    %c0_i32 = arith.constant 0 : i32
    %0 = arith.cmpi eq, %arg0, %c0_i32 : i32
    %1 = arith.extui %0 : i1 to i32
    %c0_i32_0 = arith.constant 0 : i32
    %2 = arith.cmpi ne, %1, %c0_i32_0 : i32
    scf.if %2 {
      %cst_135 = arith.constant 0.000000e+00 : f32
      %153 = vector.broadcast %cst_135 : f32 to vector<8x128xf32>
      %c128 = arith.constant 128 : index
      %c0_136 = arith.constant 0 : index
      %154 = vector.load %arg16[%c128, %c0_136] : memref<136x128xf32, #tpu.memory_space<vmem>>, vector<8x128xf32>
      tpu.vector_store %arg16[%c128, %c0_136], %153 {strides = array<i32>} : memref<136x128xf32, #tpu.memory_space<vmem>>, vector<8x128xf32>,
    } else {
    }
    %c0 = arith.constant 0 : index
    %c0_1 = arith.constant 0 : index
    %3 = vector.load %arg1[%c0, %c0_1] : memref<128x180xbf16, #tpu.memory_space<vmem>>, vector<128x180xbf16>
    %c0_2 = arith.constant 0 : index
    %c0_3 = arith.constant 0 : index
    %4 = vector.load %arg3[%c0_2, %c0_3] : memref<180x192xbf16, #tpu.memory_space<vmem>>, vector<180x192xbf16>
    %cst = arith.constant dense<0.000000e+00> : vector<128x192xf32>
    %5 = tpu.matmul %3, %4, %cst {dimension_numbers = #tpu.dot_dimension_numbers<[1], [0], [0], [1], [0, 0, 1, 1], [], []>} : vector<128x180xbf16>, vector<180x192xbf16>, vector<128x192xf32> -> vector<128x192xf32>
    %c0_4 = arith.constant 0 : index
    %c0_5 = arith.constant 0 : index
    %6 = vector.load %arg4[%c0_4, %c0_5] : memref<1x192xf32, #tpu.memory_space<vmem>>, vector<1x192xf32>
    %7 = vector.broadcast %6 : vector<1x192xf32> to vector<128x192xf32>
    %8 = arith.addf %5, %7 : vector<128x192xf32>
    %cst_6 = arith.constant 0.000000e+00 : f32
    %9 = vector.broadcast %cst_6 : f32 to vector<128x192xf32>
    %10 = arith.maximumf %8, %9 : vector<128x192xf32>
    %c0_7 = arith.constant 0 : index
    %c0_8 = arith.constant 0 : index
    %11 = vector.load %arg2[%c0_7, %c0_8] : memref<128x180xbf16, #tpu.memory_space<vmem>>, vector<128x180xbf16>
    %c0_9 = arith.constant 0 : index
    %c0_10 = arith.constant 0 : index
    %12 = vector.load %arg3[%c0_9, %c0_10] : memref<180x192xbf16, #tpu.memory_space<vmem>>, vector<180x192xbf16>
    %cst_11 = arith.constant dense<0.000000e+00> : vector<128x192xf32>
    %13 = tpu.matmul %11, %12, %cst_11 {dimension_numbers = #tpu.dot_dimension_numbers<[1], [0], [0], [1], [0, 0, 1, 1], [], []>} : vector<128x180xbf16>, vector<180x192xbf16>, vector<128x192xf32> -> vector<128x192xf32>
    %c0_12 = arith.constant 0 : index
    %c0_13 = arith.constant 0 : index
    %14 = vector.load %arg4[%c0_12, %c0_13] : memref<1x192xf32, #tpu.memory_space<vmem>>, vector<1x192xf32>
    %15 = vector.broadcast %14 : vector<1x192xf32> to vector<128x192xf32>
    %16 = arith.addf %13, %15 : vector<128x192xf32>
    %cst_14 = arith.constant 0.000000e+00 : f32
    %17 = vector.broadcast %cst_14 : f32 to vector<128x192xf32>
    %18 = arith.maximumf %16, %17 : vector<128x192xf32>
    %19 = arith.maximumf %10, %18 : vector<128x192xf32>
    %c0_15 = arith.constant 0 : index
    %c0_16 = arith.constant 0 : index
    %20 = vector.load %arg5[%c0_15, %c0_16] : memref<192x256xbf16, #tpu.memory_space<vmem>>, vector<192x256xbf16>
    %21 = arith.truncf %19 : vector<128x192xf32> to vector<128x192xbf16>
    %cst_17 = arith.constant dense<0.000000e+00> : vector<128x256xf32>
    %22 = tpu.matmul %21, %20, %cst_17 {dimension_numbers = #tpu.dot_dimension_numbers<[1], [0], [0], [1], [0, 0, 1, 1], [], []>} : vector<128x192xbf16>, vector<192x256xbf16>, vector<128x256xf32> -> vector<128x256xf32>
    %23 = vector.extract_strided_slice %22 {offsets = [0, 0], sizes = [128, 128], strides = [1, 1]} : vector<128x256xf32> to vector<128x128xf32>
    %24 = vector.extract_strided_slice %22 {offsets = [0, 128], sizes = [128, 128], strides = [1, 1]} : vector<128x256xf32> to vector<128x128xf32>
    %25 = arith.maximumf %23, %24 : vector<128x128xf32>
    %c0_18 = arith.constant 0 : index
    %c0_19 = arith.constant 0 : index
    %26 = vector.load %arg16[%c0_18, %c0_19] : memref<136x128xf32, #tpu.memory_space<vmem>>, vector<128x128xf32>
    tpu.vector_store %arg16[%c0_18, %c0_19], %25 {strides = array<i32>} : memref<136x128xf32, #tpu.memory_space<vmem>>, vector<128x128xf32>,
    %c0_20 = arith.constant 0 : index
    %c0_21 = arith.constant 0 : index
    %27 = tpu.strided_load %arg16[%c0_20, %c0_21] {strides = array<i32: 2, 1>} : memref<136x128xf32, #tpu.memory_space<vmem>>, vector<64x128xf32>
    %c0_22 = arith.constant 0 : index
    %c0_23 = arith.constant 0 : index
    %c0_24 = arith.constant 0 : index
    %28 = vector.load %arg6[%c0_22, %c0_23, %c0_24] : memref<5x128x192xbf16, #tpu.memory_space<vmem>>, vector<1x128x192xbf16>
    %29 = vector.shape_cast %28 : vector<1x128x192xbf16> to vector<128x192xbf16>
    %30 = arith.truncf %27 : vector<64x128xf32> to vector<64x128xbf16>
    %cst_25 = arith.constant dense<0.000000e+00> : vector<64x192xf32>
    %31 = tpu.matmul %30, %29, %cst_25 {dimension_numbers = #tpu.dot_dimension_numbers<[1], [0], [0], [1], [0, 0, 1, 1], [], []>} : vector<64x128xbf16>, vector<128x192xbf16>, vector<64x192xf32> -> vector<64x192xf32>
    %c1 = arith.constant 1 : index
    %c0_26 = arith.constant 0 : index
    %32 = tpu.strided_load %arg16[%c1, %c0_26] {strides = array<i32: 2, 1>} : memref<136x128xf32, #tpu.memory_space<vmem>>, vector<64x128xf32>
    %c1_27 = arith.constant 1 : index
    %c0_28 = arith.constant 0 : index
    %c0_29 = arith.constant 0 : index
    %33 = vector.load %arg6[%c1_27, %c0_28, %c0_29] : memref<5x128x192xbf16, #tpu.memory_space<vmem>>, vector<1x128x192xbf16>
    %34 = vector.shape_cast %33 : vector<1x128x192xbf16> to vector<128x192xbf16>
    %35 = arith.truncf %32 : vector<64x128xf32> to vector<64x128xbf16>
    %cst_30 = arith.constant dense<0.000000e+00> : vector<64x192xf32>
    %36 = tpu.matmul %35, %34, %cst_30 {dimension_numbers = #tpu.dot_dimension_numbers<[1], [0], [0], [1], [0, 0, 1, 1], [], []>} : vector<64x128xbf16>, vector<128x192xbf16>, vector<64x192xf32> -> vector<64x192xf32>
    %37 = arith.addf %31, %36 : vector<64x192xf32>
    %c2 = arith.constant 2 : index
    %c0_31 = arith.constant 0 : index
    %38 = tpu.strided_load %arg16[%c2, %c0_31] {strides = array<i32: 2, 1>} : memref<136x128xf32, #tpu.memory_space<vmem>>, vector<64x128xf32>
    %c2_32 = arith.constant 2 : index
    %c0_33 = arith.constant 0 : index
    %c0_34 = arith.constant 0 : index
    %39 = vector.load %arg6[%c2_32, %c0_33, %c0_34] : memref<5x128x192xbf16, #tpu.memory_space<vmem>>, vector<1x128x192xbf16>
    %40 = vector.shape_cast %39 : vector<1x128x192xbf16> to vector<128x192xbf16>
    %41 = arith.truncf %38 : vector<64x128xf32> to vector<64x128xbf16>
    %cst_35 = arith.constant dense<0.000000e+00> : vector<64x192xf32>
    %42 = tpu.matmul %41, %40, %cst_35 {dimension_numbers = #tpu.dot_dimension_numbers<[1], [0], [0], [1], [0, 0, 1, 1], [], []>} : vector<64x128xbf16>, vector<128x192xbf16>, vector<64x192xf32> -> vector<64x192xf32>
    %43 = arith.addf %37, %42 : vector<64x192xf32>
    %c3 = arith.constant 3 : index
    %c0_36 = arith.constant 0 : index
    %44 = tpu.strided_load %arg16[%c3, %c0_36] {strides = array<i32: 2, 1>} : memref<136x128xf32, #tpu.memory_space<vmem>>, vector<64x128xf32>
    %c3_37 = arith.constant 3 : index
    %c0_38 = arith.constant 0 : index
    %c0_39 = arith.constant 0 : index
    %45 = vector.load %arg6[%c3_37, %c0_38, %c0_39] : memref<5x128x192xbf16, #tpu.memory_space<vmem>>, vector<1x128x192xbf16>
    %46 = vector.shape_cast %45 : vector<1x128x192xbf16> to vector<128x192xbf16>
    %47 = arith.truncf %44 : vector<64x128xf32> to vector<64x128xbf16>
    %cst_40 = arith.constant dense<0.000000e+00> : vector<64x192xf32>
    %48 = tpu.matmul %47, %46, %cst_40 {dimension_numbers = #tpu.dot_dimension_numbers<[1], [0], [0], [1], [0, 0, 1, 1], [], []>} : vector<64x128xbf16>, vector<128x192xbf16>, vector<64x192xf32> -> vector<64x192xf32>
    %49 = arith.addf %43, %48 : vector<64x192xf32>
    %c4 = arith.constant 4 : index
    %c0_41 = arith.constant 0 : index
    %50 = tpu.strided_load %arg16[%c4, %c0_41] {strides = array<i32: 2, 1>} : memref<136x128xf32, #tpu.memory_space<vmem>>, vector<64x128xf32>
    %c4_42 = arith.constant 4 : index
    %c0_43 = arith.constant 0 : index
    %c0_44 = arith.constant 0 : index
    %51 = vector.load %arg6[%c4_42, %c0_43, %c0_44] : memref<5x128x192xbf16, #tpu.memory_space<vmem>>, vector<1x128x192xbf16>
    %52 = vector.shape_cast %51 : vector<1x128x192xbf16> to vector<128x192xbf16>
    %53 = arith.truncf %50 : vector<64x128xf32> to vector<64x128xbf16>
    %cst_45 = arith.constant dense<0.000000e+00> : vector<64x192xf32>
    %54 = tpu.matmul %53, %52, %cst_45 {dimension_numbers = #tpu.dot_dimension_numbers<[1], [0], [0], [1], [0, 0, 1, 1], [], []>} : vector<64x128xbf16>, vector<128x192xbf16>, vector<64x192xf32> -> vector<64x192xf32>
    %55 = arith.addf %49, %54 : vector<64x192xf32>
    %c1_46 = arith.constant 1 : index
    %c0_47 = arith.constant 0 : index
    %56 = tpu.strided_load %arg16[%c1_46, %c0_47] {strides = array<i32: 2, 1>} : memref<136x128xf32, #tpu.memory_space<vmem>>, vector<64x128xf32>
    %c0_48 = arith.constant 0 : index
    %c0_49 = arith.constant 0 : index
    %c0_50 = arith.constant 0 : index
    %57 = vector.load %arg6[%c0_48, %c0_49, %c0_50] : memref<5x128x192xbf16, #tpu.memory_space<vmem>>, vector<1x128x192xbf16>
    %58 = vector.shape_cast %57 : vector<1x128x192xbf16> to vector<128x192xbf16>
    %59 = arith.truncf %56 : vector<64x128xf32> to vector<64x128xbf16>
    %cst_51 = arith.constant dense<0.000000e+00> : vector<64x192xf32>
    %60 = tpu.matmul %59, %58, %cst_51 {dimension_numbers = #tpu.dot_dimension_numbers<[1], [0], [0], [1], [0, 0, 1, 1], [], []>} : vector<64x128xbf16>, vector<128x192xbf16>, vector<64x192xf32> -> vector<64x192xf32>
    %c2_52 = arith.constant 2 : index
    %c0_53 = arith.constant 0 : index
    %61 = tpu.strided_load %arg16[%c2_52, %c0_53] {strides = array<i32: 2, 1>} : memref<136x128xf32, #tpu.memory_space<vmem>>, vector<64x128xf32>
    %c1_54 = arith.constant 1 : index
    %c0_55 = arith.constant 0 : index
    %c0_56 = arith.constant 0 : index
    %62 = vector.load %arg6[%c1_54, %c0_55, %c0_56] : memref<5x128x192xbf16, #tpu.memory_space<vmem>>, vector<1x128x192xbf16>
    %63 = vector.shape_cast %62 : vector<1x128x192xbf16> to vector<128x192xbf16>
    %64 = arith.truncf %61 : vector<64x128xf32> to vector<64x128xbf16>
    %cst_57 = arith.constant dense<0.000000e+00> : vector<64x192xf32>
    %65 = tpu.matmul %64, %63, %cst_57 {dimension_numbers = #tpu.dot_dimension_numbers<[1], [0], [0], [1], [0, 0, 1, 1], [], []>} : vector<64x128xbf16>, vector<128x192xbf16>, vector<64x192xf32> -> vector<64x192xf32>
    %66 = arith.addf %60, %65 : vector<64x192xf32>
    %c3_58 = arith.constant 3 : index
    %c0_59 = arith.constant 0 : index
    %67 = tpu.strided_load %arg16[%c3_58, %c0_59] {strides = array<i32: 2, 1>} : memref<136x128xf32, #tpu.memory_space<vmem>>, vector<64x128xf32>
    %c2_60 = arith.constant 2 : index
    %c0_61 = arith.constant 0 : index
    %c0_62 = arith.constant 0 : index
    %68 = vector.load %arg6[%c2_60, %c0_61, %c0_62] : memref<5x128x192xbf16, #tpu.memory_space<vmem>>, vector<1x128x192xbf16>
    %69 = vector.shape_cast %68 : vector<1x128x192xbf16> to vector<128x192xbf16>
    %70 = arith.truncf %67 : vector<64x128xf32> to vector<64x128xbf16>
    %cst_63 = arith.constant dense<0.000000e+00> : vector<64x192xf32>
    %71 = tpu.matmul %70, %69, %cst_63 {dimension_numbers = #tpu.dot_dimension_numbers<[1], [0], [0], [1], [0, 0, 1, 1], [], []>} : vector<64x128xbf16>, vector<128x192xbf16>, vector<64x192xf32> -> vector<64x192xf32>
    %72 = arith.addf %66, %71 : vector<64x192xf32>
    %c4_64 = arith.constant 4 : index
    %c0_65 = arith.constant 0 : index
    %73 = tpu.strided_load %arg16[%c4_64, %c0_65] {strides = array<i32: 2, 1>} : memref<136x128xf32, #tpu.memory_space<vmem>>, vector<64x128xf32>
    %c3_66 = arith.constant 3 : index
    %c0_67 = arith.constant 0 : index
    %c0_68 = arith.constant 0 : index
    %74 = vector.load %arg6[%c3_66, %c0_67, %c0_68] : memref<5x128x192xbf16, #tpu.memory_space<vmem>>, vector<1x128x192xbf16>
    %75 = vector.shape_cast %74 : vector<1x128x192xbf16> to vector<128x192xbf16>
    %76 = arith.truncf %73 : vector<64x128xf32> to vector<64x128xbf16>
    %cst_69 = arith.constant dense<0.000000e+00> : vector<64x192xf32>
    %77 = tpu.matmul %76, %75, %cst_69 {dimension_numbers = #tpu.dot_dimension_numbers<[1], [0], [0], [1], [0, 0, 1, 1], [], []>} : vector<64x128xbf16>, vector<128x192xbf16>, vector<64x192xf32> -> vector<64x192xf32>
    %78 = arith.addf %72, %77 : vector<64x192xf32>
    %c5 = arith.constant 5 : index
    %c0_70 = arith.constant 0 : index
    %79 = tpu.strided_load %arg16[%c5, %c0_70] {strides = array<i32: 2, 1>} : memref<136x128xf32, #tpu.memory_space<vmem>>, vector<64x128xf32>
    %c4_71 = arith.constant 4 : index
    %c0_72 = arith.constant 0 : index
    %c0_73 = arith.constant 0 : index
    %80 = vector.load %arg6[%c4_71, %c0_72, %c0_73] : memref<5x128x192xbf16, #tpu.memory_space<vmem>>, vector<1x128x192xbf16>
    %81 = vector.shape_cast %80 : vector<1x128x192xbf16> to vector<128x192xbf16>
    %82 = arith.truncf %79 : vector<64x128xf32> to vector<64x128xbf16>
    %cst_74 = arith.constant dense<0.000000e+00> : vector<64x192xf32>
    %83 = tpu.matmul %82, %81, %cst_74 {dimension_numbers = #tpu.dot_dimension_numbers<[1], [0], [0], [1], [0, 0, 1, 1], [], []>} : vector<64x128xbf16>, vector<128x192xbf16>, vector<64x192xf32> -> vector<64x192xf32>
    %84 = arith.addf %78, %83 : vector<64x192xf32>
    %85 = arith.maximumf %55, %84 : vector<64x192xf32>
    %c0_75 = arith.constant 0 : index
    %c0_76 = arith.constant 0 : index
    %86 = vector.load %arg7[%c0_75, %c0_76] : memref<1x192xf32, #tpu.memory_space<vmem>>, vector<1x192xf32>
    %87 = vector.broadcast %86 : vector<1x192xf32> to vector<64x192xf32>
    %88 = arith.addf %85, %87 : vector<64x192xf32>
    %cst_77 = arith.constant 0.000000e+00 : f32
    %89 = vector.broadcast %cst_77 : f32 to vector<64x192xf32>
    %90 = arith.maximumf %88, %89 : vector<64x192xf32>
    %c0_78 = arith.constant 0 : index
    %c0_79 = arith.constant 0 : index
    %91 = vector.load %arg8[%c0_78, %c0_79] : memref<192x256xbf16, #tpu.memory_space<vmem>>, vector<192x256xbf16>
    %92 = arith.truncf %90 : vector<64x192xf32> to vector<64x192xbf16>
    %cst_80 = arith.constant dense<0.000000e+00> : vector<64x256xf32>
    %93 = tpu.matmul %92, %91, %cst_80 {dimension_numbers = #tpu.dot_dimension_numbers<[1], [0], [0], [1], [0, 0, 1, 1], [], []>} : vector<64x192xbf16>, vector<192x256xbf16>, vector<64x256xf32> -> vector<64x256xf32>
    %94 = vector.extract_strided_slice %93 {offsets = [0, 0], sizes = [64, 128], strides = [1, 1]} : vector<64x256xf32> to vector<64x128xf32>
    %95 = vector.extract_strided_slice %93 {offsets = [0, 128], sizes = [64, 128], strides = [1, 1]} : vector<64x256xf32> to vector<64x128xf32>
    %96 = arith.maximumf %94, %95 : vector<64x128xf32>
    %c0_81 = arith.constant 0 : index
    %c0_82 = arith.constant 0 : index
    %97 = vector.load %arg17[%c0_81, %c0_82] : memref<64x128xf32, #tpu.memory_space<vmem>>, vector<64x128xf32>
    tpu.vector_store %arg17[%c0_81, %c0_82], %96 {strides = array<i32>} : memref<64x128xf32, #tpu.memory_space<vmem>>, vector<64x128xf32>,
    %c0_83 = arith.constant 0 : index
    %c0_84 = arith.constant 0 : index
    %98 = vector.load %arg10[%c0_83, %c0_84] : memref<1x32xf32, #tpu.memory_space<vmem>>, vector<1x32xf32>
    %c0_85 = arith.constant 0 : index
    %c0_86 = arith.constant 0 : index
    %99 = tpu.strided_load %arg17[%c0_85, %c0_86] {strides = array<i32: 8, 1>} : memref<64x128xf32, #tpu.memory_space<vmem>>, vector<8x128xf32>
    %c0_87 = arith.constant 0 : index
    %c0_88 = arith.constant 0 : index
    %c0_89 = arith.constant 0 : index
    %100 = vector.load %arg9[%c0_87, %c0_88, %c0_89] : memref<6x128x32xbf16, #tpu.memory_space<vmem>>, vector<1x128x32xbf16>
    %101 = vector.shape_cast %100 : vector<1x128x32xbf16> to vector<128x32xbf16>
    %102 = arith.truncf %99 : vector<8x128xf32> to vector<8x128xbf16>
    %cst_90 = arith.constant dense<0.000000e+00> : vector<8x32xf32>
    %103 = tpu.matmul %102, %101, %cst_90 {dimension_numbers = #tpu.dot_dimension_numbers<[1], [0], [0], [1], [0, 0, 1, 1], [], []>} : vector<8x128xbf16>, vector<128x32xbf16>, vector<8x32xf32> -> vector<8x32xf32>
    %104 = vector.broadcast %98 : vector<1x32xf32> to vector<8x32xf32>
    %105 = arith.addf %104, %103 : vector<8x32xf32>
    %c1_91 = arith.constant 1 : index
    %c0_92 = arith.constant 0 : index
    %106 = tpu.strided_load %arg17[%c1_91, %c0_92] {strides = array<i32: 8, 1>} : memref<64x128xf32, #tpu.memory_space<vmem>>, vector<8x128xf32>
    %c1_93 = arith.constant 1 : index
    %c0_94 = arith.constant 0 : index
    %c0_95 = arith.constant 0 : index
    %107 = vector.load %arg9[%c1_93, %c0_94, %c0_95] : memref<6x128x32xbf16, #tpu.memory_space<vmem>>, vector<1x128x32xbf16>
    %108 = vector.shape_cast %107 : vector<1x128x32xbf16> to vector<128x32xbf16>
    %109 = arith.truncf %106 : vector<8x128xf32> to vector<8x128xbf16>
    %cst_96 = arith.constant dense<0.000000e+00> : vector<8x32xf32>
    %110 = tpu.matmul %109, %108, %cst_96 {dimension_numbers = #tpu.dot_dimension_numbers<[1], [0], [0], [1], [0, 0, 1, 1], [], []>} : vector<8x128xbf16>, vector<128x32xbf16>, vector<8x32xf32> -> vector<8x32xf32>
    %111 = arith.addf %105, %110 : vector<8x32xf32>
    %c2_97 = arith.constant 2 : index
    %c0_98 = arith.constant 0 : index
    %112 = tpu.strided_load %arg17[%c2_97, %c0_98] {strides = array<i32: 8, 1>} : memref<64x128xf32, #tpu.memory_space<vmem>>, vector<8x128xf32>
    %c2_99 = arith.constant 2 : index
    %c0_100 = arith.constant 0 : index
    %c0_101 = arith.constant 0 : index
    %113 = vector.load %arg9[%c2_99, %c0_100, %c0_101] : memref<6x128x32xbf16, #tpu.memory_space<vmem>>, vector<1x128x32xbf16>
    %114 = vector.shape_cast %113 : vector<1x128x32xbf16> to vector<128x32xbf16>
    %115 = arith.truncf %112 : vector<8x128xf32> to vector<8x128xbf16>
    %cst_102 = arith.constant dense<0.000000e+00> : vector<8x32xf32>
    %116 = tpu.matmul %115, %114, %cst_102 {dimension_numbers = #tpu.dot_dimension_numbers<[1], [0], [0], [1], [0, 0, 1, 1], [], []>} : vector<8x128xbf16>, vector<128x32xbf16>, vector<8x32xf32> -> vector<8x32xf32>
    %117 = arith.addf %111, %116 : vector<8x32xf32>
    %c3_103 = arith.constant 3 : index
    %c0_104 = arith.constant 0 : index
    %118 = tpu.strided_load %arg17[%c3_103, %c0_104] {strides = array<i32: 8, 1>} : memref<64x128xf32, #tpu.memory_space<vmem>>, vector<8x128xf32>
    %c3_105 = arith.constant 3 : index
    %c0_106 = arith.constant 0 : index
    %c0_107 = arith.constant 0 : index
    %119 = vector.load %arg9[%c3_105, %c0_106, %c0_107] : memref<6x128x32xbf16, #tpu.memory_space<vmem>>, vector<1x128x32xbf16>
    %120 = vector.shape_cast %119 : vector<1x128x32xbf16> to vector<128x32xbf16>
    %121 = arith.truncf %118 : vector<8x128xf32> to vector<8x128xbf16>
    %cst_108 = arith.constant dense<0.000000e+00> : vector<8x32xf32>
    %122 = tpu.matmul %121, %120, %cst_108 {dimension_numbers = #tpu.dot_dimension_numbers<[1], [0], [0], [1], [0, 0, 1, 1], [], []>} : vector<8x128xbf16>, vector<128x32xbf16>, vector<8x32xf32> -> vector<8x32xf32>
    %123 = arith.addf %117, %122 : vector<8x32xf32>
    %c4_109 = arith.constant 4 : index
    %c0_110 = arith.constant 0 : index
    %124 = tpu.strided_load %arg17[%c4_109, %c0_110] {strides = array<i32: 8, 1>} : memref<64x128xf32, #tpu.memory_space<vmem>>, vector<8x128xf32>
    %c4_111 = arith.constant 4 : index
    %c0_112 = arith.constant 0 : index
    %c0_113 = arith.constant 0 : index
    %125 = vector.load %arg9[%c4_111, %c0_112, %c0_113] : memref<6x128x32xbf16, #tpu.memory_space<vmem>>, vector<1x128x32xbf16>
    %126 = vector.shape_cast %125 : vector<1x128x32xbf16> to vector<128x32xbf16>
    %127 = arith.truncf %124 : vector<8x128xf32> to vector<8x128xbf16>
    %cst_114 = arith.constant dense<0.000000e+00> : vector<8x32xf32>
    %128 = tpu.matmul %127, %126, %cst_114 {dimension_numbers = #tpu.dot_dimension_numbers<[1], [0], [0], [1], [0, 0, 1, 1], [], []>} : vector<8x128xbf16>, vector<128x32xbf16>, vector<8x32xf32> -> vector<8x32xf32>
    %129 = arith.addf %123, %128 : vector<8x32xf32>
    %c5_115 = arith.constant 5 : index
    %c0_116 = arith.constant 0 : index
    %130 = tpu.strided_load %arg17[%c5_115, %c0_116] {strides = array<i32: 8, 1>} : memref<64x128xf32, #tpu.memory_space<vmem>>, vector<8x128xf32>
    %c5_117 = arith.constant 5 : index
    %c0_118 = arith.constant 0 : index
    %c0_119 = arith.constant 0 : index
    %131 = vector.load %arg9[%c5_117, %c0_118, %c0_119] : memref<6x128x32xbf16, #tpu.memory_space<vmem>>, vector<1x128x32xbf16>
    %132 = vector.shape_cast %131 : vector<1x128x32xbf16> to vector<128x32xbf16>
    %133 = arith.truncf %130 : vector<8x128xf32> to vector<8x128xbf16>
    %cst_120 = arith.constant dense<0.000000e+00> : vector<8x32xf32>
    %134 = tpu.matmul %133, %132, %cst_120 {dimension_numbers = #tpu.dot_dimension_numbers<[1], [0], [0], [1], [0, 0, 1, 1], [], []>} : vector<8x128xbf16>, vector<128x32xbf16>, vector<8x32xf32> -> vector<8x32xf32>
    %135 = arith.addf %129, %134 : vector<8x32xf32>
    %cst_121 = arith.constant 0.000000e+00 : f32
    %136 = vector.broadcast %cst_121 : f32 to vector<8x32xf32>
    %137 = arith.maximumf %135, %136 : vector<8x32xf32>
    %c0_122 = arith.constant 0 : index
    %c0_123 = arith.constant 0 : index
    %138 = vector.load %arg11[%c0_122, %c0_123] : memref<32x16xbf16, #tpu.memory_space<vmem>>, vector<32x16xbf16>
    %139 = arith.truncf %137 : vector<8x32xf32> to vector<8x32xbf16>
    %cst_124 = arith.constant dense<0.000000e+00> : vector<8x16xf32>
    %140 = tpu.matmul %139, %138, %cst_124 {dimension_numbers = #tpu.dot_dimension_numbers<[1], [0], [0], [1], [0, 0, 1, 1], [], []>} : vector<8x32xbf16>, vector<32x16xbf16>, vector<8x16xf32> -> vector<8x16xf32>
    %c0_125 = arith.constant 0 : index
    %c0_126 = arith.constant 0 : index
    %141 = vector.load %arg12[%c0_125, %c0_126] : memref<1x16xf32, #tpu.memory_space<vmem>>, vector<1x16xf32>
    %142 = vector.broadcast %141 : vector<1x16xf32> to vector<8x16xf32>
    %143 = arith.addf %140, %142 : vector<8x16xf32>
    %cst_127 = arith.constant 0.000000e+00 : f32
    %144 = vector.broadcast %cst_127 : f32 to vector<8x16xf32>
    %145 = arith.maximumf %143, %144 : vector<8x16xf32>
    %c0_128 = arith.constant 0 : index
    %c0_129 = arith.constant 0 : index
    %146 = vector.load %arg13[%c0_128, %c0_129] : memref<16x2xbf16, #tpu.memory_space<vmem>>, vector<16x2xbf16>
    %147 = arith.truncf %145 : vector<8x16xf32> to vector<8x16xbf16>
    %cst_130 = arith.constant dense<0.000000e+00> : vector<8x2xf32>
    %148 = tpu.matmul %147, %146, %cst_130 {dimension_numbers = #tpu.dot_dimension_numbers<[1], [0], [0], [1], [0, 0, 1, 1], [], []>} : vector<8x16xbf16>, vector<16x2xbf16>, vector<8x2xf32> -> vector<8x2xf32>
    %c0_131 = arith.constant 0 : index
    %c0_132 = arith.constant 0 : index
    %149 = vector.load %arg14[%c0_131, %c0_132] : memref<1x2xf32, #tpu.memory_space<vmem>>, vector<1x2xf32>
    %150 = vector.broadcast %149 : vector<1x2xf32> to vector<8x2xf32>
    %151 = arith.addf %148, %150 : vector<8x2xf32>
    %c0_133 = arith.constant 0 : index
    %c0_134 = arith.constant 0 : index
    %152 = vector.load %arg15[%c0_133, %c0_134] : memref<8x2xf32, #tpu.memory_space<vmem>>, vector<8x2xf32>
    tpu.vector_store %arg15[%c0_133, %c0_134], %151 {strides = array<i32>} : memref<8x2xf32, #tpu.memory_space<vmem>>, vector<8x2xf32>,
    return
  }
  func.func @transform_0(%arg0: i32) -> (i32, i32) {
    %c0_i32 = arith.constant 0 : i32
    %c0_i32_0 = arith.constant 0 : i32
    return %arg0, %c0_i32 : i32, i32
  }
  func.func @transform_1(%arg0: i32) -> (i32, i32) {
    %c0_i32 = arith.constant 0 : i32
    %c0_i32_0 = arith.constant 0 : i32
    return %arg0, %c0_i32 : i32, i32
  }
  func.func @transform_2(%arg0: i32) -> (i32, i32) {
    %c0_i32 = arith.constant 0 : i32
    %c0_i32_0 = arith.constant 0 : i32
    %c0_i32_1 = arith.constant 0 : i32
    return %c0_i32, %c0_i32_0 : i32, i32
  }
  func.func @transform_3(%arg0: i32) -> (i32, i32) {
    %c0_i32 = arith.constant 0 : i32
    %c0_i32_0 = arith.constant 0 : i32
    %c0_i32_1 = arith.constant 0 : i32
    return %c0_i32, %c0_i32_0 : i32, i32
  }
  func.func @transform_4(%arg0: i32) -> (i32, i32) {
    %c0_i32 = arith.constant 0 : i32
    %c0_i32_0 = arith.constant 0 : i32
    %c0_i32_1 = arith.constant 0 : i32
    return %c0_i32, %c0_i32_0 : i32, i32
  }
  func.func @transform_5(%arg0: i32) -> (i32, i32, i32) {
    %c0_i32 = arith.constant 0 : i32
    %c0_i32_0 = arith.constant 0 : i32
    %c0_i32_1 = arith.constant 0 : i32
    %c0_i32_2 = arith.constant 0 : i32
    return %c0_i32, %c0_i32_0, %c0_i32_1 : i32, i32, i32
  }
  func.func @transform_6(%arg0: i32) -> (i32, i32) {
    %c0_i32 = arith.constant 0 : i32
    %c0_i32_0 = arith.constant 0 : i32
    %c0_i32_1 = arith.constant 0 : i32
    return %c0_i32, %c0_i32_0 : i32, i32
  }
  func.func @transform_7(%arg0: i32) -> (i32, i32) {
    %c0_i32 = arith.constant 0 : i32
    %c0_i32_0 = arith.constant 0 : i32
    %c0_i32_1 = arith.constant 0 : i32
    return %c0_i32, %c0_i32_0 : i32, i32
  }
  func.func @transform_8(%arg0: i32) -> (i32, i32, i32) {
    %c0_i32 = arith.constant 0 : i32
    %c0_i32_0 = arith.constant 0 : i32
    %c0_i32_1 = arith.constant 0 : i32
    %c0_i32_2 = arith.constant 0 : i32
    return %c0_i32, %c0_i32_0, %c0_i32_1 : i32, i32, i32
  }
  func.func @transform_9(%arg0: i32) -> (i32, i32) {
    %c0_i32 = arith.constant 0 : i32
    %c0_i32_0 = arith.constant 0 : i32
    %c0_i32_1 = arith.constant 0 : i32
    return %c0_i32, %c0_i32_0 : i32, i32
  }
  func.func @transform_10(%arg0: i32) -> (i32, i32) {
    %c0_i32 = arith.constant 0 : i32
    %c0_i32_0 = arith.constant 0 : i32
    %c0_i32_1 = arith.constant 0 : i32
    return %c0_i32, %c0_i32_0 : i32, i32
  }
  func.func @transform_11(%arg0: i32) -> (i32, i32) {
    %c0_i32 = arith.constant 0 : i32
    %c0_i32_0 = arith.constant 0 : i32
    %c0_i32_1 = arith.constant 0 : i32
    return %c0_i32, %c0_i32_0 : i32, i32
  }
  func.func @transform_12(%arg0: i32) -> (i32, i32) {
    %c0_i32 = arith.constant 0 : i32
    %c0_i32_0 = arith.constant 0 : i32
    %c0_i32_1 = arith.constant 0 : i32
    return %c0_i32, %c0_i32_0 : i32, i32
  }
  func.func @transform_13(%arg0: i32) -> (i32, i32) {
    %c0_i32 = arith.constant 0 : i32
    %c0_i32_0 = arith.constant 0 : i32
    %c0_i32_1 = arith.constant 0 : i32
    return %c0_i32, %c0_i32_0 : i32, i32
  }
  func.func @transform_14(%arg0: i32) -> (i32, i32) {
    %c0_i32 = arith.constant 0 : i32
    %c0_i32_0 = arith.constant 0 : i32
    return %arg0, %c0_i32 : i32, i32
  }
}

</mosaic_0001>

<llo_original>
// kernel: tpu_custom_call.1
$region0: #{tpu_custom_call.1}
  #allocation0 [shape = 'u32[]', space=smem, size = 0x4, offset = 0x4, fixed_abs, tag = 'smem constant byte address 0x4 - core index']
  #allocation1 [shape = 'u32[144,128]{1,0:T(1,128)}', space=vmem, size = 0x12000, scoped, tag = 'internal scratch']
  #allocation2 [shape = 'f32[136,128]{1,0:T(8,128)}', space=vmem, size = 0x11000, scoped, tag = 'scratch operand']
  #allocation3 [shape = 'f32[64,128]{1,0:T(8,128)}', space=vmem, size = 0x8000, scoped, tag = 'scratch operand']
  %s0 = inlined_call_operand.vmem [shape: bf16[128,180], index: 0, kind: input, shape index: {}]
  %s1 = inlined_call_operand.vmem [shape: bf16[128,180], index: 1, kind: input, shape index: {}]
  %s2 = inlined_call_operand.vmem [shape: bf16[180,192], index: 2, kind: input, shape index: {}]
  %s3 = inlined_call_operand.vmem [shape: f32[1,192], index: 3, kind: input, shape index: {}]
  %s4 = inlined_call_operand.vmem [shape: bf16[192,256], index: 4, kind: input, shape index: {}]
  %s5 = inlined_call_operand.vmem [shape: bf16[5,128,192], index: 5, kind: input, shape index: {}]
  %s6 = inlined_call_operand.vmem [shape: f32[1,192], index: 6, kind: input, shape index: {}]
  %s7 = inlined_call_operand.vmem [shape: bf16[192,256], index: 7, kind: input, shape index: {}]
  %s8 = inlined_call_operand.vmem [shape: bf16[6,128,32], index: 8, kind: input, shape index: {}]
  %s9 = inlined_call_operand.vmem [shape: f32[1,32], index: 9, kind: input, shape index: {}]
  %s10 = inlined_call_operand.vmem [shape: bf16[32,16], index: 10, kind: input, shape index: {}]
  %s11 = inlined_call_operand.vmem [shape: f32[1,16], index: 11, kind: input, shape index: {}]
  %s12 = inlined_call_operand.vmem [shape: bf16[16,2], index: 12, kind: input, shape index: {}]
  %s13 = inlined_call_operand.vmem [shape: f32[1,2], index: 13, kind: input, shape index: {}]
  %s14 = inlined_call_operand.vmem [shape: f32[8,2], index: 14, kind: output, shape index: {}]
  %s15 = sld [smem:[#allocation0]]
  $region70: #{tpu_custom_call.1} parent=0
    _
  %s17 = ssub.s32 1, %s15
  %s18 = scalar_select 0, %s17, %s15
  // Predicated region
  $region2: #{tpu_custom_call.1} parent=0 // pred_check
    _
  $region3: #{tpu_custom_call.1} parent=0 // pred_check_branch
    %20 = sbr.rel (0) target = $region5
  $region4: #{tpu_custom_call.1} parent=0 // pred_region
    _
  $region5: #{tpu_custom_call.1} parent=0 // pred_fallthru
    _
  // Predicated region
  $region6: #{tpu_custom_call.1} parent=0 // pred_check
    _
  $region7: #{tpu_custom_call.1} parent=0 // pred_check_branch
    %22 = sbr.rel (0) target = $region9
  $region8: #{tpu_custom_call.1} parent=0 // pred_region
    _
  $region9: #{tpu_custom_call.1} parent=0 // pred_fallthru
    _
  // Predicated region
  $region10: #{tpu_custom_call.1} parent=0 // pred_check
    _
  $region11: #{tpu_custom_call.1} parent=0 // pred_check_branch
    %24 = sbr.rel (0) target = $region13
  $region12: #{tpu_custom_call.1} parent=0 // pred_region
    _
  $region13: #{tpu_custom_call.1} parent=0 // pred_fallthru
    _
  // Predicated region
  $region14: #{tpu_custom_call.1} parent=0 // pred_check
    _
  $region15: #{tpu_custom_call.1} parent=0 // pred_check_branch
    %26 = sbr.rel (0) target = $region17
  $region16: #{tpu_custom_call.1} parent=0 // pred_region
    _
  $region17: #{tpu_custom_call.1} parent=0 // pred_fallthru
    _
  // Predicated region
  $region18: #{tpu_custom_call.1} parent=0 // pred_check
    _
  $region19: #{tpu_custom_call.1} parent=0 // pred_check_branch
    %28 = sbr.rel (0) target = $region21
  $region20: #{tpu_custom_call.1} parent=0 // pred_region
    _
  $region21: #{tpu_custom_call.1} parent=0 // pred_fallthru
    _
  // Predicated region
  $region22: #{tpu_custom_call.1} parent=0 // pred_check
    _
  $region23: #{tpu_custom_call.1} parent=0 // pred_check_branch
    %30 = sbr.rel (0) target = $region25
  $region24: #{tpu_custom_call.1} parent=0 // pred_region
    _
  $region25: #{tpu_custom_call.1} parent=0 // pred_fallthru
    _
  // Predicated region
  $region26: #{tpu_custom_call.1} parent=0 // pred_check
    _
  $region27: #{tpu_custom_call.1} parent=0 // pred_check_branch
    %32 = sbr.rel (0) target = $region29
  $region28: #{tpu_custom_call.1} parent=0 // pred_region
    _
  $region29: #{tpu_custom_call.1} parent=0 // pred_fallthru
    _
  // Predicated region
  $region30: #{tpu_custom_call.1} parent=0 // pred_check
    _
  $region31: #{tpu_custom_call.1} parent=0 // pred_check_branch
    %34 = sbr.rel (0) target = $region33
  $region32: #{tpu_custom_call.1} parent=0 // pred_region
    _
  $region33: #{tpu_custom_call.1} parent=0 // pred_fallthru
    _
  // Predicated region
  $region34: #{tpu_custom_call.1} parent=0 // pred_check
    _
  $region35: #{tpu_custom_call.1} parent=0 // pred_check_branch
    %36 = sbr.rel (0) target = $region37
  $region36: #{tpu_custom_call.1} parent=0 // pred_region
    _
  $region37: #{tpu_custom_call.1} parent=0 // pred_fallthru
    _
  // Predicated region
  $region38: #{tpu_custom_call.1} parent=0 // pred_check
    _
  $region39: #{tpu_custom_call.1} parent=0 // pred_check_branch
    %38 = sbr.rel (0) target = $region41
  $region40: #{tpu_custom_call.1} parent=0 // pred_region
    _
  $region41: #{tpu_custom_call.1} parent=0 // pred_fallthru
    _
  // Predicated region
  $region42: #{tpu_custom_call.1} parent=0 // pred_check
    _
  $region43: #{tpu_custom_call.1} parent=0 // pred_check_branch
    %40 = sbr.rel (0) target = $region45
  $region44: #{tpu_custom_call.1} parent=0 // pred_region
    _
  $region45: #{tpu_custom_call.1} parent=0 // pred_fallthru
    _
  // Predicated region
  $region46: #{tpu_custom_call.1} parent=0 // pred_check
    _
  $region47: #{tpu_custom_call.1} parent=0 // pred_check_branch
    %42 = sbr.rel (0) target = $region49
  $region48: #{tpu_custom_call.1} parent=0 // pred_region
    _
  $region49: #{tpu_custom_call.1} parent=0 // pred_fallthru
    _
  // Predicated region
  $region50: #{tpu_custom_call.1} parent=0 // pred_check
    _
  $region51: #{tpu_custom_call.1} parent=0 // pred_check_branch
    %44 = sbr.rel (0) target = $region53
  $region52: #{tpu_custom_call.1} parent=0 // pred_region
    _
  $region53: #{tpu_custom_call.1} parent=0 // pred_fallthru
    _
  // Predicated region
  $region54: #{tpu_custom_call.1} parent=0 // pred_check
    _
  $region55: #{tpu_custom_call.1} parent=0 // pred_check_branch
    %46 = sbr.rel (0) target = $region57
  $region56: #{tpu_custom_call.1} parent=0 // pred_region
    _
  $region57: #{tpu_custom_call.1} parent=0 // pred_fallthru
    _
  %p48 = scmp.eq.s32.totalorder 0, 0
  // Predicated region
  $region58: #{tpu_custom_call.1} parent=0 // pred_check
    %p49 = pneg %p48
  $region59: #{tpu_custom_call.1} parent=0 // pred_check_branch
    %51 = sbr.rel (%p49) target = $region61
  $region60: #{tpu_custom_call.1} parent=0 // pred_region
    %52 = vst [vmem:[#allocation2 + $0x80] sm:$0xff] 0.0
  $region61: #{tpu_custom_call.1} parent=0 // pred_fallthru
    _
  %v53 = vld [vmem:[%s0] sm:$0xff]
  %v54 = vld [vmem:[%s0 + $0x8] sm:$0xff]
  %v55 = vld [vmem:[%s0 + $0x10] sm:$0xff]
  %v56 = vld [vmem:[%s0 + $0x18] sm:$0xff]
  %v57 = vld [vmem:[%s0 + $0x20] sm:$0xff]
  %v58 = vld [vmem:[%s0 + $0x28] sm:$0xff]
  %v59 = vld [vmem:[%s0 + $0x30] sm:$0xff]
  %v60 = vld [vmem:[%s0 + $0x38] sm:$0xff]
  %v61 = vld [vmem:[%s0 + $0x40] sm:$0xff]
  %v62 = vld [vmem:[%s0 + $0x48] sm:$0xff]
  %v63 = vld [vmem:[%s0 + $0x50] sm:$0xff]
  %v64 = vld [vmem:[%s0 + $0x58] sm:$0xff]
  %v65 = vld [vmem:[%s0 + $0x60] sm:$0xff]
  %v66 = vld [vmem:[%s0 + $0x68] sm:$0xff]
  %v67 = vld [vmem:[%s0 + $0x70] sm:$0xff]
  %v68 = vld [vmem:[%s0 + $0x78] sm:$0xff]
  %v69 = vld [vmem:[%s2] sm:$0xff]
  %v70 = vld [vmem:[%s2 + $0x8] sm:$0xff]
  %v71 = vld [vmem:[%s2 + $0x10] sm:$0xff]
  %v72 = vld [vmem:[%s2 + $0x18] sm:$0xff]
  %v73 = vld [vmem:[%s2 + $0x20] sm:$0xff]
  %v74 = vld [vmem:[%s2 + $0x28] sm:$0xff]
  %v75 = vld [vmem:[%s2 + $0x30] sm:$0xff]
  %v76 = vld [vmem:[%s2 + $0x38] sm:$0xff]
  %v77 = vld [vmem:[%s2 + $0x40] sm:$0xff]
  %v78 = vld [vmem:[%s2 + $0x48] sm:$0xff]
  %v79 = vld [vmem:[%s2 + $0x50] sm:$0xff]
  %v80 = vld [vmem:[%s2 + $0x58] sm:$0xff]
  %v81 = vld [vmem:[%s2 + $0x60] sm:$0xff]
  %v82 = vld [vmem:[%s2 + $0x68] sm:$0xff]
  %v83 = vld [vmem:[%s2 + $0x70] sm:$0xff]
  %v84 = vld [vmem:[%s2 + $0x78] sm:$0xff]
  %v85 = vld [vmem:[%s2 + $0x80] sm:$0xff]
  %v86 = vld [vmem:[%s2 + $0x88] sm:$0xff]
  %v87 = vld [vmem:[%s2 + $0x90] sm:$0xff]
  %v88 = vld [vmem:[%s2 + $0x98] sm:$0xff]
  %v89 = vld [vmem:[%s2 + $0xa0] sm:$0xff]
  %v90 = vld [vmem:[%s2 + $0xa8] sm:$0xff]
  %v91 = vld [vmem:[%s2 + $0xb0] sm:$0x33]
  %v92 = vld [vmem:[%s3] sm:$0x3]
  %v94 = vlaneseq
  %v95 = vshrl.u32 %v94, 7
  %v96 = vsub.s32 0, %v95
  %v97 = vrot.slane %v92, %v96
  %v98 = vlaneseq
  %v99 = vshrl.u32 %v98, 7
  %v100 = vsub.s32 1, %v99
  %v101 = vrot.slane %v92, %v100
  %v120 = vunpack.c.l.b16 %v53
  %v121 = vunpack.c.h.b16 %v53
  %v122 = vunpack.c.l.b16 %v54
  %v123 = vunpack.c.h.b16 %v54
  %v124 = vunpack.c.l.b16 %v55
  %v125 = vunpack.c.h.b16 %v55
  %v126 = vunpack.c.l.b16 %v56
  %v127 = vunpack.c.h.b16 %v56
  %v128 = vunpack.c.l.b16 %v57
  %v129 = vunpack.c.h.b16 %v57
  %v130 = vunpack.c.l.b16 %v58
  %v131 = vunpack.c.h.b16 %v58
  %v132 = vunpack.c.l.b16 %v59
  %v133 = vunpack.c.h.b16 %v59
  %v134 = vunpack.c.l.b16 %v60
  %v135 = vunpack.c.h.b16 %v60
  %v136 = vunpack.c.l.b16 %v61
  %v137 = vunpack.c.h.b16 %v61
  %v138 = vunpack.c.l.b16 %v62
  %v139 = vunpack.c.h.b16 %v62
  %v140 = vunpack.c.l.b16 %v63
  %v141 = vunpack.c.h.b16 %v63
  %v142 = vunpack.c.l.b16 %v64
  %v143 = vunpack.c.h.b16 %v64
  %v144 = vunpack.c.l.b16 %v65
  %v145 = vunpack.c.h.b16 %v65
  %v146 = vunpack.c.l.b16 %v66
  %v147 = vunpack.c.h.b16 %v66
  %v148 = vunpack.c.l.b16 %v67
  %v149 = vunpack.c.h.b16 %v67
  %v150 = vunpack.c.l.b16 %v68
  %v151 = vunpack.c.h.b16 %v68
  %v152 = vpack.c.b16 %v122, %v120
  %v153 = vpack.c.b16 %v123, %v121
  %v154 = vpack.c.b16 %v126, %v124
  %v155 = vpack.c.b16 %v127, %v125
  %v156 = vpack.c.b16 %v130, %v128
  %v157 = vpack.c.b16 %v131, %v129
  %v158 = vpack.c.b16 %v134, %v132
  %v159 = vpack.c.b16 %v135, %v133
  %v160 = vpack.c.b16 %v138, %v136
  %v161 = vpack.c.b16 %v139, %v137
  %v162 = vpack.c.b16 %v142, %v140
  %v163 = vpack.c.b16 %v143, %v141
  %v164 = vpack.c.b16 %v146, %v144
  %v165 = vpack.c.b16 %v147, %v145
  %v166 = vpack.c.b16 %v150, %v148
  %v167 = vpack.c.b16 %v151, %v149
  %v199 = vunpack.c.l.b16 %v69
  %v200 = vunpack.c.h.b16 %v69
  %v201 = vunpack.c.l.b16 %v70
  %v202 = vunpack.c.h.b16 %v70
  %v203 = vunpack.c.l.b16 %v71
  %v204 = vunpack.c.h.b16 %v71
  %v205 = vunpack.c.l.b16 %v72
  %v206 = vunpack.c.h.b16 %v72
  %v207 = vunpack.c.l.b16 %v73
  %v208 = vunpack.c.h.b16 %v73
  %v209 = vunpack.c.l.b16 %v74
  %v210 = vunpack.c.h.b16 %v74
  %v211 = vunpack.c.l.b16 %v75
  %v212 = vunpack.c.h.b16 %v75
  %v213 = vunpack.c.l.b16 %v76
  %v214 = vunpack.c.h.b16 %v76
  %v215 = vunpack.c.l.b16 %v77
  %v216 = vunpack.c.h.b16 %v77
  %v217 = vunpack.c.l.b16 %v78
  %v218 = vunpack.c.h.b16 %v78
  %v219 = vunpack.c.l.b16 %v79
  %v220 = vunpack.c.h.b16 %v79
  %v221 = vunpack.c.l.b16 %v80
  %v222 = vunpack.c.h.b16 %v80
  %v223 = vunpack.c.l.b16 %v81
  %v224 = vunpack.c.h.b16 %v81
  %v225 = vunpack.c.l.b16 %v82
  %v226 = vunpack.c.h.b16 %v82
  %v227 = vunpack.c.l.b16 %v83
  %v228 = vunpack.c.h.b16 %v83
  %v229 = vunpack.c.l.b16 %v84
  %v230 = vunpack.c.h.b16 %v84
  %v231 = vunpack.c.l.b16 %v85
  %v232 = vunpack.c.h.b16 %v85
  %v233 = vunpack.c.l.b16 %v86
  %v234 = vunpack.c.h.b16 %v86
  %v235 = vunpack.c.l.b16 %v87
  %v236 = vunpack.c.h.b16 %v87
  %v237 = vunpack.c.l.b16 %v88
  %v238 = vunpack.c.h.b16 %v88
  %v239 = vunpack.c.l.b16 %v89
  %v240 = vunpack.c.h.b16 %v89
  %v241 = vunpack.c.l.b16 %v90
  %v242 = vunpack.c.h.b16 %v90
  %v243 = vunpack.c.l.b16 %v91
  %v244 = vunpack.c.h.b16 %v91
  %v245 = vpack.c.b16 %v201, %v199
  %v246 = vpack.c.b16 %v202, %v200
  %v247 = vpack.c.b16 %v205, %v203
  %v248 = vpack.c.b16 %v206, %v204
  %v249 = vpack.c.b16 %v209, %v207
  %v250 = vpack.c.b16 %v210, %v208
  %v251 = vpack.c.b16 %v213, %v211
  %v252 = vpack.c.b16 %v214, %v212
  %v253 = vpack.c.b16 %v217, %v215
  %v254 = vpack.c.b16 %v218, %v216
  %v255 = vpack.c.b16 %v221, %v219
  %v256 = vpack.c.b16 %v222, %v220
  %v257 = vpack.c.b16 %v225, %v223
  %v258 = vpack.c.b16 %v226, %v224
  %v259 = vpack.c.b16 %v229, %v227
  %v260 = vpack.c.b16 %v230, %v228
  %v261 = vpack.c.b16 %v233, %v231
  %v262 = vpack.c.b16 %v234, %v232
  %v263 = vpack.c.b16 %v237, %v235
  %v264 = vpack.c.b16 %v238, %v236
  %v265 = vpack.c.b16 %v241, %v239
  %v266 = vpack.c.b16 %v242, %v240
  %v267 = vpack.c.b16 %v243, %v243
  %v268 = vpack.c.b16 %v244, %v244
  %vm291 = vcmask 424960
  %v293 = vsel %vm291, %v153, 0
  %v296 = vsel %vm291, %v155, 0
  %v299 = vsel %vm291, %v157, 0
  %v302 = vsel %vm291, %v159, 0
  %v305 = vsel %vm291, %v161, 0
  %v308 = vsel %vm291, %v163, 0
  %v311 = vsel %vm291, %v165, 0
  %v314 = vsel %vm291, %v167, 0
  %vm316 = vcmask 1041408
  %v318 = vsel %vm316, %v267, 0
  %v321 = vsel %vm316, %v268, 0
  %323 = vmatprep.subr.bf16.mxu0 %v260
  %324 = vmatpush1.bf16.msra.mxu0 %v259
  %325 = vmatprep.subr.bf16.mxu0 %v258
  %326 = vmatpush1.bf16.msra.mxu0 %v257
  %327 = vmatprep.subr.bf16.mxu0 %v256
  %328 = vmatpush1.bf16.msra.mxu0 %v255
  %329 = vmatprep.subr.bf16.mxu0 %v254
  %330 = vmatpush1.bf16.msra.mxu0 %v253
  %331 = vmatprep.subr.bf16.mxu0 %v252
  %332 = vmatpush1.bf16.msra.mxu0 %v251
  %333 = vmatprep.subr.bf16.mxu0 %v250
  %334 = vmatpush1.bf16.msra.mxu0 %v249
  %335 = vmatprep.subr.bf16.mxu0 %v248
  %336 = vmatpush1.bf16.msra.mxu0 %v247
  %337 = vmatprep.subr.bf16.mxu0 %v246
  %338 = vmatpush1.bf16.msra.mxu0 %v245
  %339 = vmatprep.subr.bf16.mxu0 0
  %340 = vmatpush2.bf16.msra.mxu0 0
  %341 = vmatprep.subr.bf16.mxu0 0
  %342 = vmatpush2.bf16.msra.mxu0 0
  %343 = vmatprep.subr.bf16.mxu0 0
  %344 = vmatpush2.bf16.msra.mxu0 0
  %345 = vmatprep.subr.bf16.mxu0 0
  %346 = vmatpush2.bf16.msra.mxu0 0
  %347 = vmatprep.subr.bf16.mxu0 %v321
  %348 = vmatpush2.bf16.msra.mxu0 %v318
  %349 = vmatprep.subr.bf16.mxu0 %v266
  %350 = vmatpush2.bf16.msra.mxu0 %v265
  %351 = vmatprep.subr.bf16.mxu0 %v264
  %352 = vmatpush2.bf16.msra.mxu0 %v263
  %353 = vmatprep.subr.bf16.mxu0 %v262
  %354 = vmatpush2.bf16.msra.mxu0 %v261
  %355 = vmatprep.mubr.bf16.mxu0 %v293
  %356 = vmatmul.mubr.bf16.gmra.mxu0 %v152
  %v357 = vpop.f32.mrf.mxu0
  %v358 = vadd.f32 %v97, %v357
  %v359 = vpop.f32.mrf.mxu0
  %v360 = vadd.f32 %v101, %v359
  %v361 = vpop.f32.mrf.mxu0
  %v362 = vadd.f32 %v97, %v361
  %v363 = vpop.f32.mrf.mxu0
  %v364 = vadd.f32 %v101, %v363
  %365 = vmatprep.mubr.bf16.mxu0 %v296
  %366 = vmatmul.mubr.bf16.gmra.mxu0 %v154
  %v367 = vpop.f32.mrf.mxu0
  %v368 = vadd.f32 %v97, %v367
  %v369 = vpop.f32.mrf.mxu0
  %v370 = vadd.f32 %v101, %v369
  %v371 = vpop.f32.mrf.mxu0
  %v372 = vadd.f32 %v97, %v371
  %v373 = vpop.f32.mrf.mxu0
  %v374 = vadd.f32 %v101, %v373
  %375 = vmatprep.mubr.bf16.mxu0 %v299
  %376 = vmatmul.mubr.bf16.gmra.mxu0 %v156
  %v377 = vpop.f32.mrf.mxu0
  %v378 = vadd.f32 %v97, %v377
  %v379 = vpop.f32.mrf.mxu0
  %v380 = vadd.f32 %v101, %v379
  %v381 = vpop.f32.mrf.mxu0
  %v382 = vadd.f32 %v97, %v381
  %v383 = vpop.f32.mrf.mxu0
  %v384 = vadd.f32 %v101, %v383
  %385 = vmatprep.mubr.bf16.mxu0 %v302
  %386 = vmatmul.mubr.bf16.gmra.mxu0 %v158
  %v387 = vpop.f32.mrf.mxu0
  %v388 = vadd.f32 %v97, %v387
  %v389 = vpop.f32.mrf.mxu0
  %v390 = vadd.f32 %v101, %v389
  %v391 = vpop.f32.mrf.mxu0
  %v392 = vadd.f32 %v97, %v391
  %v393 = vpop.f32.mrf.mxu0
  %v394 = vadd.f32 %v101, %v393
  %395 = vmatprep.mubr.bf16.mxu0 %v305
  %396 = vmatmul.mubr.bf16.gmra.mxu0 %v160
  %v397 = vpop.f32.mrf.mxu0
  %v398 = vadd.f32 %v97, %v397
  %v399 = vpop.f32.mrf.mxu0
  %v400 = vadd.f32 %v101, %v399
  %v401 = vpop.f32.mrf.mxu0
  %v402 = vadd.f32 %v97, %v401
  %v403 = vpop.f32.mrf.mxu0
  %v404 = vadd.f32 %v101, %v403
  %405 = vmatprep.mubr.bf16.mxu0 %v308
  %406 = vmatmul.mubr.bf16.gmra.mxu0 %v162
  %v407 = vpop.f32.mrf.mxu0
  %v408 = vadd.f32 %v97, %v407
  %v409 = vpop.f32.mrf.mxu0
  %v410 = vadd.f32 %v101, %v409
  %v411 = vpop.f32.mrf.mxu0
  %v412 = vadd.f32 %v97, %v411
  %v413 = vpop.f32.mrf.mxu0
  %v414 = vadd.f32 %v101, %v413
  %415 = vmatprep.mubr.bf16.mxu0 %v311
  %416 = vmatmul.mubr.bf16.gmra.mxu0 %v164
  %v417 = vpop.f32.mrf.mxu0
  %v418 = vadd.f32 %v97, %v417
  %v419 = vpop.f32.mrf.mxu0
  %v420 = vadd.f32 %v101, %v419
  %v421 = vpop.f32.mrf.mxu0
  %v422 = vadd.f32 %v97, %v421
  %v423 = vpop.f32.mrf.mxu0
  %v424 = vadd.f32 %v101, %v423
  %425 = vmatprep.mubr.bf16.mxu0 %v314
  %426 = vmatmul.mubr.bf16.gmra.mxu0 %v166
  %v427 = vpop.f32.mrf.mxu0
  %v428 = vadd.f32 %v97, %v427
  %v429 = vpop.f32.mrf.mxu0
  %v430 = vadd.f32 %v101, %v429
  %v431 = vpop.f32.mrf.mxu0
  %v432 = vadd.f32 %v97, %v431
  %v433 = vpop.f32.mrf.mxu0
  %v434 = vadd.f32 %v101, %v433
  %435 = vdwg.mxu0
  %v436 = vmax.f32 %v358, 0.0
  %v437 = vmax.f32 %v360, 0.0
  %v438 = vmax.f32 %v362, 0.0
  %v439 = vmax.f32 %v364, 0.0
  %v440 = vmax.f32 %v368, 0.0
  %v441 = vmax.f32 %v370, 0.0
  %v442 = vmax.f32 %v372, 0.0
  %v443 = vmax.f32 %v374, 0.0
  %v444 = vmax.f32 %v378, 0.0
  %v445 = vmax.f32 %v380, 0.0
  %v446 = vmax.f32 %v382, 0.0
  %v447 = vmax.f32 %v384, 0.0
  %v448 = vmax.f32 %v388, 0.0
  %v449 = vmax.f32 %v390, 0.0
  %v450 = vmax.f32 %v392, 0.0
  %v451 = vmax.f32 %v394, 0.0
  %v452 = vmax.f32 %v398, 0.0
  %v453 = vmax.f32 %v400, 0.0
  %v454 = vmax.f32 %v402, 0.0
  %v455 = vmax.f32 %v404, 0.0
  %v456 = vmax.f32 %v408, 0.0
  %v457 = vmax.f32 %v410, 0.0
  %v458 = vmax.f32 %v412, 0.0
  %v459 = vmax.f32 %v414, 0.0
  %v460 = vmax.f32 %v418, 0.0
  %v461 = vmax.f32 %v420, 0.0
  %v462 = vmax.f32 %v422, 0.0
  %v463 = vmax.f32 %v424, 0.0
  %v464 = vmax.f32 %v428, 0.0
  %v465 = vmax.f32 %v430, 0.0
  %v466 = vmax.f32 %v432, 0.0
  %v467 = vmax.f32 %v434, 0.0
  %v468 = vld [vmem:[%s1] sm:$0xff]
  %v469 = vld [vmem:[%s1 + $0x8] sm:$0xff]
  %v470 = vld [vmem:[%s1 + $0x10] sm:$0xff]
  %v471 = vld [vmem:[%s1 + $0x18] sm:$0xff]
  %v472 = vld [vmem:[%s1 + $0x20] sm:$0xff]
  %v473 = vld [vmem:[%s1 + $0x28] sm:$0xff]
  %v474 = vld [vmem:[%s1 + $0x30] sm:$0xff]
  %v475 = vld [vmem:[%s1 + $0x38] sm:$0xff]
  %v476 = vld [vmem:[%s1 + $0x40] sm:$0xff]
  %v477 = vld [vmem:[%s1 + $0x48] sm:$0xff]
  %v478 = vld [vmem:[%s1 + $0x50] sm:$0xff]
  %v479 = vld [vmem:[%s1 + $0x58] sm:$0xff]
  %v480 = vld [vmem:[%s1 + $0x60] sm:$0xff]
  %v481 = vld [vmem:[%s1 + $0x68] sm:$0xff]
  %v482 = vld [vmem:[%s1 + $0x70] sm:$0xff]
  %v483 = vld [vmem:[%s1 + $0x78] sm:$0xff]
  %v500 = vunpack.c.l.b16 %v468
  %v501 = vunpack.c.h.b16 %v468
  %v502 = vunpack.c.l.b16 %v469
  %v503 = vunpack.c.h.b16 %v469
  %v504 = vunpack.c.l.b16 %v470
  %v505 = vunpack.c.h.b16 %v470
  %v506 = vunpack.c.l.b16 %v471
  %v507 = vunpack.c.h.b16 %v471
  %v508 = vunpack.c.l.b16 %v472
  %v509 = vunpack.c.h.b16 %v472
  %v510 = vunpack.c.l.b16 %v473
  %v511 = vunpack.c.h.b16 %v473
  %v512 = vunpack.c.l.b16 %v474
  %v513 = vunpack.c.h.b16 %v474
  %v514 = vunpack.c.l.b16 %v475
  %v515 = vunpack.c.h.b16 %v475
  %v516 = vunpack.c.l.b16 %v476
  %v517 = vunpack.c.h.b16 %v476
  %v518 = vunpack.c.l.b16 %v477
  %v519 = vunpack.c.h.b16 %v477
  %v520 = vunpack.c.l.b16 %v478
  %v521 = vunpack.c.h.b16 %v478
  %v522 = vunpack.c.l.b16 %v479
  %v523 = vunpack.c.h.b16 %v479
  %v524 = vunpack.c.l.b16 %v480
  %v525 = vunpack.c.h.b16 %v480
  %v526 = vunpack.c.l.b16 %v481
  %v527 = vunpack.c.h.b16 %v481
  %v528 = vunpack.c.l.b16 %v482
  %v529 = vunpack.c.h.b16 %v482
  %v530 = vunpack.c.l.b16 %v483
  %v531 = vunpack.c.h.b16 %v483
  %v532 = vpack.c.b16 %v502, %v500
  %v533 = vpack.c.b16 %v503, %v501
  %v534 = vpack.c.b16 %v506, %v504
  %v535 = vpack.c.b16 %v507, %v505
  %v536 = vpack.c.b16 %v510, %v508
  %v537 = vpack.c.b16 %v511, %v509
  %v538 = vpack.c.b16 %v514, %v512
  %v539 = vpack.c.b16 %v515, %v513
  %v540 = vpack.c.b16 %v518, %v516
  %v541 = vpack.c.b16 %v519, %v517
  %v542 = vpack.c.b16 %v522, %v520
  %v543 = vpack.c.b16 %v523, %v521
  %v544 = vpack.c.b16 %v526, %v524
  %v545 = vpack.c.b16 %v527, %v525
  %v546 = vpack.c.b16 %v530, %v528
  %v547 = vpack.c.b16 %v531, %v529
  %v557 = vsel %vm291, %v533, 0
  %v560 = vsel %vm291, %v535, 0
  %v563 = vsel %vm291, %v537, 0
  %v566 = vsel %vm291, %v539, 0
  %v569 = vsel %vm291, %v541, 0
  %v572 = vsel %vm291, %v543, 0
  %v575 = vsel %vm291, %v545, 0
  %v578 = vsel %vm291, %v547, 0
  %580 = vmatprep.subr.bf16.mxu0 %v260
  %581 = vmatpush1.bf16.msra.mxu0 %v259
  %582 = vmatprep.subr.bf16.mxu0 %v258
  %583 = vmatpush1.bf16.msra.mxu0 %v257
  %584 = vmatprep.subr.bf16.mxu0 %v256
  %585 = vmatpush1.bf16.msra.mxu0 %v255
  %586 = vmatprep.subr.bf16.mxu0 %v254
  %587 = vmatpush1.bf16.msra.mxu0 %v253
  %588 = vmatprep.subr.bf16.mxu0 %v252
  %589 = vmatpush1.bf16.msra.mxu0 %v251
  %590 = vmatprep.subr.bf16.mxu0 %v250
  %591 = vmatpush1.bf16.msra.mxu0 %v249
  %592 = vmatprep.subr.bf16.mxu0 %v248
  %593 = vmatpush1.bf16.msra.mxu0 %v247
  %594 = vmatprep.subr.bf16.mxu0 %v246
  %595 = vmatpush1.bf16.msra.mxu0 %v245
  %596 = vmatprep.subr.bf16.mxu0 0
  %597 = vmatpush2.bf16.msra.mxu0 0
  %598 = vmatprep.subr.bf16.mxu0 0
  %599 = vmatpush2.bf16.msra.mxu0 0
  %600 = vmatprep.subr.bf16.mxu0 0
  %601 = vmatpush2.bf16.msra.mxu0 0
  %602 = vmatprep.subr.bf16.mxu0 0
  %603 = vmatpush2.bf16.msra.mxu0 0
  %604 = vmatprep.subr.bf16.mxu0 %v321
  %605 = vmatpush2.bf16.msra.mxu0 %v318
  %606 = vmatprep.subr.bf16.mxu0 %v266
  %607 = vmatpush2.bf16.msra.mxu0 %v265
  %608 = vmatprep.subr.bf16.mxu0 %v264
  %609 = vmatpush2.bf16.msra.mxu0 %v263
  %610 = vmatprep.subr.bf16.mxu0 %v262
  %611 = vmatpush2.bf16.msra.mxu0 %v261
  %612 = vmatprep.mubr.bf16.mxu0 %v557
  %613 = vmatmul.mubr.bf16.gmra.mxu0 %v532
  %v614 = vpop.f32.mrf.mxu0
  %v615 = vadd.f32 %v97, %v614
  %v616 = vpop.f32.mrf.mxu0
  %v617 = vadd.f32 %v101, %v616
  %v618 = vpop.f32.mrf.mxu0
  %v619 = vadd.f32 %v97, %v618
  %v620 = vpop.f32.mrf.mxu0
  %v621 = vadd.f32 %v101, %v620
  %622 = vmatprep.mubr.bf16.mxu0 %v560
  %623 = vmatmul.mubr.bf16.gmra.mxu0 %v534
  %v624 = vpop.f32.mrf.mxu0
  %v625 = vadd.f32 %v97, %v624
  %v626 = vpop.f32.mrf.mxu0
  %v627 = vadd.f32 %v101, %v626
  %v628 = vpop.f32.mrf.mxu0
  %v629 = vadd.f32 %v97, %v628
  %v630 = vpop.f32.mrf.mxu0
  %v631 = vadd.f32 %v101, %v630
  %632 = vmatprep.mubr.bf16.mxu0 %v563
  %633 = vmatmul.mubr.bf16.gmra.mxu0 %v536
  %v634 = vpop.f32.mrf.mxu0
  %v635 = vadd.f32 %v97, %v634
  %v636 = vpop.f32.mrf.mxu0
  %v637 = vadd.f32 %v101, %v636
  %v638 = vpop.f32.mrf.mxu0
  %v639 = vadd.f32 %v97, %v638
  %v640 = vpop.f32.mrf.mxu0
  %v641 = vadd.f32 %v101, %v640
  %642 = vmatprep.mubr.bf16.mxu0 %v566
  %643 = vmatmul.mubr.bf16.gmra.mxu0 %v538
  %v644 = vpop.f32.mrf.mxu0
  %v645 = vadd.f32 %v97, %v644
  %v646 = vpop.f32.mrf.mxu0
  %v647 = vadd.f32 %v101, %v646
  %v648 = vpop.f32.mrf.mxu0
  %v649 = vadd.f32 %v97, %v648
  %v650 = vpop.f32.mrf.mxu0
  %v651 = vadd.f32 %v101, %v650
  %652 = vmatprep.mubr.bf16.mxu0 %v569
  %653 = vmatmul.mubr.bf16.gmra.mxu0 %v540
  %v654 = vpop.f32.mrf.mxu0
  %v655 = vadd.f32 %v97, %v654
  %v656 = vpop.f32.mrf.mxu0
  %v657 = vadd.f32 %v101, %v656
  %v658 = vpop.f32.mrf.mxu0
  %v659 = vadd.f32 %v97, %v658
  %v660 = vpop.f32.mrf.mxu0
  %v661 = vadd.f32 %v101, %v660
  %662 = vmatprep.mubr.bf16.mxu0 %v572
  %663 = vmatmul.mubr.bf16.gmra.mxu0 %v542
  %v664 = vpop.f32.mrf.mxu0
  %v665 = vadd.f32 %v97, %v664
  %v666 = vpop.f32.mrf.mxu0
  %v667 = vadd.f32 %v101, %v666
  %v668 = vpop.f32.mrf.mxu0
  %v669 = vadd.f32 %v97, %v668
  %v670 = vpop.f32.mrf.mxu0
  %v671 = vadd.f32 %v101, %v670
  %672 = vmatprep.mubr.bf16.mxu0 %v575
  %673 = vmatmul.mubr.bf16.gmra.mxu0 %v544
  %v674 = vpop.f32.mrf.mxu0
  %v675 = vadd.f32 %v97, %v674
  %v676 = vpop.f32.mrf.mxu0
  %v677 = vadd.f32 %v101, %v676
  %v678 = vpop.f32.mrf.mxu0
  %v679 = vadd.f32 %v97, %v678
  %v680 = vpop.f32.mrf.mxu0
  %v681 = vadd.f32 %v101, %v680
  %682 = vmatprep.mubr.bf16.mxu0 %v578
  %683 = vmatmul.mubr.bf16.gmra.mxu0 %v546
  %v684 = vpop.f32.mrf.mxu0
  %v685 = vadd.f32 %v97, %v684
  %v686 = vpop.f32.mrf.mxu0
  %v687 = vadd.f32 %v101, %v686
  %v688 = vpop.f32.mrf.mxu0
  %v689 = vadd.f32 %v97, %v688
  %v690 = vpop.f32.mrf.mxu0
  %v691 = vadd.f32 %v101, %v690
  %692 = vdwg.mxu0
  %v693 = vmax.f32 %v615, 0.0
  %v694 = vmax.f32 %v617, 0.0
  %v695 = vmax.f32 %v619, 0.0
  %v696 = vmax.f32 %v621, 0.0
  %v697 = vmax.f32 %v625, 0.0
  %v698 = vmax.f32 %v627, 0.0
  %v699 = vmax.f32 %v629, 0.0
  %v700 = vmax.f32 %v631, 0.0
  %v701 = vmax.f32 %v635, 0.0
  %v702 = vmax.f32 %v637, 0.0
  %v703 = vmax.f32 %v639, 0.0
  %v704 = vmax.f32 %v641, 0.0
  %v705 = vmax.f32 %v645, 0.0
  %v706 = vmax.f32 %v647, 0.0
  %v707 = vmax.f32 %v649, 0.0
  %v708 = vmax.f32 %v651, 0.0
  %v709 = vmax.f32 %v655, 0.0
  %v710 = vmax.f32 %v657, 0.0
  %v711 = vmax.f32 %v659, 0.0
  %v712 = vmax.f32 %v661, 0.0
  %v713 = vmax.f32 %v665, 0.0
  %v714 = vmax.f32 %v667, 0.0
  %v715 = vmax.f32 %v669, 0.0
  %v716 = vmax.f32 %v671, 0.0
  %v717 = vmax.f32 %v675, 0.0
  %v718 = vmax.f32 %v677, 0.0
  %v719 = vmax.f32 %v679, 0.0
  %v720 = vmax.f32 %v681, 0.0
  %v721 = vmax.f32 %v685, 0.0
  %v722 = vmax.f32 %v687, 0.0
  %v723 = vmax.f32 %v689, 0.0
  %v724 = vmax.f32 %v691, 0.0
  %v725 = vmax.f32 %v436, %v693
  %v726 = vmax.f32 %v437, %v694
  %v727 = vmax.f32 %v438, %v695
  %v728 = vmax.f32 %v439, %v696
  %v729 = vmax.f32 %v440, %v697
  %v730 = vmax.f32 %v441, %v698
  %v731 = vmax.f32 %v442, %v699
  %v732 = vmax.f32 %v443, %v700
  %v733 = vmax.f32 %v444, %v701
  %v734 = vmax.f32 %v445, %v702
  %v735 = vmax.f32 %v446, %v703
  %v736 = vmax.f32 %v447, %v704
  %v737 = vmax.f32 %v448, %v705
  %v738 = vmax.f32 %v449, %v706
  %v739 = vmax.f32 %v450, %v707
  %v740 = vmax.f32 %v451, %v708
  %v741 = vmax.f32 %v452, %v709
  %v742 = vmax.f32 %v453, %v710
  %v743 = vmax.f32 %v454, %v711
  %v744 = vmax.f32 %v455, %v712
  %v745 = vmax.f32 %v456, %v713
  %v746 = vmax.f32 %v457, %v714
  %v747 = vmax.f32 %v458, %v715
  %v748 = vmax.f32 %v459, %v716
  %v749 = vmax.f32 %v460, %v717
  %v750 = vmax.f32 %v461, %v718
  %v751 = vmax.f32 %v462, %v719
  %v752 = vmax.f32 %v463, %v720
  %v753 = vmax.f32 %v464, %v721
  %v754 = vmax.f32 %v465, %v722
  %v755 = vmax.f32 %v466, %v723
  %v756 = vmax.f32 %v467, %v724
  %v757 = vld [vmem:[%s4] sm:$0xff]
  %v758 = vld [vmem:[%s4 + $0x8] sm:$0xff]
  %v759 = vld [vmem:[%s4 + $0x10] sm:$0xff]
  %v760 = vld [vmem:[%s4 + $0x18] sm:$0xff]
  %v761 = vld [vmem:[%s4 + $0x20] sm:$0xff]
  %v762 = vld [vmem:[%s4 + $0x28] sm:$0xff]
  %v763 = vld [vmem:[%s4 + $0x30] sm:$0xff]
  %v764 = vld [vmem:[%s4 + $0x38] sm:$0xff]
  %v765 = vld [vmem:[%s4 + $0x40] sm:$0xff]
  %v766 = vld [vmem:[%s4 + $0x48] sm:$0xff]
  %v767 = vld [vmem:[%s4 + $0x50] sm:$0xff]
  %v768 = vld [vmem:[%s4 + $0x58] sm:$0xff]
  %v769 = vld [vmem:[%s4 + $0x60] sm:$0xff]
  %v770 = vld [vmem:[%s4 + $0x68] sm:$0xff]
  %v771 = vld [vmem:[%s4 + $0x70] sm:$0xff]
  %v772 = vld [vmem:[%s4 + $0x78] sm:$0xff]
  %v773 = vld [vmem:[%s4 + $0x80] sm:$0xff]
  %v774 = vld [vmem:[%s4 + $0x88] sm:$0xff]
  %v775 = vld [vmem:[%s4 + $0x90] sm:$0xff]
  %v776 = vld [vmem:[%s4 + $0x98] sm:$0xff]
  %v777 = vld [vmem:[%s4 + $0xa0] sm:$0xff]
  %v778 = vld [vmem:[%s4 + $0xa8] sm:$0xff]
  %v779 = vld [vmem:[%s4 + $0xb0] sm:$0xff]
  %v780 = vld [vmem:[%s4 + $0xb8] sm:$0xff]
  %v781 = vpack.c.bf16 %v727, %v725
  %v782 = vpack.c.bf16 %v728, %v726
  %v783 = vpack.c.bf16 %v731, %v729
  %v784 = vpack.c.bf16 %v732, %v730
  %v785 = vpack.c.bf16 %v735, %v733
  %v786 = vpack.c.bf16 %v736, %v734
  %v787 = vpack.c.bf16 %v739, %v737
  %v788 = vpack.c.bf16 %v740, %v738
  %v789 = vpack.c.bf16 %v743, %v741
  %v790 = vpack.c.bf16 %v744, %v742
  %v791 = vpack.c.bf16 %v747, %v745
  %v792 = vpack.c.bf16 %v748, %v746
  %v793 = vpack.c.bf16 %v751, %v749
  %v794 = vpack.c.bf16 %v752, %v750
  %v795 = vpack.c.bf16 %v755, %v753
  %v796 = vpack.c.bf16 %v756, %v754
  %v821 = vunpack.c.l.b16 %v757
  %v822 = vunpack.c.h.b16 %v757
  %v823 = vunpack.c.l.b16 %v758
  %v824 = vunpack.c.h.b16 %v758
  %v825 = vunpack.c.l.b16 %v759
  %v826 = vunpack.c.h.b16 %v759
  %v827 = vunpack.c.l.b16 %v760
  %v828 = vunpack.c.h.b16 %v760
  %v829 = vunpack.c.l.b16 %v761
  %v830 = vunpack.c.h.b16 %v761
  %v831 = vunpack.c.l.b16 %v762
  %v832 = vunpack.c.h.b16 %v762
  %v833 = vunpack.c.l.b16 %v763
  %v834 = vunpack.c.h.b16 %v763
  %v835 = vunpack.c.l.b16 %v764
  %v836 = vunpack.c.h.b16 %v764
  %v837 = vunpack.c.l.b16 %v765
  %v838 = vunpack.c.h.b16 %v765
  %v839 = vunpack.c.l.b16 %v766
  %v840 = vunpack.c.h.b16 %v766
  %v841 = vunpack.c.l.b16 %v767
  %v842 = vunpack.c.h.b16 %v767
  %v843 = vunpack.c.l.b16 %v768
  %v844 = vunpack.c.h.b16 %v768
  %v845 = vunpack.c.l.b16 %v769
  %v846 = vunpack.c.h.b16 %v769
  %v847 = vunpack.c.l.b16 %v770
  %v848 = vunpack.c.h.b16 %v770
  %v849 = vunpack.c.l.b16 %v771
  %v850 = vunpack.c.h.b16 %v771
  %v851 = vunpack.c.l.b16 %v772
  %v852 = vunpack.c.h.b16 %v772
  %v853 = vunpack.c.l.b16 %v773
  %v854 = vunpack.c.h.b16 %v773
  %v855 = vunpack.c.l.b16 %v774
  %v856 = vunpack.c.h.b16 %v774
  %v857 = vunpack.c.l.b16 %v775
  %v858 = vunpack.c.h.b16 %v775
  %v859 = vunpack.c.l.b16 %v776
  %v860 = vunpack.c.h.b16 %v776
  %v861 = vunpack.c.l.b16 %v777
  %v862 = vunpack.c.h.b16 %v777
  %v863 = vunpack.c.l.b16 %v778
  %v864 = vunpack.c.h.b16 %v778
  %v865 = vunpack.c.l.b16 %v779
  %v866 = vunpack.c.h.b16 %v779
  %v867 = vunpack.c.l.b16 %v780
  %v868 = vunpack.c.h.b16 %v780
  %v869 = vpack.c.b16 %v823, %v821
  %v870 = vpack.c.b16 %v824, %v822
  %v871 = vpack.c.b16 %v827, %v825
  %v872 = vpack.c.b16 %v828, %v826
  %v873 = vpack.c.b16 %v831, %v829
  %v874 = vpack.c.b16 %v832, %v830
  %v875 = vpack.c.b16 %v835, %v833
  %v876 = vpack.c.b16 %v836, %v834
  %v877 = vpack.c.b16 %v839, %v837
  %v878 = vpack.c.b16 %v840, %v838
  %v879 = vpack.c.b16 %v843, %v841
  %v880 = vpack.c.b16 %v844, %v842
  %v881 = vpack.c.b16 %v847, %v845
  %v882 = vpack.c.b16 %v848, %v846
  %v883 = vpack.c.b16 %v851, %v849
  %v884 = vpack.c.b16 %v852, %v850
  %v885 = vpack.c.b16 %v855, %v853
  %v886 = vpack.c.b16 %v856, %v854
  %v887 = vpack.c.b16 %v859, %v857
  %v888 = vpack.c.b16 %v860, %v858
  %v889 = vpack.c.b16 %v863, %v861
  %v890 = vpack.c.b16 %v864, %v862
  %v891 = vpack.c.b16 %v867, %v865
  %v892 = vpack.c.b16 %v868, %v866
  %vm917 = vcmask 523264
  %v919 = vsel %vm917, %v782, 0
  %v922 = vsel %vm917, %v784, 0
  %v925 = vsel %vm917, %v786, 0
  %v928 = vsel %vm917, %v788, 0
  %v931 = vsel %vm917, %v790, 0
  %v934 = vsel %vm917, %v792, 0
  %v937 = vsel %vm917, %v794, 0
  %v940 = vsel %vm917, %v796, 0
  %942 = vmatprep.subr.bf16.mxu0 %v884
  %943 = vmatpush1.bf16.msra.mxu0 %v883
  %944 = vmatprep.subr.bf16.mxu0 %v882
  %945 = vmatpush1.bf16.msra.mxu0 %v881
  %946 = vmatprep.subr.bf16.mxu0 %v880
  %947 = vmatpush1.bf16.msra.mxu0 %v879
  %948 = vmatprep.subr.bf16.mxu0 %v878
  %949 = vmatpush1.bf16.msra.mxu0 %v877
  %950 = vmatprep.subr.bf16.mxu0 %v876
  %951 = vmatpush1.bf16.msra.mxu0 %v875
  %952 = vmatprep.subr.bf16.mxu0 %v874
  %953 = vmatpush1.bf16.msra.mxu0 %v873
  %954 = vmatprep.subr.bf16.mxu0 %v872
  %955 = vmatpush1.bf16.msra.mxu0 %v871
  %956 = vmatprep.subr.bf16.mxu0 %v870
  %957 = vmatpush1.bf16.msra.mxu0 %v869
  %958 = vmatprep.subr.bf16.mxu0 0
  %959 = vmatpush2.bf16.msra.mxu0 0
  %960 = vmatprep.subr.bf16.mxu0 0
  %961 = vmatpush2.bf16.msra.mxu0 0
  %962 = vmatprep.subr.bf16.mxu0 0
  %963 = vmatpush2.bf16.msra.mxu0 0
  %964 = vmatprep.subr.bf16.mxu0 0
  %965 = vmatpush2.bf16.msra.mxu0 0
  %966 = vmatprep.subr.bf16.mxu0 %v892
  %967 = vmatpush2.bf16.msra.mxu0 %v891
  %968 = vmatprep.subr.bf16.mxu0 %v890
  %969 = vmatpush2.bf16.msra.mxu0 %v889
  %970 = vmatprep.subr.bf16.mxu0 %v888
  %971 = vmatpush2.bf16.msra.mxu0 %v887
  %972 = vmatprep.subr.bf16.mxu0 %v886
  %973 = vmatpush2.bf16.msra.mxu0 %v885
  %974 = vmatprep.mubr.bf16.mxu0 %v919
  %975 = vmatmul.mubr.bf16.gmra.mxu0 %v781
  %v976 = vpop.f32.mrf.mxu0
  %v977 = vadd.f32 0.0, %v976
  %v978 = vpop.f32.mrf.mxu0
  %v979 = vadd.f32 0.0, %v978
  %v980 = vpop.f32.mrf.mxu0
  %v981 = vadd.f32 0.0, %v980
  %v982 = vpop.f32.mrf.mxu0
  %v983 = vadd.f32 0.0, %v982
  %984 = vmatprep.mubr.bf16.mxu0 %v922
  %985 = vmatmul.mubr.bf16.gmra.mxu0 %v783
  %v986 = vpop.f32.mrf.mxu0
  %v987 = vadd.f32 0.0, %v986
  %v988 = vpop.f32.mrf.mxu0
  %v989 = vadd.f32 0.0, %v988
  %v990 = vpop.f32.mrf.mxu0
  %v991 = vadd.f32 0.0, %v990
  %v992 = vpop.f32.mrf.mxu0
  %v993 = vadd.f32 0.0, %v992
  %994 = vmatprep.mubr.bf16.mxu0 %v925
  %995 = vmatmul.mubr.bf16.gmra.mxu0 %v785
  %v996 = vpop.f32.mrf.mxu0
  %v997 = vadd.f32 0.0, %v996
  %v998 = vpop.f32.mrf.mxu0
  %v999 = vadd.f32 0.0, %v998
  %v1000 = vpop.f32.mrf.mxu0
  %v1001 = vadd.f32 0.0, %v1000
  %v1002 = vpop.f32.mrf.mxu0
  %v1003 = vadd.f32 0.0, %v1002
  %1004 = vmatprep.mubr.bf16.mxu0 %v928
  %1005 = vmatmul.mubr.bf16.gmra.mxu0 %v787
  %v1006 = vpop.f32.mrf.mxu0
  %v1007 = vadd.f32 0.0, %v1006
  %v1008 = vpop.f32.mrf.mxu0
  %v1009 = vadd.f32 0.0, %v1008
  %v1010 = vpop.f32.mrf.mxu0
  %v1011 = vadd.f32 0.0, %v1010
  %v1012 = vpop.f32.mrf.mxu0
  %v1013 = vadd.f32 0.0, %v1012
  %1014 = vmatprep.mubr.bf16.mxu0 %v931
  %1015 = vmatmul.mubr.bf16.gmra.mxu0 %v789
  %v1016 = vpop.f32.mrf.mxu0
  %v1017 = vadd.f32 0.0, %v1016
  %v1018 = vpop.f32.mrf.mxu0
  %v1019 = vadd.f32 0.0, %v1018
  %v1020 = vpop.f32.mrf.mxu0
  %v1021 = vadd.f32 0.0, %v1020
  %v1022 = vpop.f32.mrf.mxu0
  %v1023 = vadd.f32 0.0, %v1022
  %1024 = vmatprep.mubr.bf16.mxu0 %v934
  %1025 = vmatmul.mubr.bf16.gmra.mxu0 %v791
  %v1026 = vpop.f32.mrf.mxu0
  %v1027 = vadd.f32 0.0, %v1026
  %v1028 = vpop.f32.mrf.mxu0
  %v1029 = vadd.f32 0.0, %v1028
  %v1030 = vpop.f32.mrf.mxu0
  %v1031 = vadd.f32 0.0, %v1030
  %v1032 = vpop.f32.mrf.mxu0
  %v1033 = vadd.f32 0.0, %v1032
  %1034 = vmatprep.mubr.bf16.mxu0 %v937
  %1035 = vmatmul.mubr.bf16.gmra.mxu0 %v793
  %v1036 = vpop.f32.mrf.mxu0
  %v1037 = vadd.f32 0.0, %v1036
  %v1038 = vpop.f32.mrf.mxu0
  %v1039 = vadd.f32 0.0, %v1038
  %v1040 = vpop.f32.mrf.mxu0
  %v1041 = vadd.f32 0.0, %v1040
  %v1042 = vpop.f32.mrf.mxu0
  %v1043 = vadd.f32 0.0, %v1042
  %1044 = vmatprep.mubr.bf16.mxu0 %v940
  %1045 = vmatmul.mubr.bf16.gmra.mxu0 %v795
  %v1046 = vpop.f32.mrf.mxu0
  %v1047 = vadd.f32 0.0, %v1046
  %v1048 = vpop.f32.mrf.mxu0
  %v1049 = vadd.f32 0.0, %v1048
  %v1050 = vpop.f32.mrf.mxu0
  %v1051 = vadd.f32 0.0, %v1050
  %v1052 = vpop.f32.mrf.mxu0
  %v1053 = vadd.f32 0.0, %v1052
  %1054 = vdwg.mxu0
  %v1055 = vmax.f32 %v977, %v979
  %v1056 = vmax.f32 %v981, %v983
  %v1057 = vmax.f32 %v987, %v989
  %v1058 = vmax.f32 %v991, %v993
  %v1059 = vmax.f32 %v997, %v999
  %v1060 = vmax.f32 %v1001, %v1003
  %v1061 = vmax.f32 %v1007, %v1009
  %v1062 = vmax.f32 %v1011, %v1013
  %v1063 = vmax.f32 %v1017, %v1019
  %v1064 = vmax.f32 %v1021, %v1023
  %v1065 = vmax.f32 %v1027, %v1029
  %v1066 = vmax.f32 %v1031, %v1033
  %v1067 = vmax.f32 %v1037, %v1039
  %v1068 = vmax.f32 %v1041, %v1043
  %v1069 = vmax.f32 %v1047, %v1049
  %v1070 = vmax.f32 %v1051, %v1053
  %1071 = vst [vmem:[#allocation2] sm:$0xff] %v1055
  %1072 = vst [vmem:[#allocation2 + $0x8] sm:$0xff] %v1056
  %1073 = vst [vmem:[#allocation2 + $0x10] sm:$0xff] %v1057
  %1074 = vst [vmem:[#allocation2 + $0x18] sm:$0xff] %v1058
  %1075 = vst [vmem:[#allocation2 + $0x20] sm:$0xff] %v1059
  %1076 = vst [vmem:[#allocation2 + $0x28] sm:$0xff] %v1060
  %1077 = vst [vmem:[#allocation2 + $0x30] sm:$0xff] %v1061
  %1078 = vst [vmem:[#allocation2 + $0x38] sm:$0xff] %v1062
  %1079 = vst [vmem:[#allocation2 + $0x40] sm:$0xff] %v1063
  %1080 = vst [vmem:[#allocation2 + $0x48] sm:$0xff] %v1064
  %1081 = vst [vmem:[#allocation2 + $0x50] sm:$0xff] %v1065
  %1082 = vst [vmem:[#allocation2 + $0x58] sm:$0xff] %v1066
  %1083 = vst [vmem:[#allocation2 + $0x60] sm:$0xff] %v1067
  %1084 = vst [vmem:[#allocation2 + $0x68] sm:$0xff] %v1068
  %1085 = vst [vmem:[#allocation2 + $0x70] sm:$0xff] %v1069
  %1086 = vst [vmem:[#allocation2 + $0x78] sm:$0xff] %v1070
  %v1087 = vld [vmem:[#allocation2] ss:$2 sm:$0xff]
  %s1088 = scalar_lea.vmem [#allocation2], 16
  %v1089 = vld [vmem:[%s1088] ss:$2 sm:$0xff]
  %s1090 = scalar_lea.vmem [#allocation2], 32
  %v1091 = vld [vmem:[%s1090] ss:$2 sm:$0xff]
  %s1092 = scalar_lea.vmem [#allocation2], 48
  %v1093 = vld [vmem:[%s1092] ss:$2 sm:$0xff]
  %s1094 = scalar_lea.vmem [#allocation2], 64
  %v1095 = vld [vmem:[%s1094] ss:$2 sm:$0xff]
  %s1096 = scalar_lea.vmem [#allocation2], 80
  %v1097 = vld [vmem:[%s1096] ss:$2 sm:$0xff]
  %s1098 = scalar_lea.vmem [#allocation2], 96
  %v1099 = vld [vmem:[%s1098] ss:$2 sm:$0xff]
  %s1100 = scalar_lea.vmem [#allocation2], 112
  %v1101 = vld [vmem:[%s1100] ss:$2 sm:$0xff]
  %v1102 = vld [vmem:[%s5] sm:$0xff]
  %v1103 = vld [vmem:[%s5 + $0x8] sm:$0xff]
  %v1104 = vld [vmem:[%s5 + $0x10] sm:$0xff]
  %v1105 = vld [vmem:[%s5 + $0x18] sm:$0xff]
  %v1106 = vld [vmem:[%s5 + $0x20] sm:$0xff]
  %v1107 = vld [vmem:[%s5 + $0x28] sm:$0xff]
  %v1108 = vld [vmem:[%s5 + $0x30] sm:$0xff]
  %v1109 = vld [vmem:[%s5 + $0x38] sm:$0xff]
  %v1110 = vld [vmem:[%s5 + $0x40] sm:$0xff]
  %v1111 = vld [vmem:[%s5 + $0x48] sm:$0xff]
  %v1112 = vld [vmem:[%s5 + $0x50] sm:$0xff]
  %v1113 = vld [vmem:[%s5 + $0x58] sm:$0xff]
  %v1114 = vld [vmem:[%s5 + $0x60] sm:$0xff]
  %v1115 = vld [vmem:[%s5 + $0x68] sm:$0xff]
  %v1116 = vld [vmem:[%s5 + $0x70] sm:$0xff]
  %v1117 = vld [vmem:[%s5 + $0x78] sm:$0xff]
  %v1118 = vpack.c.bf16 %v1089, %v1087
  %v1119 = vpack.c.bf16 %v1093, %v1091
  %v1120 = vpack.c.bf16 %v1097, %v1095
  %v1121 = vpack.c.bf16 %v1101, %v1099
  %s1122 = scalar_lea.vmem [#allocation2], 1
  %v1123 = vld [vmem:[%s1122] ss:$2 sm:$0xff]
  %s1124 = scalar_lea.vmem [#allocation2], 17
  %v1125 = vld [vmem:[%s1124] ss:$2 sm:$0xff]
  %s1126 = scalar_lea.vmem [#allocation2], 33
  %v1127 = vld [vmem:[%s1126] ss:$2 sm:$0xff]
  %s1128 = scalar_lea.vmem [#allocation2], 49
  %v1129 = vld [vmem:[%s1128] ss:$2 sm:$0xff]
  %s1130 = scalar_lea.vmem [#allocation2], 65
  %v1131 = vld [vmem:[%s1130] ss:$2 sm:$0xff]
  %s1132 = scalar_lea.vmem [#allocation2], 81
  %v1133 = vld [vmem:[%s1132] ss:$2 sm:$0xff]
  %s1134 = scalar_lea.vmem [#allocation2], 97
  %v1135 = vld [vmem:[%s1134] ss:$2 sm:$0xff]
  %s1136 = scalar_lea.vmem [#allocation2], 113
  %v1137 = vld [vmem:[%s1136] ss:$2 sm:$0xff]
  %s1138 = scalar_lea.vmem %s5, 128
  %v1139 = vld [vmem:[%s1138] sm:$0xff]
  %v1140 = vld [vmem:[%s1138 + $0x8] sm:$0xff]
  %v1141 = vld [vmem:[%s1138 + $0x10] sm:$0xff]
  %v1142 = vld [vmem:[%s1138 + $0x18] sm:$0xff]
  %v1143 = vld [vmem:[%s1138 + $0x20] sm:$0xff]
  %v1144 = vld [vmem:[%s1138 + $0x28] sm:$0xff]
  %v1145 = vld [vmem:[%s1138 + $0x30] sm:$0xff]
  %v1146 = vld [vmem:[%s1138 + $0x38] sm:$0xff]
  %v1147 = vld [vmem:[%s1138 + $0x40] sm:$0xff]
  %v1148 = vld [vmem:[%s1138 + $0x48] sm:$0xff]
  %v1149 = vld [vmem:[%s1138 + $0x50] sm:$0xff]
  %v1150 = vld [vmem:[%s1138 + $0x58] sm:$0xff]
  %v1151 = vld [vmem:[%s1138 + $0x60] sm:$0xff]
  %v1152 = vld [vmem:[%s1138 + $0x68] sm:$0xff]
  %v1153 = vld [vmem:[%s1138 + $0x70] sm:$0xff]
  %v1154 = vld [vmem:[%s1138 + $0x78] sm:$0xff]
  %v1155 = vpack.c.bf16 %v1125, %v1123
  %v1156 = vpack.c.bf16 %v1129, %v1127
  %v1157 = vpack.c.bf16 %v1133, %v1131
  %v1158 = vpack.c.bf16 %v1137, %v1135
  %v1175 = vunpack.c.l.b16 %v1139
  %v1176 = vunpack.c.h.b16 %v1139
  %v1177 = vunpack.c.l.b16 %v1140
  %v1178 = vunpack.c.h.b16 %v1140
  %v1179 = vunpack.c.l.b16 %v1141
  %v1180 = vunpack.c.h.b16 %v1141
  %v1181 = vunpack.c.l.b16 %v1142
  %v1182 = vunpack.c.h.b16 %v1142
  %v1183 = vunpack.c.l.b16 %v1143
  %v1184 = vunpack.c.h.b16 %v1143
  %v1185 = vunpack.c.l.b16 %v1144
  %v1186 = vunpack.c.h.b16 %v1144
  %v1187 = vunpack.c.l.b16 %v1145
  %v1188 = vunpack.c.h.b16 %v1145
  %v1189 = vunpack.c.l.b16 %v1146
  %v1190 = vunpack.c.h.b16 %v1146
  %v1191 = vunpack.c.l.b16 %v1147
  %v1192 = vunpack.c.h.b16 %v1147
  %v1193 = vunpack.c.l.b16 %v1148
  %v1194 = vunpack.c.h.b16 %v1148
  %v1195 = vunpack.c.l.b16 %v1149
  %v1196 = vunpack.c.h.b16 %v1149
  %v1197 = vunpack.c.l.b16 %v1150
  %v1198 = vunpack.c.h.b16 %v1150
  %v1199 = vunpack.c.l.b16 %v1151
  %v1200 = vunpack.c.h.b16 %v1151
  %v1201 = vunpack.c.l.b16 %v1152
  %v1202 = vunpack.c.h.b16 %v1152
  %v1203 = vunpack.c.l.b16 %v1153
  %v1204 = vunpack.c.h.b16 %v1153
  %v1205 = vunpack.c.l.b16 %v1154
  %v1206 = vunpack.c.h.b16 %v1154
  %v1207 = vpack.c.b16 %v1177, %v1175
  %v1208 = vpack.c.b16 %v1178, %v1176
  %v1209 = vpack.c.b16 %v1181, %v1179
  %v1210 = vpack.c.b16 %v1182, %v1180
  %v1211 = vpack.c.b16 %v1185, %v1183
  %v1212 = vpack.c.b16 %v1186, %v1184
  %v1213 = vpack.c.b16 %v1189, %v1187
  %v1214 = vpack.c.b16 %v1190, %v1188
  %v1215 = vpack.c.b16 %v1193, %v1191
  %v1216 = vpack.c.b16 %v1194, %v1192
  %v1217 = vpack.c.b16 %v1197, %v1195
  %v1218 = vpack.c.b16 %v1198, %v1196
  %v1219 = vpack.c.b16 %v1201, %v1199
  %v1220 = vpack.c.b16 %v1202, %v1200
  %v1221 = vpack.c.b16 %v1205, %v1203
  %v1222 = vpack.c.b16 %v1206, %v1204
  %1239 = vmatprep.subr.bf16.mxu0 %v1222
  %1240 = vmatpush1.bf16.msra.mxu0 %v1221
  %1241 = vmatprep.subr.bf16.mxu0 %v1220
  %1242 = vmatpush1.bf16.msra.mxu0 %v1219
  %1243 = vmatprep.subr.bf16.mxu0 %v1218
  %1244 = vmatpush1.bf16.msra.mxu0 %v1217
  %1245 = vmatprep.subr.bf16.mxu0 %v1216
  %1246 = vmatpush1.bf16.msra.mxu0 %v1215
  %1247 = vmatprep.subr.bf16.mxu0 %v1214
  %1248 = vmatpush1.bf16.msra.mxu0 %v1213
  %1249 = vmatprep.subr.bf16.mxu0 %v1212
  %1250 = vmatpush1.bf16.msra.mxu0 %v1211
  %1251 = vmatprep.subr.bf16.mxu0 %v1210
  %1252 = vmatpush1.bf16.msra.mxu0 %v1209
  %1253 = vmatprep.subr.bf16.mxu0 %v1208
  %1254 = vmatpush1.bf16.msra.mxu0 %v1207
  %1255 = vmatprep.subr.bf16.mxu0 0
  %1256 = vmatpush2.bf16.msra.mxu0 0
  %1257 = vmatprep.subr.bf16.mxu0 0
  %1258 = vmatpush2.bf16.msra.mxu0 0
  %1259 = vmatprep.subr.bf16.mxu0 0
  %1260 = vmatpush2.bf16.msra.mxu0 0
  %1261 = vmatprep.subr.bf16.mxu0 0
  %1262 = vmatpush2.bf16.msra.mxu0 0
  %1263 = vmatprep.subr.bf16.mxu0 0
  %1264 = vmatpush2.bf16.msra.mxu0 0
  %1265 = vmatprep.subr.bf16.mxu0 0
  %1266 = vmatpush2.bf16.msra.mxu0 0
  %1267 = vmatprep.subr.bf16.mxu0 0
  %1268 = vmatpush2.bf16.msra.mxu0 0
  %1269 = vmatprep.subr.bf16.mxu0 0
  %1270 = vmatpush2.bf16.msra.mxu0 0
  %1271 = vmatprep.mubr.bf16.mxu0 0
  %1272 = vmatmul.mubr.bf16.gmra.mxu0 %v1155
  %v1273 = vpop.f32.mrf.mxu0
  %v1274 = vadd.f32 0.0, %v1273
  %v1275 = vpop.f32.mrf.mxu0
  %v1276 = vadd.f32 0.0, %v1275
  %v1277 = vpop.f32.mrf.mxu0
  %v1278 = vadd.f32 0.0, %v1277
  %v1279 = vpop.f32.mrf.mxu0
  %v1280 = vadd.f32 0.0, %v1279
  %1281 = vmatprep.mubr.bf16.mxu0 0
  %1282 = vmatmul.mubr.bf16.gmra.mxu0 %v1156
  %v1283 = vpop.f32.mrf.mxu0
  %v1284 = vadd.f32 0.0, %v1283
  %v1285 = vpop.f32.mrf.mxu0
  %v1286 = vadd.f32 0.0, %v1285
  %v1287 = vpop.f32.mrf.mxu0
  %v1288 = vadd.f32 0.0, %v1287
  %v1289 = vpop.f32.mrf.mxu0
  %v1290 = vadd.f32 0.0, %v1289
  %1291 = vmatprep.mubr.bf16.mxu0 0
  %1292 = vmatmul.mubr.bf16.gmra.mxu0 %v1157
  %v1293 = vpop.f32.mrf.mxu0
  %v1294 = vadd.f32 0.0, %v1293
  %v1295 = vpop.f32.mrf.mxu0
  %v1296 = vadd.f32 0.0, %v1295
  %v1297 = vpop.f32.mrf.mxu0
  %v1298 = vadd.f32 0.0, %v1297
  %v1299 = vpop.f32.mrf.mxu0
  %v1300 = vadd.f32 0.0, %v1299
  %1301 = vmatprep.mubr.bf16.mxu0 0
  %1302 = vmatmul.mubr.bf16.gmra.mxu0 %v1158
  %v1303 = vpop.f32.mrf.mxu0
  %v1304 = vadd.f32 0.0, %v1303
  %v1305 = vpop.f32.mrf.mxu0
  %v1306 = vadd.f32 0.0, %v1305
  %v1307 = vpop.f32.mrf.mxu0
  %v1308 = vadd.f32 0.0, %v1307
  %v1309 = vpop.f32.mrf.mxu0
  %v1310 = vadd.f32 0.0, %v1309
  %1311 = vdwg.mxu0
  %v1328 = vunpack.c.l.b16 %v1102
  %v1329 = vunpack.c.h.b16 %v1102
  %v1330 = vunpack.c.l.b16 %v1103
  %v1331 = vunpack.c.h.b16 %v1103
  %v1332 = vunpack.c.l.b16 %v1104
  %v1333 = vunpack.c.h.b16 %v1104
  %v1334 = vunpack.c.l.b16 %v1105
  %v1335 = vunpack.c.h.b16 %v1105
  %v1336 = vunpack.c.l.b16 %v1106
  %v1337 = vunpack.c.h.b16 %v1106
  %v1338 = vunpack.c.l.b16 %v1107
  %v1339 = vunpack.c.h.b16 %v1107
  %v1340 = vunpack.c.l.b16 %v1108
  %v1341 = vunpack.c.h.b16 %v1108
  %v1342 = vunpack.c.l.b16 %v1109
  %v1343 = vunpack.c.h.b16 %v1109
  %v1344 = vunpack.c.l.b16 %v1110
  %v1345 = vunpack.c.h.b16 %v1110
  %v1346 = vunpack.c.l.b16 %v1111
  %v1347 = vunpack.c.h.b16 %v1111
  %v1348 = vunpack.c.l.b16 %v1112
  %v1349 = vunpack.c.h.b16 %v1112
  %v1350 = vunpack.c.l.b16 %v1113
  %v1351 = vunpack.c.h.b16 %v1113
  %v1352 = vunpack.c.l.b16 %v1114
  %v1353 = vunpack.c.h.b16 %v1114
  %v1354 = vunpack.c.l.b16 %v1115
  %v1355 = vunpack.c.h.b16 %v1115
  %v1356 = vunpack.c.l.b16 %v1116
  %v1357 = vunpack.c.h.b16 %v1116
  %v1358 = vunpack.c.l.b16 %v1117
  %v1359 = vunpack.c.h.b16 %v1117
  %v1360 = vpack.c.b16 %v1330, %v1328
  %v1361 = vpack.c.b16 %v1331, %v1329
  %v1362 = vpack.c.b16 %v1334, %v1332
  %v1363 = vpack.c.b16 %v1335, %v1333
  %v1364 = vpack.c.b16 %v1338, %v1336
  %v1365 = vpack.c.b16 %v1339, %v1337
  %v1366 = vpack.c.b16 %v1342, %v1340
  %v1367 = vpack.c.b16 %v1343, %v1341
  %v1368 = vpack.c.b16 %v1346, %v1344
  %v1369 = vpack.c.b16 %v1347, %v1345
  %v1370 = vpack.c.b16 %v1350, %v1348
  %v1371 = vpack.c.b16 %v1351, %v1349
  %v1372 = vpack.c.b16 %v1354, %v1352
  %v1373 = vpack.c.b16 %v1355, %v1353
  %v1374 = vpack.c.b16 %v1358, %v1356
  %v1375 = vpack.c.b16 %v1359, %v1357
  %1392 = vmatprep.subr.bf16.mxu0 %v1375
  %1393 = vmatpush1.bf16.msra.mxu0 %v1374
  %1394 = vmatprep.subr.bf16.mxu0 %v1373
  %1395 = vmatpush1.bf16.msra.mxu0 %v1372
  %1396 = vmatprep.subr.bf16.mxu0 %v1371
  %1397 = vmatpush1.bf16.msra.mxu0 %v1370
  %1398 = vmatprep.subr.bf16.mxu0 %v1369
  %1399 = vmatpush1.bf16.msra.mxu0 %v1368
  %1400 = vmatprep.subr.bf16.mxu0 %v1367
  %1401 = vmatpush1.bf16.msra.mxu0 %v1366
  %1402 = vmatprep.subr.bf16.mxu0 %v1365
  %1403 = vmatpush1.bf16.msra.mxu0 %v1364
  %1404 = vmatprep.subr.bf16.mxu0 %v1363
  %1405 = vmatpush1.bf16.msra.mxu0 %v1362
  %1406 = vmatprep.subr.bf16.mxu0 %v1361
  %1407 = vmatpush1.bf16.msra.mxu0 %v1360
  %1408 = vmatprep.subr.bf16.mxu0 0
  %1409 = vmatpush2.bf16.msra.mxu0 0
  %1410 = vmatprep.subr.bf16.mxu0 0
  %1411 = vmatpush2.bf16.msra.mxu0 0
  %1412 = vmatprep.subr.bf16.mxu0 0
  %1413 = vmatpush2.bf16.msra.mxu0 0
  %1414 = vmatprep.subr.bf16.mxu0 0
  %1415 = vmatpush2.bf16.msra.mxu0 0
  %1416 = vmatprep.subr.bf16.mxu0 0
  %1417 = vmatpush2.bf16.msra.mxu0 0
  %1418 = vmatprep.subr.bf16.mxu0 0
  %1419 = vmatpush2.bf16.msra.mxu0 0
  %1420 = vmatprep.subr.bf16.mxu0 0
  %1421 = vmatpush2.bf16.msra.mxu0 0
  %1422 = vmatprep.subr.bf16.mxu0 0
  %1423 = vmatpush2.bf16.msra.mxu0 0
  %1424 = vmatprep.mubr.bf16.mxu0 0
  %1425 = vmatmul.mubr.bf16.gmra.mxu0 %v1118
  %v1426 = vpop.f32.mrf.mxu0
  %v1427 = vadd.f32 %v1274, %v1426
  %v1428 = vpop.f32.mrf.mxu0
  %v1429 = vadd.f32 %v1276, %v1428
  %v1430 = vpop.f32.mrf.mxu0
  %v1431 = vadd.f32 %v1278, %v1430
  %v1432 = vpop.f32.mrf.mxu0
  %v1433 = vadd.f32 %v1280, %v1432
  %1434 = vmatprep.mubr.bf16.mxu0 0
  %1435 = vmatmul.mubr.bf16.gmra.mxu0 %v1119
  %v1436 = vpop.f32.mrf.mxu0
  %v1437 = vadd.f32 %v1284, %v1436
  %v1438 = vpop.f32.mrf.mxu0
  %v1439 = vadd.f32 %v1286, %v1438
  %v1440 = vpop.f32.mrf.mxu0
  %v1441 = vadd.f32 %v1288, %v1440
  %v1442 = vpop.f32.mrf.mxu0
  %v1443 = vadd.f32 %v1290, %v1442
  %1444 = vmatprep.mubr.bf16.mxu0 0
  %1445 = vmatmul.mubr.bf16.gmra.mxu0 %v1120
  %v1446 = vpop.f32.mrf.mxu0
  %v1447 = vadd.f32 %v1294, %v1446
  %v1448 = vpop.f32.mrf.mxu0
  %v1449 = vadd.f32 %v1296, %v1448
  %v1450 = vpop.f32.mrf.mxu0
  %v1451 = vadd.f32 %v1298, %v1450
  %v1452 = vpop.f32.mrf.mxu0
  %v1453 = vadd.f32 %v1300, %v1452
  %1454 = vmatprep.mubr.bf16.mxu0 0
  %1455 = vmatmul.mubr.bf16.gmra.mxu0 %v1121
  %v1456 = vpop.f32.mrf.mxu0
  %v1457 = vadd.f32 %v1304, %v1456
  %v1458 = vpop.f32.mrf.mxu0
  %v1459 = vadd.f32 %v1306, %v1458
  %v1460 = vpop.f32.mrf.mxu0
  %v1461 = vadd.f32 %v1308, %v1460
  %v1462 = vpop.f32.mrf.mxu0
  %v1463 = vadd.f32 %v1310, %v1462
  %1464 = vdwg.mxu0
  %s1465 = scalar_lea.vmem [#allocation2], 2
  %v1466 = vld [vmem:[%s1465] ss:$2 sm:$0xff]
  %s1467 = scalar_lea.vmem [#allocation2], 18
  %v1468 = vld [vmem:[%s1467] ss:$2 sm:$0xff]
  %s1469 = scalar_lea.vmem [#allocation2], 34
  %v1470 = vld [vmem:[%s1469] ss:$2 sm:$0xff]
  %s1471 = scalar_lea.vmem [#allocation2], 50
  %v1472 = vld [vmem:[%s1471] ss:$2 sm:$0xff]
  %s1473 = scalar_lea.vmem [#allocation2], 66
  %v1474 = vld [vmem:[%s1473] ss:$2 sm:$0xff]
  %s1475 = scalar_lea.vmem [#allocation2], 82
  %v1476 = vld [vmem:[%s1475] ss:$2 sm:$0xff]
  %s1477 = scalar_lea.vmem [#allocation2], 98
  %v1478 = vld [vmem:[%s1477] ss:$2 sm:$0xff]
  %s1479 = scalar_lea.vmem [#allocation2], 114
  %v1480 = vld [vmem:[%s1479] ss:$2 sm:$0xff]
  %s1481 = scalar_lea.vmem %s5, 256
  %v1482 = vld [vmem:[%s1481] sm:$0xff]
  %v1483 = vld [vmem:[%s1481 + $0x8] sm:$0xff]
  %v1484 = vld [vmem:[%s1481 + $0x10] sm:$0xff]
  %v1485 = vld [vmem:[%s1481 + $0x18] sm:$0xff]
  %v1486 = vld [vmem:[%s1481 + $0x20] sm:$0xff]
  %v1487 = vld [vmem:[%s1481 + $0x28] sm:$0xff]
  %v1488 = vld [vmem:[%s1481 + $0x30] sm:$0xff]
  %v1489 = vld [vmem:[%s1481 + $0x38] sm:$0xff]
  %v1490 = vld [vmem:[%s1481 + $0x40] sm:$0xff]
  %v1491 = vld [vmem:[%s1481 + $0x48] sm:$0xff]
  %v1492 = vld [vmem:[%s1481 + $0x50] sm:$0xff]
  %v1493 = vld [vmem:[%s1481 + $0x58] sm:$0xff]
  %v1494 = vld [vmem:[%s1481 + $0x60] sm:$0xff]
  %v1495 = vld [vmem:[%s1481 + $0x68] sm:$0xff]
  %v1496 = vld [vmem:[%s1481 + $0x70] sm:$0xff]
  %v1497 = vld [vmem:[%s1481 + $0x78] sm:$0xff]
  %v1498 = vpack.c.bf16 %v1468, %v1466
  %v1499 = vpack.c.bf16 %v1472, %v1470
  %v1500 = vpack.c.bf16 %v1476, %v1474
  %v1501 = vpack.c.bf16 %v1480, %v1478
  %v1518 = vunpack.c.l.b16 %v1482
  %v1519 = vunpack.c.h.b16 %v1482
  %v1520 = vunpack.c.l.b16 %v1483
  %v1521 = vunpack.c.h.b16 %v1483
  %v1522 = vunpack.c.l.b16 %v1484
  %v1523 = vunpack.c.h.b16 %v1484
  %v1524 = vunpack.c.l.b16 %v1485
  %v1525 = vunpack.c.h.b16 %v1485
  %v1526 = vunpack.c.l.b16 %v1486
  %v1527 = vunpack.c.h.b16 %v1486
  %v1528 = vunpack.c.l.b16 %v1487
  %v1529 = vunpack.c.h.b16 %v1487
  %v1530 = vunpack.c.l.b16 %v1488
  %v1531 = vunpack.c.h.b16 %v1488
  %v1532 = vunpack.c.l.b16 %v1489
  %v1533 = vunpack.c.h.b16 %v1489
  %v1534 = vunpack.c.l.b16 %v1490
  %v1535 = vunpack.c.h.b16 %v1490
  %v1536 = vunpack.c.l.b16 %v1491
  %v1537 = vunpack.c.h.b16 %v1491
  %v1538 = vunpack.c.l.b16 %v1492
  %v1539 = vunpack.c.h.b16 %v1492
  %v1540 = vunpack.c.l.b16 %v1493
  %v1541 = vunpack.c.h.b16 %v1493
  %v1542 = vunpack.c.l.b16 %v1494
  %v1543 = vunpack.c.h.b16 %v1494
  %v1544 = vunpack.c.l.b16 %v1495
  %v1545 = vunpack.c.h.b16 %v1495
  %v1546 = vunpack.c.l.b16 %v1496
  %v1547 = vunpack.c.h.b16 %v1496
  %v1548 = vunpack.c.l.b16 %v1497
  %v1549 = vunpack.c.h.b16 %v1497
  %v1550 = vpack.c.b16 %v1520, %v1518
  %v1551 = vpack.c.b16 %v1521, %v1519
  %v1552 = vpack.c.b16 %v1524, %v1522
  %v1553 = vpack.c.b16 %v1525, %v1523
  %v1554 = vpack.c.b16 %v1528, %v1526
  %v1555 = vpack.c.b16 %v1529, %v1527
  %v1556 = vpack.c.b16 %v1532, %v1530
  %v1557 = vpack.c.b16 %v1533, %v1531
  %v1558 = vpack.c.b16 %v1536, %v1534
  %v1559 = vpack.c.b16 %v1537, %v1535
  %v1560 = vpack.c.b16 %v1540, %v1538
  %v1561 = vpack.c.b16 %v1541, %v1539
  %v1562 = vpack.c.b16 %v1544, %v1542
  %v1563 = vpack.c.b16 %v1545, %v1543
  %v1564 = vpack.c.b16 %v1548, %v1546
  %v1565 = vpack.c.b16 %v1549, %v1547
  %1582 = vmatprep.subr.bf16.mxu0 %v1565
  %1583 = vmatpush1.bf16.msra.mxu0 %v1564
  %1584 = vmatprep.subr.bf16.mxu0 %v1563
  %1585 = vmatpush1.bf16.msra.mxu0 %v1562
  %1586 = vmatprep.subr.bf16.mxu0 %v1561
  %1587 = vmatpush1.bf16.msra.mxu0 %v1560
  %1588 = vmatprep.subr.bf16.mxu0 %v1559
  %1589 = vmatpush1.bf16.msra.mxu0 %v1558
  %1590 = vmatprep.subr.bf16.mxu0 %v1557
  %1591 = vmatpush1.bf16.msra.mxu0 %v1556
  %1592 = vmatprep.subr.bf16.mxu0 %v1555
  %1593 = vmatpush1.bf16.msra.mxu0 %v1554
  %1594 = vmatprep.subr.bf16.mxu0 %v1553
  %1595 = vmatpush1.bf16.msra.mxu0 %v1552
  %1596 = vmatprep.subr.bf16.mxu0 %v1551
  %1597 = vmatpush1.bf16.msra.mxu0 %v1550
  %1598 = vmatprep.subr.bf16.mxu0 0
  %1599 = vmatpush2.bf16.msra.mxu0 0
  %1600 = vmatprep.subr.bf16.mxu0 0
  %1601 = vmatpush2.bf16.msra.mxu0 0
  %1602 = vmatprep.subr.bf16.mxu0 0
  %1603 = vmatpush2.bf16.msra.mxu0 0
  %1604 = vmatprep.subr.bf16.mxu0 0
  %1605 = vmatpush2.bf16.msra.mxu0 0
  %1606 = vmatprep.subr.bf16.mxu0 0
  %1607 = vmatpush2.bf16.msra.mxu0 0
  %1608 = vmatprep.subr.bf16.mxu0 0
  %1609 = vmatpush2.bf16.msra.mxu0 0
  %1610 = vmatprep.subr.bf16.mxu0 0
  %1611 = vmatpush2.bf16.msra.mxu0 0
  %1612 = vmatprep.subr.bf16.mxu0 0
  %1613 = vmatpush2.bf16.msra.mxu0 0
  %1614 = vmatprep.mubr.bf16.mxu0 0
  %1615 = vmatmul.mubr.bf16.gmra.mxu0 %v1498
  %v1616 = vpop.f32.mrf.mxu0
  %v1617 = vadd.f32 0.0, %v1616
  %v1618 = vpop.f32.mrf.mxu0
  %v1619 = vadd.f32 0.0, %v1618
  %v1620 = vpop.f32.mrf.mxu0
  %v1621 = vadd.f32 0.0, %v1620
  %v1622 = vpop.f32.mrf.mxu0
  %v1623 = vadd.f32 0.0, %v1622
  %1624 = vmatprep.mubr.bf16.mxu0 0
  %1625 = vmatmul.mubr.bf16.gmra.mxu0 %v1499
  %v1626 = vpop.f32.mrf.mxu0
  %v1627 = vadd.f32 0.0, %v1626
  %v1628 = vpop.f32.mrf.mxu0
  %v1629 = vadd.f32 0.0, %v1628
  %v1630 = vpop.f32.mrf.mxu0
  %v1631 = vadd.f32 0.0, %v1630
  %v1632 = vpop.f32.mrf.mxu0
  %v1633 = vadd.f32 0.0, %v1632
  %1634 = vmatprep.mubr.bf16.mxu0 0
  %1635 = vmatmul.mubr.bf16.gmra.mxu0 %v1500
  %v1636 = vpop.f32.mrf.mxu0
  %v1637 = vadd.f32 0.0, %v1636
  %v1638 = vpop.f32.mrf.mxu0
  %v1639 = vadd.f32 0.0, %v1638
  %v1640 = vpop.f32.mrf.mxu0
  %v1641 = vadd.f32 0.0, %v1640
  %v1642 = vpop.f32.mrf.mxu0
  %v1643 = vadd.f32 0.0, %v1642
  %1644 = vmatprep.mubr.bf16.mxu0 0
  %1645 = vmatmul.mubr.bf16.gmra.mxu0 %v1501
  %v1646 = vpop.f32.mrf.mxu0
  %v1647 = vadd.f32 0.0, %v1646
  %v1648 = vpop.f32.mrf.mxu0
  %v1649 = vadd.f32 0.0, %v1648
  %v1650 = vpop.f32.mrf.mxu0
  %v1651 = vadd.f32 0.0, %v1650
  %v1652 = vpop.f32.mrf.mxu0
  %v1653 = vadd.f32 0.0, %v1652
  %1654 = vdwg.mxu0
  %v1655 = vadd.f32 %v1427, %v1617
  %v1656 = vadd.f32 %v1429, %v1619
  %v1657 = vadd.f32 %v1431, %v1621
  %v1658 = vadd.f32 %v1433, %v1623
  %v1659 = vadd.f32 %v1437, %v1627
  %v1660 = vadd.f32 %v1439, %v1629
  %v1661 = vadd.f32 %v1441, %v1631
  %v1662 = vadd.f32 %v1443, %v1633
  %v1663 = vadd.f32 %v1447, %v1637
  %v1664 = vadd.f32 %v1449, %v1639
  %v1665 = vadd.f32 %v1451, %v1641
  %v1666 = vadd.f32 %v1453, %v1643
  %v1667 = vadd.f32 %v1457, %v1647
  %v1668 = vadd.f32 %v1459, %v1649
  %v1669 = vadd.f32 %v1461, %v1651
  %v1670 = vadd.f32 %v1463, %v1653
  %s1671 = scalar_lea.vmem [#allocation2], 3
  %v1672 = vld [vmem:[%s1671] ss:$2 sm:$0xff]
  %s1673 = scalar_lea.vmem [#allocation2], 19
  %v1674 = vld [vmem:[%s1673] ss:$2 sm:$0xff]
  %s1675 = scalar_lea.vmem [#allocation2], 35
  %v1676 = vld [vmem:[%s1675] ss:$2 sm:$0xff]
  %s1677 = scalar_lea.vmem [#allocation2], 51
  %v1678 = vld [vmem:[%s1677] ss:$2 sm:$0xff]
  %s1679 = scalar_lea.vmem [#allocation2], 67
  %v1680 = vld [vmem:[%s1679] ss:$2 sm:$0xff]
  %s1681 = scalar_lea.vmem [#allocation2], 83
  %v1682 = vld [vmem:[%s1681] ss:$2 sm:$0xff]
  %s1683 = scalar_lea.vmem [#allocation2], 99
  %v1684 = vld [vmem:[%s1683] ss:$2 sm:$0xff]
  %s1685 = scalar_lea.vmem [#allocation2], 115
  %v1686 = vld [vmem:[%s1685] ss:$2 sm:$0xff]
  %s1687 = scalar_lea.vmem %s5, 384
  %v1688 = vld [vmem:[%s1687] sm:$0xff]
  %v1689 = vld [vmem:[%s1687 + $0x8] sm:$0xff]
  %v1690 = vld [vmem:[%s1687 + $0x10] sm:$0xff]
  %v1691 = vld [vmem:[%s1687 + $0x18] sm:$0xff]
  %v1692 = vld [vmem:[%s1687 + $0x20] sm:$0xff]
  %v1693 = vld [vmem:[%s1687 + $0x28] sm:$0xff]
  %v1694 = vld [vmem:[%s1687 + $0x30] sm:$0xff]
  %v1695 = vld [vmem:[%s1687 + $0x38] sm:$0xff]
  %v1696 = vld [vmem:[%s1687 + $0x40] sm:$0xff]
  %v1697 = vld [vmem:[%s1687 + $0x48] sm:$0xff]
  %v1698 = vld [vmem:[%s1687 + $0x50] sm:$0xff]
  %v1699 = vld [vmem:[%s1687 + $0x58] sm:$0xff]
  %v1700 = vld [vmem:[%s1687 + $0x60] sm:$0xff]
  %v1701 = vld [vmem:[%s1687 + $0x68] sm:$0xff]
  %v1702 = vld [vmem:[%s1687 + $0x70] sm:$0xff]
  %v1703 = vld [vmem:[%s1687 + $0x78] sm:$0xff]
  %v1704 = vpack.c.bf16 %v1674, %v1672
  %v1705 = vpack.c.bf16 %v1678, %v1676
  %v1706 = vpack.c.bf16 %v1682, %v1680
  %v1707 = vpack.c.bf16 %v1686, %v1684
  %v1724 = vunpack.c.l.b16 %v1688
  %v1725 = vunpack.c.h.b16 %v1688
  %v1726 = vunpack.c.l.b16 %v1689
  %v1727 = vunpack.c.h.b16 %v1689
  %v1728 = vunpack.c.l.b16 %v1690
  %v1729 = vunpack.c.h.b16 %v1690
  %v1730 = vunpack.c.l.b16 %v1691
  %v1731 = vunpack.c.h.b16 %v1691
  %v1732 = vunpack.c.l.b16 %v1692
  %v1733 = vunpack.c.h.b16 %v1692
  %v1734 = vunpack.c.l.b16 %v1693
  %v1735 = vunpack.c.h.b16 %v1693
  %v1736 = vunpack.c.l.b16 %v1694
  %v1737 = vunpack.c.h.b16 %v1694
  %v1738 = vunpack.c.l.b16 %v1695
  %v1739 = vunpack.c.h.b16 %v1695
  %v1740 = vunpack.c.l.b16 %v1696
  %v1741 = vunpack.c.h.b16 %v1696
  %v1742 = vunpack.c.l.b16 %v1697
  %v1743 = vunpack.c.h.b16 %v1697
  %v1744 = vunpack.c.l.b16 %v1698
  %v1745 = vunpack.c.h.b16 %v1698
  %v1746 = vunpack.c.l.b16 %v1699
  %v1747 = vunpack.c.h.b16 %v1699
  %v1748 = vunpack.c.l.b16 %v1700
  %v1749 = vunpack.c.h.b16 %v1700
  %v1750 = vunpack.c.l.b16 %v1701
  %v1751 = vunpack.c.h.b16 %v1701
  %v1752 = vunpack.c.l.b16 %v1702
  %v1753 = vunpack.c.h.b16 %v1702
  %v1754 = vunpack.c.l.b16 %v1703
  %v1755 = vunpack.c.h.b16 %v1703
  %v1756 = vpack.c.b16 %v1726, %v1724
  %v1757 = vpack.c.b16 %v1727, %v1725
  %v1758 = vpack.c.b16 %v1730, %v1728
  %v1759 = vpack.c.b16 %v1731, %v1729
  %v1760 = vpack.c.b16 %v1734, %v1732
  %v1761 = vpack.c.b16 %v1735, %v1733
  %v1762 = vpack.c.b16 %v1738, %v1736
  %v1763 = vpack.c.b16 %v1739, %v1737
  %v1764 = vpack.c.b16 %v1742, %v1740
  %v1765 = vpack.c.b16 %v1743, %v1741
  %v1766 = vpack.c.b16 %v1746, %v1744
  %v1767 = vpack.c.b16 %v1747, %v1745
  %v1768 = vpack.c.b16 %v1750, %v1748
  %v1769 = vpack.c.b16 %v1751, %v1749
  %v1770 = vpack.c.b16 %v1754, %v1752
  %v1771 = vpack.c.b16 %v1755, %v1753
  %1788 = vmatprep.subr.bf16.mxu0 %v1771
  %1789 = vmatpush1.bf16.msra.mxu0 %v1770
  %1790 = vmatprep.subr.bf16.mxu0 %v1769
  %1791 = vmatpush1.bf16.msra.mxu0 %v1768
  %1792 = vmatprep.subr.bf16.mxu0 %v1767
  %1793 = vmatpush1.bf16.msra.mxu0 %v1766
  %1794 = vmatprep.subr.bf16.mxu0 %v1765
  %1795 = vmatpush1.bf16.msra.mxu0 %v1764
  %1796 = vmatprep.subr.bf16.mxu0 %v1763
  %1797 = vmatpush1.bf16.msra.mxu0 %v1762
  %1798 = vmatprep.subr.bf16.mxu0 %v1761
  %1799 = vmatpush1.bf16.msra.mxu0 %v1760
  %1800 = vmatprep.subr.bf16.mxu0 %v1759
  %1801 = vmatpush1.bf16.msra.mxu0 %v1758
  %1802 = vmatprep.subr.bf16.mxu0 %v1757
  %1803 = vmatpush1.bf16.msra.mxu0 %v1756
  %1804 = vmatprep.subr.bf16.mxu0 0
  %1805 = vmatpush2.bf16.msra.mxu0 0
  %1806 = vmatprep.subr.bf16.mxu0 0
  %1807 = vmatpush2.bf16.msra.mxu0 0
  %1808 = vmatprep.subr.bf16.mxu0 0
  %1809 = vmatpush2.bf16.msra.mxu0 0
  %1810 = vmatprep.subr.bf16.mxu0 0
  %1811 = vmatpush2.bf16.msra.mxu0 0
  %1812 = vmatprep.subr.bf16.mxu0 0
  %1813 = vmatpush2.bf16.msra.mxu0 0
  %1814 = vmatprep.subr.bf16.mxu0 0
  %1815 = vmatpush2.bf16.msra.mxu0 0
  %1816 = vmatprep.subr.bf16.mxu0 0
  %1817 = vmatpush2.bf16.msra.mxu0 0
  %1818 = vmatprep.subr.bf16.mxu0 0
  %1819 = vmatpush2.bf16.msra.mxu0 0
  %1820 = vmatprep.mubr.bf16.mxu0 0
  %1821 = vmatmul.mubr.bf16.gmra.mxu0 %v1704
  %v1822 = vpop.f32.mrf.mxu0
  %v1823 = vadd.f32 0.0, %v1822
  %v1824 = vpop.f32.mrf.mxu0
  %v1825 = vadd.f32 0.0, %v1824
  %v1826 = vpop.f32.mrf.mxu0
  %v1827 = vadd.f32 0.0, %v1826
  %v1828 = vpop.f32.mrf.mxu0
  %v1829 = vadd.f32 0.0, %v1828
  %1830 = vmatprep.mubr.bf16.mxu0 0
  %1831 = vmatmul.mubr.bf16.gmra.mxu0 %v1705
  %v1832 = vpop.f32.mrf.mxu0
  %v1833 = vadd.f32 0.0, %v1832
  %v1834 = vpop.f32.mrf.mxu0
  %v1835 = vadd.f32 0.0, %v1834
  %v1836 = vpop.f32.mrf.mxu0
  %v1837 = vadd.f32 0.0, %v1836
  %v1838 = vpop.f32.mrf.mxu0
  %v1839 = vadd.f32 0.0, %v1838
  %1840 = vmatprep.mubr.bf16.mxu0 0
  %1841 = vmatmul.mubr.bf16.gmra.mxu0 %v1706
  %v1842 = vpop.f32.mrf.mxu0
  %v1843 = vadd.f32 0.0, %v1842
  %v1844 = vpop.f32.mrf.mxu0
  %v1845 = vadd.f32 0.0, %v1844
  %v1846 = vpop.f32.mrf.mxu0
  %v1847 = vadd.f32 0.0, %v1846
  %v1848 = vpop.f32.mrf.mxu0
  %v1849 = vadd.f32 0.0, %v1848
  %1850 = vmatprep.mubr.bf16.mxu0 0
  %1851 = vmatmul.mubr.bf16.gmra.mxu0 %v1707
  %v1852 = vpop.f32.mrf.mxu0
  %v1853 = vadd.f32 0.0, %v1852
  %v1854 = vpop.f32.mrf.mxu0
  %v1855 = vadd.f32 0.0, %v1854
  %v1856 = vpop.f32.mrf.mxu0
  %v1857 = vadd.f32 0.0, %v1856
  %v1858 = vpop.f32.mrf.mxu0
  %v1859 = vadd.f32 0.0, %v1858
  %1860 = vdwg.mxu0
  %v1861 = vadd.f32 %v1655, %v1823
  %v1862 = vadd.f32 %v1656, %v1825
  %v1863 = vadd.f32 %v1657, %v1827
  %v1864 = vadd.f32 %v1658, %v1829
  %v1865 = vadd.f32 %v1659, %v1833
  %v1866 = vadd.f32 %v1660, %v1835
  %v1867 = vadd.f32 %v1661, %v1837
  %v1868 = vadd.f32 %v1662, %v1839
  %v1869 = vadd.f32 %v1663, %v1843
  %v1870 = vadd.f32 %v1664, %v1845
  %v1871 = vadd.f32 %v1665, %v1847
  %v1872 = vadd.f32 %v1666, %v1849
  %v1873 = vadd.f32 %v1667, %v1853
  %v1874 = vadd.f32 %v1668, %v1855
  %v1875 = vadd.f32 %v1669, %v1857
  %v1876 = vadd.f32 %v1670, %v1859
  %s1877 = scalar_lea.vmem [#allocation2], 4
  %v1878 = vld [vmem:[%s1877] ss:$2 sm:$0xff]
  %s1879 = scalar_lea.vmem [#allocation2], 20
  %v1880 = vld [vmem:[%s1879] ss:$2 sm:$0xff]
  %s1881 = scalar_lea.vmem [#allocation2], 36
  %v1882 = vld [vmem:[%s1881] ss:$2 sm:$0xff]
  %s1883 = scalar_lea.vmem [#allocation2], 52
  %v1884 = vld [vmem:[%s1883] ss:$2 sm:$0xff]
  %s1885 = scalar_lea.vmem [#allocation2], 68
  %v1886 = vld [vmem:[%s1885] ss:$2 sm:$0xff]
  %s1887 = scalar_lea.vmem [#allocation2], 84
  %v1888 = vld [vmem:[%s1887] ss:$2 sm:$0xff]
  %s1889 = scalar_lea.vmem [#allocation2], 100
  %v1890 = vld [vmem:[%s1889] ss:$2 sm:$0xff]
  %s1891 = scalar_lea.vmem [#allocation2], 116
  %v1892 = vld [vmem:[%s1891] ss:$2 sm:$0xff]
  %s1893 = scalar_lea.vmem %s5, 512
  %v1894 = vld [vmem:[%s1893] sm:$0xff]
  %v1895 = vld [vmem:[%s1893 + $0x8] sm:$0xff]
  %v1896 = vld [vmem:[%s1893 + $0x10] sm:$0xff]
  %v1897 = vld [vmem:[%s1893 + $0x18] sm:$0xff]
  %v1898 = vld [vmem:[%s1893 + $0x20] sm:$0xff]
  %v1899 = vld [vmem:[%s1893 + $0x28] sm:$0xff]
  %v1900 = vld [vmem:[%s1893 + $0x30] sm:$0xff]
  %v1901 = vld [vmem:[%s1893 + $0x38] sm:$0xff]
  %v1902 = vld [vmem:[%s1893 + $0x40] sm:$0xff]
  %v1903 = vld [vmem:[%s1893 + $0x48] sm:$0xff]
  %v1904 = vld [vmem:[%s1893 + $0x50] sm:$0xff]
  %v1905 = vld [vmem:[%s1893 + $0x58] sm:$0xff]
  %v1906 = vld [vmem:[%s1893 + $0x60] sm:$0xff]
  %v1907 = vld [vmem:[%s1893 + $0x68] sm:$0xff]
  %v1908 = vld [vmem:[%s1893 + $0x70] sm:$0xff]
  %v1909 = vld [vmem:[%s1893 + $0x78] sm:$0xff]
  %v1910 = vpack.c.bf16 %v1880, %v1878
  %v1911 = vpack.c.bf16 %v1884, %v1882
  %v1912 = vpack.c.bf16 %v1888, %v1886
  %v1913 = vpack.c.bf16 %v1892, %v1890
  %v1930 = vunpack.c.l.b16 %v1894
  %v1931 = vunpack.c.h.b16 %v1894
  %v1932 = vunpack.c.l.b16 %v1895
  %v1933 = vunpack.c.h.b16 %v1895
  %v1934 = vunpack.c.l.b16 %v1896
  %v1935 = vunpack.c.h.b16 %v1896
  %v1936 = vunpack.c.l.b16 %v1897
  %v1937 = vunpack.c.h.b16 %v1897
  %v1938 = vunpack.c.l.b16 %v1898
  %v1939 = vunpack.c.h.b16 %v1898
  %v1940 = vunpack.c.l.b16 %v1899
  %v1941 = vunpack.c.h.b16 %v1899
  %v1942 = vunpack.c.l.b16 %v1900
  %v1943 = vunpack.c.h.b16 %v1900
  %v1944 = vunpack.c.l.b16 %v1901
  %v1945 = vunpack.c.h.b16 %v1901
  %v1946 = vunpack.c.l.b16 %v1902
  %v1947 = vunpack.c.h.b16 %v1902
  %v1948 = vunpack.c.l.b16 %v1903
  %v1949 = vunpack.c.h.b16 %v1903
  %v1950 = vunpack.c.l.b16 %v1904
  %v1951 = vunpack.c.h.b16 %v1904
  %v1952 = vunpack.c.l.b16 %v1905
  %v1953 = vunpack.c.h.b16 %v1905
  %v1954 = vunpack.c.l.b16 %v1906
  %v1955 = vunpack.c.h.b16 %v1906
  %v1956 = vunpack.c.l.b16 %v1907
  %v1957 = vunpack.c.h.b16 %v1907
  %v1958 = vunpack.c.l.b16 %v1908
  %v1959 = vunpack.c.h.b16 %v1908
  %v1960 = vunpack.c.l.b16 %v1909
  %v1961 = vunpack.c.h.b16 %v1909
  %v1962 = vpack.c.b16 %v1932, %v1930
  %v1963 = vpack.c.b16 %v1933, %v1931
  %v1964 = vpack.c.b16 %v1936, %v1934
  %v1965 = vpack.c.b16 %v1937, %v1935
  %v1966 = vpack.c.b16 %v1940, %v1938
  %v1967 = vpack.c.b16 %v1941, %v1939
  %v1968 = vpack.c.b16 %v1944, %v1942
  %v1969 = vpack.c.b16 %v1945, %v1943
  %v1970 = vpack.c.b16 %v1948, %v1946
  %v1971 = vpack.c.b16 %v1949, %v1947
  %v1972 = vpack.c.b16 %v1952, %v1950
  %v1973 = vpack.c.b16 %v1953, %v1951
  %v1974 = vpack.c.b16 %v1956, %v1954
  %v1975 = vpack.c.b16 %v1957, %v1955
  %v1976 = vpack.c.b16 %v1960, %v1958
  %v1977 = vpack.c.b16 %v1961, %v1959
  %1994 = vmatprep.subr.bf16.mxu0 %v1977
  %1995 = vmatpush1.bf16.msra.mxu0 %v1976
  %1996 = vmatprep.subr.bf16.mxu0 %v1975
  %1997 = vmatpush1.bf16.msra.mxu0 %v1974
  %1998 = vmatprep.subr.bf16.mxu0 %v1973
  %1999 = vmatpush1.bf16.msra.mxu0 %v1972
  %2000 = vmatprep.subr.bf16.mxu0 %v1971
  %2001 = vmatpush1.bf16.msra.mxu0 %v1970
  %2002 = vmatprep.subr.bf16.mxu0 %v1969
  %2003 = vmatpush1.bf16.msra.mxu0 %v1968
  %2004 = vmatprep.subr.bf16.mxu0 %v1967
  %2005 = vmatpush1.bf16.msra.mxu0 %v1966
  %2006 = vmatprep.subr.bf16.mxu0 %v1965
  %2007 = vmatpush1.bf16.msra.mxu0 %v1964
  %2008 = vmatprep.subr.bf16.mxu0 %v1963
  %2009 = vmatpush1.bf16.msra.mxu0 %v1962
  %2010 = vmatprep.subr.bf16.mxu0 0
  %2011 = vmatpush2.bf16.msra.mxu0 0
  %2012 = vmatprep.subr.bf16.mxu0 0
  %2013 = vmatpush2.bf16.msra.mxu0 0
  %2014 = vmatprep.subr.bf16.mxu0 0
  %2015 = vmatpush2.bf16.msra.mxu0 0
  %2016 = vmatprep.subr.bf16.mxu0 0
  %2017 = vmatpush2.bf16.msra.mxu0 0
  %2018 = vmatprep.subr.bf16.mxu0 0
  %2019 = vmatpush2.bf16.msra.mxu0 0
  %2020 = vmatprep.subr.bf16.mxu0 0
  %2021 = vmatpush2.bf16.msra.mxu0 0
  %2022 = vmatprep.subr.bf16.mxu0 0
  %2023 = vmatpush2.bf16.msra.mxu0 0
  %2024 = vmatprep.subr.bf16.mxu0 0
  %2025 = vmatpush2.bf16.msra.mxu0 0
  %2026 = vmatprep.mubr.bf16.mxu0 0
  %2027 = vmatmul.mubr.bf16.gmra.mxu0 %v1910
  %v2028 = vpop.f32.mrf.mxu0
  %v2029 = vadd.f32 0.0, %v2028
  %v2030 = vpop.f32.mrf.mxu0
  %v2031 = vadd.f32 0.0, %v2030
  %v2032 = vpop.f32.mrf.mxu0
  %v2033 = vadd.f32 0.0, %v2032
  %v2034 = vpop.f32.mrf.mxu0
  %v2035 = vadd.f32 0.0, %v2034
  %2036 = vmatprep.mubr.bf16.mxu0 0
  %2037 = vmatmul.mubr.bf16.gmra.mxu0 %v1911
  %v2038 = vpop.f32.mrf.mxu0
  %v2039 = vadd.f32 0.0, %v2038
  %v2040 = vpop.f32.mrf.mxu0
  %v2041 = vadd.f32 0.0, %v2040
  %v2042 = vpop.f32.mrf.mxu0
  %v2043 = vadd.f32 0.0, %v2042
  %v2044 = vpop.f32.mrf.mxu0
  %v2045 = vadd.f32 0.0, %v2044
  %2046 = vmatprep.mubr.bf16.mxu0 0
  %2047 = vmatmul.mubr.bf16.gmra.mxu0 %v1912
  %v2048 = vpop.f32.mrf.mxu0
  %v2049 = vadd.f32 0.0, %v2048
  %v2050 = vpop.f32.mrf.mxu0
  %v2051 = vadd.f32 0.0, %v2050
  %v2052 = vpop.f32.mrf.mxu0
  %v2053 = vadd.f32 0.0, %v2052
  %v2054 = vpop.f32.mrf.mxu0
  %v2055 = vadd.f32 0.0, %v2054
  %2056 = vmatprep.mubr.bf16.mxu0 0
  %2057 = vmatmul.mubr.bf16.gmra.mxu0 %v1913
  %v2058 = vpop.f32.mrf.mxu0
  %v2059 = vadd.f32 0.0, %v2058
  %v2060 = vpop.f32.mrf.mxu0
  %v2061 = vadd.f32 0.0, %v2060
  %v2062 = vpop.f32.mrf.mxu0
  %v2063 = vadd.f32 0.0, %v2062
  %v2064 = vpop.f32.mrf.mxu0
  %v2065 = vadd.f32 0.0, %v2064
  %2066 = vdwg.mxu0
  %v2067 = vadd.f32 %v1861, %v2029
  %v2068 = vadd.f32 %v1862, %v2031
  %v2069 = vadd.f32 %v1863, %v2033
  %v2070 = vadd.f32 %v1864, %v2035
  %v2071 = vadd.f32 %v1865, %v2039
  %v2072 = vadd.f32 %v1866, %v2041
  %v2073 = vadd.f32 %v1867, %v2043
  %v2074 = vadd.f32 %v1868, %v2045
  %v2075 = vadd.f32 %v1869, %v2049
  %v2076 = vadd.f32 %v1870, %v2051
  %v2077 = vadd.f32 %v1871, %v2053
  %v2078 = vadd.f32 %v1872, %v2055
  %v2079 = vadd.f32 %v1873, %v2059
  %v2080 = vadd.f32 %v1874, %v2061
  %v2081 = vadd.f32 %v1875, %v2063
  %v2082 = vadd.f32 %v1876, %v2065
  %2083 = vmatprep.subr.bf16.mxu0 %v1222
  %2084 = vmatpush1.bf16.msra.mxu0 %v1221
  %2085 = vmatprep.subr.bf16.mxu0 %v1220
  %2086 = vmatpush1.bf16.msra.mxu0 %v1219
  %2087 = vmatprep.subr.bf16.mxu0 %v1218
  %2088 = vmatpush1.bf16.msra.mxu0 %v1217
  %2089 = vmatprep.subr.bf16.mxu0 %v1216
  %2090 = vmatpush1.bf16.msra.mxu0 %v1215
  %2091 = vmatprep.subr.bf16.mxu0 %v1214
  %2092 = vmatpush1.bf16.msra.mxu0 %v1213
  %2093 = vmatprep.subr.bf16.mxu0 %v1212
  %2094 = vmatpush1.bf16.msra.mxu0 %v1211
  %2095 = vmatprep.subr.bf16.mxu0 %v1210
  %2096 = vmatpush1.bf16.msra.mxu0 %v1209
  %2097 = vmatprep.subr.bf16.mxu0 %v1208
  %2098 = vmatpush1.bf16.msra.mxu0 %v1207
  %2099 = vmatprep.subr.bf16.mxu0 0
  %2100 = vmatpush2.bf16.msra.mxu0 0
  %2101 = vmatprep.subr.bf16.mxu0 0
  %2102 = vmatpush2.bf16.msra.mxu0 0
  %2103 = vmatprep.subr.bf16.mxu0 0
  %2104 = vmatpush2.bf16.msra.mxu0 0
  %2105 = vmatprep.subr.bf16.mxu0 0
  %2106 = vmatpush2.bf16.msra.mxu0 0
  %2107 = vmatprep.subr.bf16.mxu0 0
  %2108 = vmatpush2.bf16.msra.mxu0 0
  %2109 = vmatprep.subr.bf16.mxu0 0
  %2110 = vmatpush2.bf16.msra.mxu0 0
  %2111 = vmatprep.subr.bf16.mxu0 0
  %2112 = vmatpush2.bf16.msra.mxu0 0
  %2113 = vmatprep.subr.bf16.mxu0 0
  %2114 = vmatpush2.bf16.msra.mxu0 0
  %2115 = vmatprep.mubr.bf16.mxu0 0
  %2116 = vmatmul.mubr.bf16.gmra.mxu0 %v1498
  %v2117 = vpop.f32.mrf.mxu0
  %v2118 = vadd.f32 0.0, %v2117
  %v2119 = vpop.f32.mrf.mxu0
  %v2120 = vadd.f32 0.0, %v2119
  %v2121 = vpop.f32.mrf.mxu0
  %v2122 = vadd.f32 0.0, %v2121
  %v2123 = vpop.f32.mrf.mxu0
  %v2124 = vadd.f32 0.0, %v2123
  %2125 = vmatprep.mubr.bf16.mxu0 0
  %2126 = vmatmul.mubr.bf16.gmra.mxu0 %v1499
  %v2127 = vpop.f32.mrf.mxu0
  %v2128 = vadd.f32 0.0, %v2127
  %v2129 = vpop.f32.mrf.mxu0
  %v2130 = vadd.f32 0.0, %v2129
  %v2131 = vpop.f32.mrf.mxu0
  %v2132 = vadd.f32 0.0, %v2131
  %v2133 = vpop.f32.mrf.mxu0
  %v2134 = vadd.f32 0.0, %v2133
  %2135 = vmatprep.mubr.bf16.mxu0 0
  %2136 = vmatmul.mubr.bf16.gmra.mxu0 %v1500
  %v2137 = vpop.f32.mrf.mxu0
  %v2138 = vadd.f32 0.0, %v2137
  %v2139 = vpop.f32.mrf.mxu0
  %v2140 = vadd.f32 0.0, %v2139
  %v2141 = vpop.f32.mrf.mxu0
  %v2142 = vadd.f32 0.0, %v2141
  %v2143 = vpop.f32.mrf.mxu0
  %v2144 = vadd.f32 0.0, %v2143
  %2145 = vmatprep.mubr.bf16.mxu0 0
  %2146 = vmatmul.mubr.bf16.gmra.mxu0 %v1501
  %v2147 = vpop.f32.mrf.mxu0
  %v2148 = vadd.f32 0.0, %v2147
  %v2149 = vpop.f32.mrf.mxu0
  %v2150 = vadd.f32 0.0, %v2149
  %v2151 = vpop.f32.mrf.mxu0
  %v2152 = vadd.f32 0.0, %v2151
  %v2153 = vpop.f32.mrf.mxu0
  %v2154 = vadd.f32 0.0, %v2153
  %2155 = vdwg.mxu0
  %2156 = vmatprep.subr.bf16.mxu0 %v1375
  %2157 = vmatpush1.bf16.msra.mxu0 %v1374
  %2158 = vmatprep.subr.bf16.mxu0 %v1373
  %2159 = vmatpush1.bf16.msra.mxu0 %v1372
  %2160 = vmatprep.subr.bf16.mxu0 %v1371
  %2161 = vmatpush1.bf16.msra.mxu0 %v1370
  %2162 = vmatprep.subr.bf16.mxu0 %v1369
  %2163 = vmatpush1.bf16.msra.mxu0 %v1368
  %2164 = vmatprep.subr.bf16.mxu0 %v1367
  %2165 = vmatpush1.bf16.msra.mxu0 %v1366
  %2166 = vmatprep.subr.bf16.mxu0 %v1365
  %2167 = vmatpush1.bf16.msra.mxu0 %v1364
  %2168 = vmatprep.subr.bf16.mxu0 %v1363
  %2169 = vmatpush1.bf16.msra.mxu0 %v1362
  %2170 = vmatprep.subr.bf16.mxu0 %v1361
  %2171 = vmatpush1.bf16.msra.mxu0 %v1360
  %2172 = vmatprep.subr.bf16.mxu0 0
  %2173 = vmatpush2.bf16.msra.mxu0 0
  %2174 = vmatprep.subr.bf16.mxu0 0
  %2175 = vmatpush2.bf16.msra.mxu0 0
  %2176 = vmatprep.subr.bf16.mxu0 0
  %2177 = vmatpush2.bf16.msra.mxu0 0
  %2178 = vmatprep.subr.bf16.mxu0 0
  %2179 = vmatpush2.bf16.msra.mxu0 0
  %2180 = vmatprep.subr.bf16.mxu0 0
  %2181 = vmatpush2.bf16.msra.mxu0 0
  %2182 = vmatprep.subr.bf16.mxu0 0
  %2183 = vmatpush2.bf16.msra.mxu0 0
  %2184 = vmatprep.subr.bf16.mxu0 0
  %2185 = vmatpush2.bf16.msra.mxu0 0
  %2186 = vmatprep.subr.bf16.mxu0 0
  %2187 = vmatpush2.bf16.msra.mxu0 0
  %2188 = vmatprep.mubr.bf16.mxu0 0
  %2189 = vmatmul.mubr.bf16.gmra.mxu0 %v1155
  %v2190 = vpop.f32.mrf.mxu0
  %v2191 = vadd.f32 %v2118, %v2190
  %v2192 = vpop.f32.mrf.mxu0
  %v2193 = vadd.f32 %v2120, %v2192
  %v2194 = vpop.f32.mrf.mxu0
  %v2195 = vadd.f32 %v2122, %v2194
  %v2196 = vpop.f32.mrf.mxu0
  %v2197 = vadd.f32 %v2124, %v2196
  %2198 = vmatprep.mubr.bf16.mxu0 0
  %2199 = vmatmul.mubr.bf16.gmra.mxu0 %v1156
  %v2200 = vpop.f32.mrf.mxu0
  %v2201 = vadd.f32 %v2128, %v2200
  %v2202 = vpop.f32.mrf.mxu0
  %v2203 = vadd.f32 %v2130, %v2202
  %v2204 = vpop.f32.mrf.mxu0
  %v2205 = vadd.f32 %v2132, %v2204
  %v2206 = vpop.f32.mrf.mxu0
  %v2207 = vadd.f32 %v2134, %v2206
  %2208 = vmatprep.mubr.bf16.mxu0 0
  %2209 = vmatmul.mubr.bf16.gmra.mxu0 %v1157
  %v2210 = vpop.f32.mrf.mxu0
  %v2211 = vadd.f32 %v2138, %v2210
  %v2212 = vpop.f32.mrf.mxu0
  %v2213 = vadd.f32 %v2140, %v2212
  %v2214 = vpop.f32.mrf.mxu0
  %v2215 = vadd.f32 %v2142, %v2214
  %v2216 = vpop.f32.mrf.mxu0
  %v2217 = vadd.f32 %v2144, %v2216
  %2218 = vmatprep.mubr.bf16.mxu0 0
  %2219 = vmatmul.mubr.bf16.gmra.mxu0 %v1158
  %v2220 = vpop.f32.mrf.mxu0
  %v2221 = vadd.f32 %v2148, %v2220
  %v2222 = vpop.f32.mrf.mxu0
  %v2223 = vadd.f32 %v2150, %v2222
  %v2224 = vpop.f32.mrf.mxu0
  %v2225 = vadd.f32 %v2152, %v2224
  %v2226 = vpop.f32.mrf.mxu0
  %v2227 = vadd.f32 %v2154, %v2226
  %2228 = vdwg.mxu0
  %2229 = vmatprep.subr.bf16.mxu0 %v1565
  %2230 = vmatpush1.bf16.msra.mxu0 %v1564
  %2231 = vmatprep.subr.bf16.mxu0 %v1563
  %2232 = vmatpush1.bf16.msra.mxu0 %v1562
  %2233 = vmatprep.subr.bf16.mxu0 %v1561
  %2234 = vmatpush1.bf16.msra.mxu0 %v1560
  %2235 = vmatprep.subr.bf16.mxu0 %v1559
  %2236 = vmatpush1.bf16.msra.mxu0 %v1558
  %2237 = vmatprep.subr.bf16.mxu0 %v1557
  %2238 = vmatpush1.bf16.msra.mxu0 %v1556
  %2239 = vmatprep.subr.bf16.mxu0 %v1555
  %2240 = vmatpush1.bf16.msra.mxu0 %v1554
  %2241 = vmatprep.subr.bf16.mxu0 %v1553
  %2242 = vmatpush1.bf16.msra.mxu0 %v1552
  %2243 = vmatprep.subr.bf16.mxu0 %v1551
  %2244 = vmatpush1.bf16.msra.mxu0 %v1550
  %2245 = vmatprep.subr.bf16.mxu0 0
  %2246 = vmatpush2.bf16.msra.mxu0 0
  %2247 = vmatprep.subr.bf16.mxu0 0
  %2248 = vmatpush2.bf16.msra.mxu0 0
  %2249 = vmatprep.subr.bf16.mxu0 0
  %2250 = vmatpush2.bf16.msra.mxu0 0
  %2251 = vmatprep.subr.bf16.mxu0 0
  %2252 = vmatpush2.bf16.msra.mxu0 0
  %2253 = vmatprep.subr.bf16.mxu0 0
  %2254 = vmatpush2.bf16.msra.mxu0 0
  %2255 = vmatprep.subr.bf16.mxu0 0
  %2256 = vmatpush2.bf16.msra.mxu0 0
  %2257 = vmatprep.subr.bf16.mxu0 0
  %2258 = vmatpush2.bf16.msra.mxu0 0
  %2259 = vmatprep.subr.bf16.mxu0 0
  %2260 = vmatpush2.bf16.msra.mxu0 0
  %2261 = vmatprep.mubr.bf16.mxu0 0
  %2262 = vmatmul.mubr.bf16.gmra.mxu0 %v1704
  %v2263 = vpop.f32.mrf.mxu0
  %v2264 = vadd.f32 0.0, %v2263
  %v2265 = vpop.f32.mrf.mxu0
  %v2266 = vadd.f32 0.0, %v2265
  %v2267 = vpop.f32.mrf.mxu0
  %v2268 = vadd.f32 0.0, %v2267
  %v2269 = vpop.f32.mrf.mxu0
  %v2270 = vadd.f32 0.0, %v2269
  %2271 = vmatprep.mubr.bf16.mxu0 0
  %2272 = vmatmul.mubr.bf16.gmra.mxu0 %v1705
  %v2273 = vpop.f32.mrf.mxu0
  %v2274 = vadd.f32 0.0, %v2273
  %v2275 = vpop.f32.mrf.mxu0
  %v2276 = vadd.f32 0.0, %v2275
  %v2277 = vpop.f32.mrf.mxu0
  %v2278 = vadd.f32 0.0, %v2277
  %v2279 = vpop.f32.mrf.mxu0
  %v2280 = vadd.f32 0.0, %v2279
  %2281 = vmatprep.mubr.bf16.mxu0 0
  %2282 = vmatmul.mubr.bf16.gmra.mxu0 %v1706
  %v2283 = vpop.f32.mrf.mxu0
  %v2284 = vadd.f32 0.0, %v2283
  %v2285 = vpop.f32.mrf.mxu0
  %v2286 = vadd.f32 0.0, %v2285
  %v2287 = vpop.f32.mrf.mxu0
  %v2288 = vadd.f32 0.0, %v2287
  %v2289 = vpop.f32.mrf.mxu0
  %v2290 = vadd.f32 0.0, %v2289
  %2291 = vmatprep.mubr.bf16.mxu0 0
  %2292 = vmatmul.mubr.bf16.gmra.mxu0 %v1707
  %v2293 = vpop.f32.mrf.mxu0
  %v2294 = vadd.f32 0.0, %v2293
  %v2295 = vpop.f32.mrf.mxu0
  %v2296 = vadd.f32 0.0, %v2295
  %v2297 = vpop.f32.mrf.mxu0
  %v2298 = vadd.f32 0.0, %v2297
  %v2299 = vpop.f32.mrf.mxu0
  %v2300 = vadd.f32 0.0, %v2299
  %2301 = vdwg.mxu0
  %v2302 = vadd.f32 %v2191, %v2264
  %v2303 = vadd.f32 %v2193, %v2266
  %v2304 = vadd.f32 %v2195, %v2268
  %v2305 = vadd.f32 %v2197, %v2270
  %v2306 = vadd.f32 %v2201, %v2274
  %v2307 = vadd.f32 %v2203, %v2276
  %v2308 = vadd.f32 %v2205, %v2278
  %v2309 = vadd.f32 %v2207, %v2280
  %v2310 = vadd.f32 %v2211, %v2284
  %v2311 = vadd.f32 %v2213, %v2286
  %v2312 = vadd.f32 %v2215, %v2288
  %v2313 = vadd.f32 %v2217, %v2290
  %v2314 = vadd.f32 %v2221, %v2294
  %v2315 = vadd.f32 %v2223, %v2296
  %v2316 = vadd.f32 %v2225, %v2298
  %v2317 = vadd.f32 %v2227, %v2300
  %2318 = vmatprep.subr.bf16.mxu0 %v1771
  %2319 = vmatpush1.bf16.msra.mxu0 %v1770
  %2320 = vmatprep.subr.bf16.mxu0 %v1769
  %2321 = vmatpush1.bf16.msra.mxu0 %v1768
  %2322 = vmatprep.subr.bf16.mxu0 %v1767
  %2323 = vmatpush1.bf16.msra.mxu0 %v1766
  %2324 = vmatprep.subr.bf16.mxu0 %v1765
  %2325 = vmatpush1.bf16.msra.mxu0 %v1764
  %2326 = vmatprep.subr.bf16.mxu0 %v1763
  %2327 = vmatpush1.bf16.msra.mxu0 %v1762
  %2328 = vmatprep.subr.bf16.mxu0 %v1761
  %2329 = vmatpush1.bf16.msra.mxu0 %v1760
  %2330 = vmatprep.subr.bf16.mxu0 %v1759
  %2331 = vmatpush1.bf16.msra.mxu0 %v1758
  %2332 = vmatprep.subr.bf16.mxu0 %v1757
  %2333 = vmatpush1.bf16.msra.mxu0 %v1756
  %2334 = vmatprep.subr.bf16.mxu0 0
  %2335 = vmatpush2.bf16.msra.mxu0 0
  %2336 = vmatprep.subr.bf16.mxu0 0
  %2337 = vmatpush2.bf16.msra.mxu0 0
  %2338 = vmatprep.subr.bf16.mxu0 0
  %2339 = vmatpush2.bf16.msra.mxu0 0
  %2340 = vmatprep.subr.bf16.mxu0 0
  %2341 = vmatpush2.bf16.msra.mxu0 0
  %2342 = vmatprep.subr.bf16.mxu0 0
  %2343 = vmatpush2.bf16.msra.mxu0 0
  %2344 = vmatprep.subr.bf16.mxu0 0
  %2345 = vmatpush2.bf16.msra.mxu0 0
  %2346 = vmatprep.subr.bf16.mxu0 0
  %2347 = vmatpush2.bf16.msra.mxu0 0
  %2348 = vmatprep.subr.bf16.mxu0 0
  %2349 = vmatpush2.bf16.msra.mxu0 0
  %2350 = vmatprep.mubr.bf16.mxu0 0
  %2351 = vmatmul.mubr.bf16.gmra.mxu0 %v1910
  %v2352 = vpop.f32.mrf.mxu0
  %v2353 = vadd.f32 0.0, %v2352
  %v2354 = vpop.f32.mrf.mxu0
  %v2355 = vadd.f32 0.0, %v2354
  %v2356 = vpop.f32.mrf.mxu0
  %v2357 = vadd.f32 0.0, %v2356
  %v2358 = vpop.f32.mrf.mxu0
  %v2359 = vadd.f32 0.0, %v2358
  %2360 = vmatprep.mubr.bf16.mxu0 0
  %2361 = vmatmul.mubr.bf16.gmra.mxu0 %v1911
  %v2362 = vpop.f32.mrf.mxu0
  %v2363 = vadd.f32 0.0, %v2362
  %v2364 = vpop.f32.mrf.mxu0
  %v2365 = vadd.f32 0.0, %v2364
  %v2366 = vpop.f32.mrf.mxu0
  %v2367 = vadd.f32 0.0, %v2366
  %v2368 = vpop.f32.mrf.mxu0
  %v2369 = vadd.f32 0.0, %v2368
  %2370 = vmatprep.mubr.bf16.mxu0 0
  %2371 = vmatmul.mubr.bf16.gmra.mxu0 %v1912
  %v2372 = vpop.f32.mrf.mxu0
  %v2373 = vadd.f32 0.0, %v2372
  %v2374 = vpop.f32.mrf.mxu0
  %v2375 = vadd.f32 0.0, %v2374
  %v2376 = vpop.f32.mrf.mxu0
  %v2377 = vadd.f32 0.0, %v2376
  %v2378 = vpop.f32.mrf.mxu0
  %v2379 = vadd.f32 0.0, %v2378
  %2380 = vmatprep.mubr.bf16.mxu0 0
  %2381 = vmatmul.mubr.bf16.gmra.mxu0 %v1913
  %v2382 = vpop.f32.mrf.mxu0
  %v2383 = vadd.f32 0.0, %v2382
  %v2384 = vpop.f32.mrf.mxu0
  %v2385 = vadd.f32 0.0, %v2384
  %v2386 = vpop.f32.mrf.mxu0
  %v2387 = vadd.f32 0.0, %v2386
  %v2388 = vpop.f32.mrf.mxu0
  %v2389 = vadd.f32 0.0, %v2388
  %2390 = vdwg.mxu0
  %v2391 = vadd.f32 %v2302, %v2353
  %v2392 = vadd.f32 %v2303, %v2355
  %v2393 = vadd.f32 %v2304, %v2357
  %v2394 = vadd.f32 %v2305, %v2359
  %v2395 = vadd.f32 %v2306, %v2363
  %v2396 = vadd.f32 %v2307, %v2365
  %v2397 = vadd.f32 %v2308, %v2367
  %v2398 = vadd.f32 %v2309, %v2369
  %v2399 = vadd.f32 %v2310, %v2373
  %v2400 = vadd.f32 %v2311, %v2375
  %v2401 = vadd.f32 %v2312, %v2377
  %v2402 = vadd.f32 %v2313, %v2379
  %v2403 = vadd.f32 %v2314, %v2383
  %v2404 = vadd.f32 %v2315, %v2385
  %v2405 = vadd.f32 %v2316, %v2387
  %v2406 = vadd.f32 %v2317, %v2389
  %s2407 = scalar_lea.vmem [#allocation2], 5
  %v2408 = vld [vmem:[%s2407] ss:$2 sm:$0xff]
  %s2409 = scalar_lea.vmem [#allocation2], 21
  %v2410 = vld [vmem:[%s2409] ss:$2 sm:$0xff]
  %s2411 = scalar_lea.vmem [#allocation2], 37
  %v2412 = vld [vmem:[%s2411] ss:$2 sm:$0xff]
  %s2413 = scalar_lea.vmem [#allocation2], 53
  %v2414 = vld [vmem:[%s2413] ss:$2 sm:$0xff]
  %s2415 = scalar_lea.vmem [#allocation2], 69
  %v2416 = vld [vmem:[%s2415] ss:$2 sm:$0xff]
  %s2417 = scalar_lea.vmem [#allocation2], 85
  %v2418 = vld [vmem:[%s2417] ss:$2 sm:$0xff]
  %s2419 = scalar_lea.vmem [#allocation2], 101
  %v2420 = vld [vmem:[%s2419] ss:$2 sm:$0xff]
  %s2421 = scalar_lea.vmem [#allocation2], 117
  %v2422 = vld [vmem:[%s2421] ss:$2 sm:$0xff]
  %v2423 = vpack.c.bf16 %v2410, %v2408
  %v2424 = vpack.c.bf16 %v2414, %v2412
  %v2425 = vpack.c.bf16 %v2418, %v2416
  %v2426 = vpack.c.bf16 %v2422, %v2420
  %2427 = vmatprep.subr.bf16.mxu0 %v1977
  %2428 = vmatpush1.bf16.msra.mxu0 %v1976
  %2429 = vmatprep.subr.bf16.mxu0 %v1975
  %2430 = vmatpush1.bf16.msra.mxu0 %v1974
  %2431 = vmatprep.subr.bf16.mxu0 %v1973
  %2432 = vmatpush1.bf16.msra.mxu0 %v1972
  %2433 = vmatprep.subr.bf16.mxu0 %v1971
  %2434 = vmatpush1.bf16.msra.mxu0 %v1970
  %2435 = vmatprep.subr.bf16.mxu0 %v1969
  %2436 = vmatpush1.bf16.msra.mxu0 %v1968
  %2437 = vmatprep.subr.bf16.mxu0 %v1967
  %2438 = vmatpush1.bf16.msra.mxu0 %v1966
  %2439 = vmatprep.subr.bf16.mxu0 %v1965
  %2440 = vmatpush1.bf16.msra.mxu0 %v1964
  %2441 = vmatprep.subr.bf16.mxu0 %v1963
  %2442 = vmatpush1.bf16.msra.mxu0 %v1962
  %2443 = vmatprep.subr.bf16.mxu0 0
  %2444 = vmatpush2.bf16.msra.mxu0 0
  %2445 = vmatprep.subr.bf16.mxu0 0
  %2446 = vmatpush2.bf16.msra.mxu0 0
  %2447 = vmatprep.subr.bf16.mxu0 0
  %2448 = vmatpush2.bf16.msra.mxu0 0
  %2449 = vmatprep.subr.bf16.mxu0 0
  %2450 = vmatpush2.bf16.msra.mxu0 0
  %2451 = vmatprep.subr.bf16.mxu0 0
  %2452 = vmatpush2.bf16.msra.mxu0 0
  %2453 = vmatprep.subr.bf16.mxu0 0
  %2454 = vmatpush2.bf16.msra.mxu0 0
  %2455 = vmatprep.subr.bf16.mxu0 0
  %2456 = vmatpush2.bf16.msra.mxu0 0
  %2457 = vmatprep.subr.bf16.mxu0 0
  %2458 = vmatpush2.bf16.msra.mxu0 0
  %2459 = vmatprep.mubr.bf16.mxu0 0
  %2460 = vmatmul.mubr.bf16.gmra.mxu0 %v2423
  %v2461 = vpop.f32.mrf.mxu0
  %v2462 = vadd.f32 0.0, %v2461
  %v2463 = vpop.f32.mrf.mxu0
  %v2464 = vadd.f32 0.0, %v2463
  %v2465 = vpop.f32.mrf.mxu0
  %v2466 = vadd.f32 0.0, %v2465
  %v2467 = vpop.f32.mrf.mxu0
  %v2468 = vadd.f32 0.0, %v2467
  %2469 = vmatprep.mubr.bf16.mxu0 0
  %2470 = vmatmul.mubr.bf16.gmra.mxu0 %v2424
  %v2471 = vpop.f32.mrf.mxu0
  %v2472 = vadd.f32 0.0, %v2471
  %v2473 = vpop.f32.mrf.mxu0
  %v2474 = vadd.f32 0.0, %v2473
  %v2475 = vpop.f32.mrf.mxu0
  %v2476 = vadd.f32 0.0, %v2475
  %v2477 = vpop.f32.mrf.mxu0
  %v2478 = vadd.f32 0.0, %v2477
  %2479 = vmatprep.mubr.bf16.mxu0 0
  %2480 = vmatmul.mubr.bf16.gmra.mxu0 %v2425
  %v2481 = vpop.f32.mrf.mxu0
  %v2482 = vadd.f32 0.0, %v2481
  %v2483 = vpop.f32.mrf.mxu0
  %v2484 = vadd.f32 0.0, %v2483
  %v2485 = vpop.f32.mrf.mxu0
  %v2486 = vadd.f32 0.0, %v2485
  %v2487 = vpop.f32.mrf.mxu0
  %v2488 = vadd.f32 0.0, %v2487
  %2489 = vmatprep.mubr.bf16.mxu0 0
  %2490 = vmatmul.mubr.bf16.gmra.mxu0 %v2426
  %v2491 = vpop.f32.mrf.mxu0
  %v2492 = vadd.f32 0.0, %v2491
  %v2493 = vpop.f32.mrf.mxu0
  %v2494 = vadd.f32 0.0, %v2493
  %v2495 = vpop.f32.mrf.mxu0
  %v2496 = vadd.f32 0.0, %v2495
  %v2497 = vpop.f32.mrf.mxu0
  %v2498 = vadd.f32 0.0, %v2497
  %2499 = vdwg.mxu0
  %v2500 = vadd.f32 %v2391, %v2462
  %v2501 = vadd.f32 %v2392, %v2464
  %v2502 = vadd.f32 %v2393, %v2466
  %v2503 = vadd.f32 %v2394, %v2468
  %v2504 = vadd.f32 %v2395, %v2472
  %v2505 = vadd.f32 %v2396, %v2474
  %v2506 = vadd.f32 %v2397, %v2476
  %v2507 = vadd.f32 %v2398, %v2478
  %v2508 = vadd.f32 %v2399, %v2482
  %v2509 = vadd.f32 %v2400, %v2484
  %v2510 = vadd.f32 %v2401, %v2486
  %v2511 = vadd.f32 %v2402, %v2488
  %v2512 = vadd.f32 %v2403, %v2492
  %v2513 = vadd.f32 %v2404, %v2494
  %v2514 = vadd.f32 %v2405, %v2496
  %v2515 = vadd.f32 %v2406, %v2498
  %v2516 = vmax.f32 %v2067, %v2500
  %v2517 = vmax.f32 %v2068, %v2501
  %v2518 = vmax.f32 %v2069, %v2502
  %v2519 = vmax.f32 %v2070, %v2503
  %v2520 = vmax.f32 %v2071, %v2504
  %v2521 = vmax.f32 %v2072, %v2505
  %v2522 = vmax.f32 %v2073, %v2506
  %v2523 = vmax.f32 %v2074, %v2507
  %v2524 = vmax.f32 %v2075, %v2508
  %v2525 = vmax.f32 %v2076, %v2509
  %v2526 = vmax.f32 %v2077, %v2510
  %v2527 = vmax.f32 %v2078, %v2511
  %v2528 = vmax.f32 %v2079, %v2512
  %v2529 = vmax.f32 %v2080, %v2513
  %v2530 = vmax.f32 %v2081, %v2514
  %v2531 = vmax.f32 %v2082, %v2515
  %v2532 = vld [vmem:[%s6] sm:$0x3]
  %v2534 = vlaneseq
  %v2535 = vshrl.u32 %v2534, 7
  %v2536 = vsub.s32 0, %v2535
  %v2537 = vrot.slane %v2532, %v2536
  %v2538 = vlaneseq
  %v2539 = vshrl.u32 %v2538, 7
  %v2540 = vsub.s32 1, %v2539
  %v2541 = vrot.slane %v2532, %v2540
  %v2544 = vadd.f32 %v2516, %v2537
  %v2545 = vadd.f32 %v2517, %v2541
  %v2546 = vadd.f32 %v2518, %v2537
  %v2547 = vadd.f32 %v2519, %v2541
  %v2548 = vadd.f32 %v2520, %v2537
  %v2549 = vadd.f32 %v2521, %v2541
  %v2550 = vadd.f32 %v2522, %v2537
  %v2551 = vadd.f32 %v2523, %v2541
  %v2552 = vadd.f32 %v2524, %v2537
  %v2553 = vadd.f32 %v2525, %v2541
  %v2554 = vadd.f32 %v2526, %v2537
  %v2555 = vadd.f32 %v2527, %v2541
  %v2556 = vadd.f32 %v2528, %v2537
  %v2557 = vadd.f32 %v2529, %v2541
  %v2558 = vadd.f32 %v2530, %v2537
  %v2559 = vadd.f32 %v2531, %v2541
  %v2560 = vmax.f32 %v2544, 0.0
  %v2561 = vmax.f32 %v2545, 0.0
  %v2562 = vmax.f32 %v2546, 0.0
  %v2563 = vmax.f32 %v2547, 0.0
  %v2564 = vmax.f32 %v2548, 0.0
  %v2565 = vmax.f32 %v2549, 0.0
  %v2566 = vmax.f32 %v2550, 0.0
  %v2567 = vmax.f32 %v2551, 0.0
  %v2568 = vmax.f32 %v2552, 0.0
  %v2569 = vmax.f32 %v2553, 0.0
  %v2570 = vmax.f32 %v2554, 0.0
  %v2571 = vmax.f32 %v2555, 0.0
  %v2572 = vmax.f32 %v2556, 0.0
  %v2573 = vmax.f32 %v2557, 0.0
  %v2574 = vmax.f32 %v2558, 0.0
  %v2575 = vmax.f32 %v2559, 0.0
  %v2576 = vld [vmem:[%s7] sm:$0xff]
  %v2577 = vld [vmem:[%s7 + $0x8] sm:$0xff]
  %v2578 = vld [vmem:[%s7 + $0x10] sm:$0xff]
  %v2579 = vld [vmem:[%s7 + $0x18] sm:$0xff]
  %v2580 = vld [vmem:[%s7 + $0x20] sm:$0xff]
  %v2581 = vld [vmem:[%s7 + $0x28] sm:$0xff]
  %v2582 = vld [vmem:[%s7 + $0x30] sm:$0xff]
  %v2583 = vld [vmem:[%s7 + $0x38] sm:$0xff]
  %v2584 = vld [vmem:[%s7 + $0x40] sm:$0xff]
  %v2585 = vld [vmem:[%s7 + $0x48] sm:$0xff]
  %v2586 = vld [vmem:[%s7 + $0x50] sm:$0xff]
  %v2587 = vld [vmem:[%s7 + $0x58] sm:$0xff]
  %v2588 = vld [vmem:[%s7 + $0x60] sm:$0xff]
  %v2589 = vld [vmem:[%s7 + $0x68] sm:$0xff]
  %v2590 = vld [vmem:[%s7 + $0x70] sm:$0xff]
  %v2591 = vld [vmem:[%s7 + $0x78] sm:$0xff]
  %v2592 = vld [vmem:[%s7 + $0x80] sm:$0xff]
  %v2593 = vld [vmem:[%s7 + $0x88] sm:$0xff]
  %v2594 = vld [vmem:[%s7 + $0x90] sm:$0xff]
  %v2595 = vld [vmem:[%s7 + $0x98] sm:$0xff]
  %v2596 = vld [vmem:[%s7 + $0xa0] sm:$0xff]
  %v2597 = vld [vmem:[%s7 + $0xa8] sm:$0xff]
  %v2598 = vld [vmem:[%s7 + $0xb0] sm:$0xff]
  %v2599 = vld [vmem:[%s7 + $0xb8] sm:$0xff]
  %v2600 = vpack.c.bf16 %v2562, %v2560
  %v2601 = vpack.c.bf16 %v2563, %v2561
  %v2602 = vpack.c.bf16 %v2566, %v2564
  %v2603 = vpack.c.bf16 %v2567, %v2565
  %v2604 = vpack.c.bf16 %v2570, %v2568
  %v2605 = vpack.c.bf16 %v2571, %v2569
  %v2606 = vpack.c.bf16 %v2574, %v2572
  %v2607 = vpack.c.bf16 %v2575, %v2573
  %v2632 = vunpack.c.l.b16 %v2576
  %v2633 = vunpack.c.h.b16 %v2576
  %v2634 = vunpack.c.l.b16 %v2577
  %v2635 = vunpack.c.h.b16 %v2577
  %v2636 = vunpack.c.l.b16 %v2578
  %v2637 = vunpack.c.h.b16 %v2578
  %v2638 = vunpack.c.l.b16 %v2579
  %v2639 = vunpack.c.h.b16 %v2579
  %v2640 = vunpack.c.l.b16 %v2580
  %v2641 = vunpack.c.h.b16 %v2580
  %v2642 = vunpack.c.l.b16 %v2581
  %v2643 = vunpack.c.h.b16 %v2581
  %v2644 = vunpack.c.l.b16 %v2582
  %v2645 = vunpack.c.h.b16 %v2582
  %v2646 = vunpack.c.l.b16 %v2583
  %v2647 = vunpack.c.h.b16 %v2583
  %v2648 = vunpack.c.l.b16 %v2584
  %v2649 = vunpack.c.h.b16 %v2584
  %v2650 = vunpack.c.l.b16 %v2585
  %v2651 = vunpack.c.h.b16 %v2585
  %v2652 = vunpack.c.l.b16 %v2586
  %v2653 = vunpack.c.h.b16 %v2586
  %v2654 = vunpack.c.l.b16 %v2587
  %v2655 = vunpack.c.h.b16 %v2587
  %v2656 = vunpack.c.l.b16 %v2588
  %v2657 = vunpack.c.h.b16 %v2588
  %v2658 = vunpack.c.l.b16 %v2589
  %v2659 = vunpack.c.h.b16 %v2589
  %v2660 = vunpack.c.l.b16 %v2590
  %v2661 = vunpack.c.h.b16 %v2590
  %v2662 = vunpack.c.l.b16 %v2591
  %v2663 = vunpack.c.h.b16 %v2591
  %v2664 = vunpack.c.l.b16 %v2592
  %v2665 = vunpack.c.h.b16 %v2592
  %v2666 = vunpack.c.l.b16 %v2593
  %v2667 = vunpack.c.h.b16 %v2593
  %v2668 = vunpack.c.l.b16 %v2594
  %v2669 = vunpack.c.h.b16 %v2594
  %v2670 = vunpack.c.l.b16 %v2595
  %v2671 = vunpack.c.h.b16 %v2595
  %v2672 = vunpack.c.l.b16 %v2596
  %v2673 = vunpack.c.h.b16 %v2596
  %v2674 = vunpack.c.l.b16 %v2597
  %v2675 = vunpack.c.h.b16 %v2597
  %v2676 = vunpack.c.l.b16 %v2598
  %v2677 = vunpack.c.h.b16 %v2598
  %v2678 = vunpack.c.l.b16 %v2599
  %v2679 = vunpack.c.h.b16 %v2599
  %v2680 = vpack.c.b16 %v2634, %v2632
  %v2681 = vpack.c.b16 %v2635, %v2633
  %v2682 = vpack.c.b16 %v2638, %v2636
  %v2683 = vpack.c.b16 %v2639, %v2637
  %v2684 = vpack.c.b16 %v2642, %v2640
  %v2685 = vpack.c.b16 %v2643, %v2641
  %v2686 = vpack.c.b16 %v2646, %v2644
  %v2687 = vpack.c.b16 %v2647, %v2645
  %v2688 = vpack.c.b16 %v2650, %v2648
  %v2689 = vpack.c.b16 %v2651, %v2649
  %v2690 = vpack.c.b16 %v2654, %v2652
  %v2691 = vpack.c.b16 %v2655, %v2653
  %v2692 = vpack.c.b16 %v2658, %v2656
  %v2693 = vpack.c.b16 %v2659, %v2657
  %v2694 = vpack.c.b16 %v2662, %v2660
  %v2695 = vpack.c.b16 %v2663, %v2661
  %v2696 = vpack.c.b16 %v2666, %v2664
  %v2697 = vpack.c.b16 %v2667, %v2665
  %v2698 = vpack.c.b16 %v2670, %v2668
  %v2699 = vpack.c.b16 %v2671, %v2669
  %v2700 = vpack.c.b16 %v2674, %v2672
  %v2701 = vpack.c.b16 %v2675, %v2673
  %v2702 = vpack.c.b16 %v2678, %v2676
  %v2703 = vpack.c.b16 %v2679, %v2677
  %v2729 = vsel %vm917, %v2601, 0
  %v2732 = vsel %vm917, %v2603, 0
  %v2735 = vsel %vm917, %v2605, 0
  %v2738 = vsel %vm917, %v2607, 0
  %2740 = vmatprep.subr.bf16.mxu0 %v2695
  %2741 = vmatpush1.bf16.msra.mxu0 %v2694
  %2742 = vmatprep.subr.bf16.mxu0 %v2693
  %2743 = vmatpush1.bf16.msra.mxu0 %v2692
  %2744 = vmatprep.subr.bf16.mxu0 %v2691
  %2745 = vmatpush1.bf16.msra.mxu0 %v2690
  %2746 = vmatprep.subr.bf16.mxu0 %v2689
  %2747 = vmatpush1.bf16.msra.mxu0 %v2688
  %2748 = vmatprep.subr.bf16.mxu0 %v2687
  %2749 = vmatpush1.bf16.msra.mxu0 %v2686
  %2750 = vmatprep.subr.bf16.mxu0 %v2685
  %2751 = vmatpush1.bf16.msra.mxu0 %v2684
  %2752 = vmatprep.subr.bf16.mxu0 %v2683
  %2753 = vmatpush1.bf16.msra.mxu0 %v2682
  %2754 = vmatprep.subr.bf16.mxu0 %v2681
  %2755 = vmatpush1.bf16.msra.mxu0 %v2680
  %2756 = vmatprep.subr.bf16.mxu0 0
  %2757 = vmatpush2.bf16.msra.mxu0 0
  %2758 = vmatprep.subr.bf16.mxu0 0
  %2759 = vmatpush2.bf16.msra.mxu0 0
  %2760 = vmatprep.subr.bf16.mxu0 0
  %2761 = vmatpush2.bf16.msra.mxu0 0
  %2762 = vmatprep.subr.bf16.mxu0 0
  %2763 = vmatpush2.bf16.msra.mxu0 0
  %2764 = vmatprep.subr.bf16.mxu0 %v2703
  %2765 = vmatpush2.bf16.msra.mxu0 %v2702
  %2766 = vmatprep.subr.bf16.mxu0 %v2701
  %2767 = vmatpush2.bf16.msra.mxu0 %v2700
  %2768 = vmatprep.subr.bf16.mxu0 %v2699
  %2769 = vmatpush2.bf16.msra.mxu0 %v2698
  %2770 = vmatprep.subr.bf16.mxu0 %v2697
  %2771 = vmatpush2.bf16.msra.mxu0 %v2696
  %2772 = vmatprep.mubr.bf16.mxu0 %v2729
  %2773 = vmatmul.mubr.bf16.gmra.mxu0 %v2600
  %v2774 = vpop.f32.mrf.mxu0
  %v2775 = vadd.f32 0.0, %v2774
  %v2776 = vpop.f32.mrf.mxu0
  %v2777 = vadd.f32 0.0, %v2776
  %v2778 = vpop.f32.mrf.mxu0
  %v2779 = vadd.f32 0.0, %v2778
  %v2780 = vpop.f32.mrf.mxu0
  %v2781 = vadd.f32 0.0, %v2780
  %2782 = vmatprep.mubr.bf16.mxu0 %v2732
  %2783 = vmatmul.mubr.bf16.gmra.mxu0 %v2602
  %v2784 = vpop.f32.mrf.mxu0
  %v2785 = vadd.f32 0.0, %v2784
  %v2786 = vpop.f32.mrf.mxu0
  %v2787 = vadd.f32 0.0, %v2786
  %v2788 = vpop.f32.mrf.mxu0
  %v2789 = vadd.f32 0.0, %v2788
  %v2790 = vpop.f32.mrf.mxu0
  %v2791 = vadd.f32 0.0, %v2790
  %2792 = vmatprep.mubr.bf16.mxu0 %v2735
  %2793 = vmatmul.mubr.bf16.gmra.mxu0 %v2604
  %v2794 = vpop.f32.mrf.mxu0
  %v2795 = vadd.f32 0.0, %v2794
  %v2796 = vpop.f32.mrf.mxu0
  %v2797 = vadd.f32 0.0, %v2796
  %v2798 = vpop.f32.mrf.mxu0
  %v2799 = vadd.f32 0.0, %v2798
  %v2800 = vpop.f32.mrf.mxu0
  %v2801 = vadd.f32 0.0, %v2800
  %2802 = vmatprep.mubr.bf16.mxu0 %v2738
  %2803 = vmatmul.mubr.bf16.gmra.mxu0 %v2606
  %v2804 = vpop.f32.mrf.mxu0
  %v2805 = vadd.f32 0.0, %v2804
  %v2806 = vpop.f32.mrf.mxu0
  %v2807 = vadd.f32 0.0, %v2806
  %v2808 = vpop.f32.mrf.mxu0
  %v2809 = vadd.f32 0.0, %v2808
  %v2810 = vpop.f32.mrf.mxu0
  %v2811 = vadd.f32 0.0, %v2810
  %2812 = vdwg.mxu0
  %v2813 = vmax.f32 %v2775, %v2777
  %v2814 = vmax.f32 %v2779, %v2781
  %v2815 = vmax.f32 %v2785, %v2787
  %v2816 = vmax.f32 %v2789, %v2791
  %v2817 = vmax.f32 %v2795, %v2797
  %v2818 = vmax.f32 %v2799, %v2801
  %v2819 = vmax.f32 %v2805, %v2807
  %v2820 = vmax.f32 %v2809, %v2811
  %2821 = vst [vmem:[#allocation3] sm:$0xff] %v2813
  %2822 = vst [vmem:[#allocation3 + $0x8] sm:$0xff] %v2814
  %2823 = vst [vmem:[#allocation3 + $0x10] sm:$0xff] %v2815
  %2824 = vst [vmem:[#allocation3 + $0x18] sm:$0xff] %v2816
  %2825 = vst [vmem:[#allocation3 + $0x20] sm:$0xff] %v2817
  %2826 = vst [vmem:[#allocation3 + $0x28] sm:$0xff] %v2818
  %2827 = vst [vmem:[#allocation3 + $0x30] sm:$0xff] %v2819
  %2828 = vst [vmem:[#allocation3 + $0x38] sm:$0xff] %v2820
  %v2829 = vld [vmem:[%s9] sm:$0x1]
  %v2830 = vld [vmem:[#allocation3] ss:$8 sm:$0xf]
  %v2831 = vld [vmem:[#allocation3] ss:$8 sm:$0xf0]
  %v2832 = vor.u32 %v2830, %v2831
  %v2833 = vld [vmem:[%s8] sm:$0xf]
  %v2834 = vld [vmem:[%s8 + $0x4] sm:$0xf]
  %v2835 = vld [vmem:[%s8 + $0x8] sm:$0xf]
  %v2836 = vld [vmem:[%s8 + $0xc] sm:$0xf]
  %v2837 = vld [vmem:[%s8 + $0x10] sm:$0xf]
  %v2838 = vld [vmem:[%s8 + $0x14] sm:$0xf]
  %v2839 = vld [vmem:[%s8 + $0x18] sm:$0xf]
  %v2840 = vld [vmem:[%s8 + $0x1c] sm:$0xf]
  %v2841 = vld [vmem:[%s8 + $0x20] sm:$0xf]
  %v2842 = vld [vmem:[%s8 + $0x24] sm:$0xf]
  %v2843 = vld [vmem:[%s8 + $0x28] sm:$0xf]
  %v2844 = vld [vmem:[%s8 + $0x2c] sm:$0xf]
  %v2845 = vld [vmem:[%s8 + $0x30] sm:$0xf]
  %v2846 = vld [vmem:[%s8 + $0x34] sm:$0xf]
  %v2847 = vld [vmem:[%s8 + $0x38] sm:$0xf]
  %v2848 = vld [vmem:[%s8 + $0x3c] sm:$0xf]
  %v2849 = vpack.c.bf16 %v2832, %v2832
  %v2866 = vunpack.c.l.b16 %v2833
  %v2867 = vunpack.c.l.b16 %v2834
  %v2868 = vunpack.c.l.b16 %v2835
  %v2869 = vunpack.c.l.b16 %v2836
  %v2870 = vunpack.c.l.b16 %v2837
  %v2871 = vunpack.c.l.b16 %v2838
  %v2872 = vunpack.c.l.b16 %v2839
  %v2873 = vunpack.c.l.b16 %v2840
  %v2874 = vunpack.c.l.b16 %v2841
  %v2875 = vunpack.c.l.b16 %v2842
  %v2876 = vunpack.c.l.b16 %v2843
  %v2877 = vunpack.c.l.b16 %v2844
  %v2878 = vunpack.c.l.b16 %v2845
  %v2879 = vunpack.c.l.b16 %v2846
  %v2880 = vunpack.c.l.b16 %v2847
  %v2881 = vunpack.c.l.b16 %v2848
  %v2882 = vpack.c.b16 %v2867, %v2866
  %v2883 = vpack.c.b16 %v2869, %v2868
  %v2884 = vpack.c.b16 %v2871, %v2870
  %v2885 = vpack.c.b16 %v2873, %v2872
  %v2886 = vpack.c.b16 %v2875, %v2874
  %v2887 = vpack.c.b16 %v2877, %v2876
  %v2888 = vpack.c.b16 %v2879, %v2878
  %v2889 = vpack.c.b16 %v2881, %v2880
  %2898 = vmatprep.subr.bf16.mxu0 0
  %2899 = vmatpush1.bf16.msra.mxu0 %v2889
  %2900 = vmatprep.subr.bf16.mxu0 0
  %2901 = vmatpush1.bf16.msra.mxu0 %v2888
  %2902 = vmatprep.subr.bf16.mxu0 0
  %2903 = vmatpush1.bf16.msra.mxu0 %v2887
  %2904 = vmatprep.subr.bf16.mxu0 0
  %2905 = vmatpush1.bf16.msra.mxu0 %v2886
  %2906 = vmatprep.subr.bf16.mxu0 0
  %2907 = vmatpush1.bf16.msra.mxu0 %v2885
  %2908 = vmatprep.subr.bf16.mxu0 0
  %2909 = vmatpush1.bf16.msra.mxu0 %v2884
  %2910 = vmatprep.subr.bf16.mxu0 0
  %2911 = vmatpush1.bf16.msra.mxu0 %v2883
  %2912 = vmatprep.subr.bf16.mxu0 0
  %2913 = vmatpush1.bf16.msra.mxu0 %v2882
  %2914 = vmatprep.subr.bf16.mxu0 0
  %2915 = vmatpush2.bf16.msra.mxu0 0
  %2916 = vmatprep.subr.bf16.mxu0 0
  %2917 = vmatpush2.bf16.msra.mxu0 0
  %2918 = vmatprep.subr.bf16.mxu0 0
  %2919 = vmatpush2.bf16.msra.mxu0 0
  %2920 = vmatprep.subr.bf16.mxu0 0
  %2921 = vmatpush2.bf16.msra.mxu0 0
  %2922 = vmatprep.subr.bf16.mxu0 0
  %2923 = vmatpush2.bf16.msra.mxu0 0
  %2924 = vmatprep.subr.bf16.mxu0 0
  %2925 = vmatpush2.bf16.msra.mxu0 0
  %2926 = vmatprep.subr.bf16.mxu0 0
  %2927 = vmatpush2.bf16.msra.mxu0 0
  %2928 = vmatprep.subr.bf16.mxu0 0
  %2929 = vmatpush2.bf16.msra.mxu0 0
  %2930 = vmatprep.mubr.bf16.mxu0 0
  %2931 = vmatmul.mubr.bf16.gmra.mxu0 %v2849
  %v2932 = vpop.f32.mrf.mxu0
  %v2933 = vadd.f32 0.0, %v2932
  %v2934 = vpop.f32.mrf.mxu0
  %v2935 = vpop.f32.mrf.mxu0
  %v2936 = vpop.f32.mrf.mxu0
  %2937 = vdwg.mxu0
  %v2939 = vlaneseq
  %v2940 = vshrl.u32 %v2939, 7
  %v2941 = vsub.s32 0, %v2940
  %v2942 = vrot.slane %v2829, %v2941
  %v2944 = vadd.f32 %v2942, %v2933
  %s2945 = scalar_lea.vmem [#allocation3], 1
  %v2946 = vld [vmem:[%s2945] ss:$8 sm:$0xf]
  %v2947 = vld [vmem:[%s2945] ss:$8 sm:$0xf0]
  %v2948 = vor.u32 %v2946, %v2947
  %s2949 = scalar_lea.vmem %s8, 64
  %v2950 = vld [vmem:[%s2949] sm:$0xf]
  %v2951 = vld [vmem:[%s2949 + $0x4] sm:$0xf]
  %v2952 = vld [vmem:[%s2949 + $0x8] sm:$0xf]
  %v2953 = vld [vmem:[%s2949 + $0xc] sm:$0xf]
  %v2954 = vld [vmem:[%s2949 + $0x10] sm:$0xf]
  %v2955 = vld [vmem:[%s2949 + $0x14] sm:$0xf]
  %v2956 = vld [vmem:[%s2949 + $0x18] sm:$0xf]
  %v2957 = vld [vmem:[%s2949 + $0x1c] sm:$0xf]
  %v2958 = vld [vmem:[%s2949 + $0x20] sm:$0xf]
  %v2959 = vld [vmem:[%s2949 + $0x24] sm:$0xf]
  %v2960 = vld [vmem:[%s2949 + $0x28] sm:$0xf]
  %v2961 = vld [vmem:[%s2949 + $0x2c] sm:$0xf]
  %v2962 = vld [vmem:[%s2949 + $0x30] sm:$0xf]
  %v2963 = vld [vmem:[%s2949 + $0x34] sm:$0xf]
  %v2964 = vld [vmem:[%s2949 + $0x38] sm:$0xf]
  %v2965 = vld [vmem:[%s2949 + $0x3c] sm:$0xf]
  %v2966 = vpack.c.bf16 %v2948, %v2948
  %v2983 = vunpack.c.l.b16 %v2950
  %v2984 = vunpack.c.l.b16 %v2951
  %v2985 = vunpack.c.l.b16 %v2952
  %v2986 = vunpack.c.l.b16 %v2953
  %v2987 = vunpack.c.l.b16 %v2954
  %v2988 = vunpack.c.l.b16 %v2955
  %v2989 = vunpack.c.l.b16 %v2956
  %v2990 = vunpack.c.l.b16 %v2957
  %v2991 = vunpack.c.l.b16 %v2958
  %v2992 = vunpack.c.l.b16 %v2959
  %v2993 = vunpack.c.l.b16 %v2960
  %v2994 = vunpack.c.l.b16 %v2961
  %v2995 = vunpack.c.l.b16 %v2962
  %v2996 = vunpack.c.l.b16 %v2963
  %v2997 = vunpack.c.l.b16 %v2964
  %v2998 = vunpack.c.l.b16 %v2965
  %v2999 = vpack.c.b16 %v2984, %v2983
  %v3000 = vpack.c.b16 %v2986, %v2985
  %v3001 = vpack.c.b16 %v2988, %v2987
  %v3002 = vpack.c.b16 %v2990, %v2989
  %v3003 = vpack.c.b16 %v2992, %v2991
  %v3004 = vpack.c.b16 %v2994, %v2993
  %v3005 = vpack.c.b16 %v2996, %v2995
  %v3006 = vpack.c.b16 %v2998, %v2997
  %3015 = vmatprep.subr.bf16.mxu0 0
  %3016 = vmatpush1.bf16.msra.mxu0 %v3006
  %3017 = vmatprep.subr.bf16.mxu0 0
  %3018 = vmatpush1.bf16.msra.mxu0 %v3005
  %3019 = vmatprep.subr.bf16.mxu0 0
  %3020 = vmatpush1.bf16.msra.mxu0 %v3004
  %3021 = vmatprep.subr.bf16.mxu0 0
  %3022 = vmatpush1.bf16.msra.mxu0 %v3003
  %3023 = vmatprep.subr.bf16.mxu0 0
  %3024 = vmatpush1.bf16.msra.mxu0 %v3002
  %3025 = vmatprep.subr.bf16.mxu0 0
  %3026 = vmatpush1.bf16.msra.mxu0 %v3001
  %3027 = vmatprep.subr.bf16.mxu0 0
  %3028 = vmatpush1.bf16.msra.mxu0 %v3000
  %3029 = vmatprep.subr.bf16.mxu0 0
  %3030 = vmatpush1.bf16.msra.mxu0 %v2999
  %3031 = vmatprep.subr.bf16.mxu0 0
  %3032 = vmatpush2.bf16.msra.mxu0 0
  %3033 = vmatprep.subr.bf16.mxu0 0
  %3034 = vmatpush2.bf16.msra.mxu0 0
  %3035 = vmatprep.subr.bf16.mxu0 0
  %3036 = vmatpush2.bf16.msra.mxu0 0
  %3037 = vmatprep.subr.bf16.mxu0 0
  %3038 = vmatpush2.bf16.msra.mxu0 0
  %3039 = vmatprep.subr.bf16.mxu0 0
  %3040 = vmatpush2.bf16.msra.mxu0 0
  %3041 = vmatprep.subr.bf16.mxu0 0
  %3042 = vmatpush2.bf16.msra.mxu0 0
  %3043 = vmatprep.subr.bf16.mxu0 0
  %3044 = vmatpush2.bf16.msra.mxu0 0
  %3045 = vmatprep.subr.bf16.mxu0 0
  %3046 = vmatpush2.bf16.msra.mxu0 0
  %3047 = vmatprep.mubr.bf16.mxu0 0
  %3048 = vmatmul.mubr.bf16.gmra.mxu0 %v2966
  %v3049 = vpop.f32.mrf.mxu0
  %v3050 = vadd.f32 0.0, %v3049
  %v3051 = vpop.f32.mrf.mxu0
  %v3052 = vpop.f32.mrf.mxu0
  %v3053 = vpop.f32.mrf.mxu0
  %3054 = vdwg.mxu0
  %v3055 = vadd.f32 %v2944, %v3050
  %s3056 = scalar_lea.vmem [#allocation3], 2
  %v3057 = vld [vmem:[%s3056] ss:$8 sm:$0xf]
  %v3058 = vld [vmem:[%s3056] ss:$8 sm:$0xf0]
  %v3059 = vor.u32 %v3057, %v3058
  %s3060 = scalar_lea.vmem %s8, 128
  %v3061 = vld [vmem:[%s3060] sm:$0xf]
  %v3062 = vld [vmem:[%s3060 + $0x4] sm:$0xf]
  %v3063 = vld [vmem:[%s3060 + $0x8] sm:$0xf]
  %v3064 = vld [vmem:[%s3060 + $0xc] sm:$0xf]
  %v3065 = vld [vmem:[%s3060 + $0x10] sm:$0xf]
  %v3066 = vld [vmem:[%s3060 + $0x14] sm:$0xf]
  %v3067 = vld [vmem:[%s3060 + $0x18] sm:$0xf]
  %v3068 = vld [vmem:[%s3060 + $0x1c] sm:$0xf]
  %v3069 = vld [vmem:[%s3060 + $0x20] sm:$0xf]
  %v3070 = vld [vmem:[%s3060 + $0x24] sm:$0xf]
  %v3071 = vld [vmem:[%s3060 + $0x28] sm:$0xf]
  %v3072 = vld [vmem:[%s3060 + $0x2c] sm:$0xf]
  %v3073 = vld [vmem:[%s3060 + $0x30] sm:$0xf]
  %v3074 = vld [vmem:[%s3060 + $0x34] sm:$0xf]
  %v3075 = vld [vmem:[%s3060 + $0x38] sm:$0xf]
  %v3076 = vld [vmem:[%s3060 + $0x3c] sm:$0xf]
  %v3077 = vpack.c.bf16 %v3059, %v3059
  %v3094 = vunpack.c.l.b16 %v3061
  %v3095 = vunpack.c.l.b16 %v3062
  %v3096 = vunpack.c.l.b16 %v3063
  %v3097 = vunpack.c.l.b16 %v3064
  %v3098 = vunpack.c.l.b16 %v3065
  %v3099 = vunpack.c.l.b16 %v3066
  %v3100 = vunpack.c.l.b16 %v3067
  %v3101 = vunpack.c.l.b16 %v3068
  %v3102 = vunpack.c.l.b16 %v3069
  %v3103 = vunpack.c.l.b16 %v3070
  %v3104 = vunpack.c.l.b16 %v3071
  %v3105 = vunpack.c.l.b16 %v3072
  %v3106 = vunpack.c.l.b16 %v3073
  %v3107 = vunpack.c.l.b16 %v3074
  %v3108 = vunpack.c.l.b16 %v3075
  %v3109 = vunpack.c.l.b16 %v3076
  %v3110 = vpack.c.b16 %v3095, %v3094
  %v3111 = vpack.c.b16 %v3097, %v3096
  %v3112 = vpack.c.b16 %v3099, %v3098
  %v3113 = vpack.c.b16 %v3101, %v3100
  %v3114 = vpack.c.b16 %v3103, %v3102
  %v3115 = vpack.c.b16 %v3105, %v3104
  %v3116 = vpack.c.b16 %v3107, %v3106
  %v3117 = vpack.c.b16 %v3109, %v3108
  %3126 = vmatprep.subr.bf16.mxu0 0
  %3127 = vmatpush1.bf16.msra.mxu0 %v3117
  %3128 = vmatprep.subr.bf16.mxu0 0
  %3129 = vmatpush1.bf16.msra.mxu0 %v3116
  %3130 = vmatprep.subr.bf16.mxu0 0
  %3131 = vmatpush1.bf16.msra.mxu0 %v3115
  %3132 = vmatprep.subr.bf16.mxu0 0
  %3133 = vmatpush1.bf16.msra.mxu0 %v3114
  %3134 = vmatprep.subr.bf16.mxu0 0
  %3135 = vmatpush1.bf16.msra.mxu0 %v3113
  %3136 = vmatprep.subr.bf16.mxu0 0
  %3137 = vmatpush1.bf16.msra.mxu0 %v3112
  %3138 = vmatprep.subr.bf16.mxu0 0
  %3139 = vmatpush1.bf16.msra.mxu0 %v3111
  %3140 = vmatprep.subr.bf16.mxu0 0
  %3141 = vmatpush1.bf16.msra.mxu0 %v3110
  %3142 = vmatprep.subr.bf16.mxu0 0
  %3143 = vmatpush2.bf16.msra.mxu0 0
  %3144 = vmatprep.subr.bf16.mxu0 0
  %3145 = vmatpush2.bf16.msra.mxu0 0
  %3146 = vmatprep.subr.bf16.mxu0 0
  %3147 = vmatpush2.bf16.msra.mxu0 0
  %3148 = vmatprep.subr.bf16.mxu0 0
  %3149 = vmatpush2.bf16.msra.mxu0 0
  %3150 = vmatprep.subr.bf16.mxu0 0
  %3151 = vmatpush2.bf16.msra.mxu0 0
  %3152 = vmatprep.subr.bf16.mxu0 0
  %3153 = vmatpush2.bf16.msra.mxu0 0
  %3154 = vmatprep.subr.bf16.mxu0 0
  %3155 = vmatpush2.bf16.msra.mxu0 0
  %3156 = vmatprep.subr.bf16.mxu0 0
  %3157 = vmatpush2.bf16.msra.mxu0 0
  %3158 = vmatprep.mubr.bf16.mxu0 0
  %3159 = vmatmul.mubr.bf16.gmra.mxu0 %v3077
  %v3160 = vpop.f32.mrf.mxu0
  %v3161 = vadd.f32 0.0, %v3160
  %v3162 = vpop.f32.mrf.mxu0
  %v3163 = vpop.f32.mrf.mxu0
  %v3164 = vpop.f32.mrf.mxu0
  %3165 = vdwg.mxu0
  %v3166 = vadd.f32 %v3055, %v3161
  %s3167 = scalar_lea.vmem [#allocation3], 3
  %v3168 = vld [vmem:[%s3167] ss:$8 sm:$0xf]
  %v3169 = vld [vmem:[%s3167] ss:$8 sm:$0xf0]
  %v3170 = vor.u32 %v3168, %v3169
  %s3171 = scalar_lea.vmem %s8, 192
  %v3172 = vld [vmem:[%s3171] sm:$0xf]
  %v3173 = vld [vmem:[%s3171 + $0x4] sm:$0xf]
  %v3174 = vld [vmem:[%s3171 + $0x8] sm:$0xf]
  %v3175 = vld [vmem:[%s3171 + $0xc] sm:$0xf]
  %v3176 = vld [vmem:[%s3171 + $0x10] sm:$0xf]
  %v3177 = vld [vmem:[%s3171 + $0x14] sm:$0xf]
  %v3178 = vld [vmem:[%s3171 + $0x18] sm:$0xf]
  %v3179 = vld [vmem:[%s3171 + $0x1c] sm:$0xf]
  %v3180 = vld [vmem:[%s3171 + $0x20] sm:$0xf]
  %v3181 = vld [vmem:[%s3171 + $0x24] sm:$0xf]
  %v3182 = vld [vmem:[%s3171 + $0x28] sm:$0xf]
  %v3183 = vld [vmem:[%s3171 + $0x2c] sm:$0xf]
  %v3184 = vld [vmem:[%s3171 + $0x30] sm:$0xf]
  %v3185 = vld [vmem:[%s3171 + $0x34] sm:$0xf]
  %v3186 = vld [vmem:[%s3171 + $0x38] sm:$0xf]
  %v3187 = vld [vmem:[%s3171 + $0x3c] sm:$0xf]
  %v3188 = vpack.c.bf16 %v3170, %v3170
  %v3205 = vunpack.c.l.b16 %v3172
  %v3206 = vunpack.c.l.b16 %v3173
  %v3207 = vunpack.c.l.b16 %v3174
  %v3208 = vunpack.c.l.b16 %v3175
  %v3209 = vunpack.c.l.b16 %v3176
  %v3210 = vunpack.c.l.b16 %v3177
  %v3211 = vunpack.c.l.b16 %v3178
  %v3212 = vunpack.c.l.b16 %v3179
  %v3213 = vunpack.c.l.b16 %v3180
  %v3214 = vunpack.c.l.b16 %v3181
  %v3215 = vunpack.c.l.b16 %v3182
  %v3216 = vunpack.c.l.b16 %v3183
  %v3217 = vunpack.c.l.b16 %v3184
  %v3218 = vunpack.c.l.b16 %v3185
  %v3219 = vunpack.c.l.b16 %v3186
  %v3220 = vunpack.c.l.b16 %v3187
  %v3221 = vpack.c.b16 %v3206, %v3205
  %v3222 = vpack.c.b16 %v3208, %v3207
  %v3223 = vpack.c.b16 %v3210, %v3209
  %v3224 = vpack.c.b16 %v3212, %v3211
  %v3225 = vpack.c.b16 %v3214, %v3213
  %v3226 = vpack.c.b16 %v3216, %v3215
  %v3227 = vpack.c.b16 %v3218, %v3217
  %v3228 = vpack.c.b16 %v3220, %v3219
  %3237 = vmatprep.subr.bf16.mxu0 0
  %3238 = vmatpush1.bf16.msra.mxu0 %v3228
  %3239 = vmatprep.subr.bf16.mxu0 0
  %3240 = vmatpush1.bf16.msra.mxu0 %v3227
  %3241 = vmatprep.subr.bf16.mxu0 0
  %3242 = vmatpush1.bf16.msra.mxu0 %v3226
  %3243 = vmatprep.subr.bf16.mxu0 0
  %3244 = vmatpush1.bf16.msra.mxu0 %v3225
  %3245 = vmatprep.subr.bf16.mxu0 0
  %3246 = vmatpush1.bf16.msra.mxu0 %v3224
  %3247 = vmatprep.subr.bf16.mxu0 0
  %3248 = vmatpush1.bf16.msra.mxu0 %v3223
  %3249 = vmatprep.subr.bf16.mxu0 0
  %3250 = vmatpush1.bf16.msra.mxu0 %v3222
  %3251 = vmatprep.subr.bf16.mxu0 0
  %3252 = vmatpush1.bf16.msra.mxu0 %v3221
  %3253 = vmatprep.subr.bf16.mxu0 0
  %3254 = vmatpush2.bf16.msra.mxu0 0
  %3255 = vmatprep.subr.bf16.mxu0 0
  %3256 = vmatpush2.bf16.msra.mxu0 0
  %3257 = vmatprep.subr.bf16.mxu0 0
  %3258 = vmatpush2.bf16.msra.mxu0 0
  %3259 = vmatprep.subr.bf16.mxu0 0
  %3260 = vmatpush2.bf16.msra.mxu0 0
  %3261 = vmatprep.subr.bf16.mxu0 0
  %3262 = vmatpush2.bf16.msra.mxu0 0
  %3263 = vmatprep.subr.bf16.mxu0 0
  %3264 = vmatpush2.bf16.msra.mxu0 0
  %3265 = vmatprep.subr.bf16.mxu0 0
  %3266 = vmatpush2.bf16.msra.mxu0 0
  %3267 = vmatprep.subr.bf16.mxu0 0
  %3268 = vmatpush2.bf16.msra.mxu0 0
  %3269 = vmatprep.mubr.bf16.mxu0 0
  %3270 = vmatmul.mubr.bf16.gmra.mxu0 %v3188
  %v3271 = vpop.f32.mrf.mxu0
  %v3272 = vadd.f32 0.0, %v3271
  %v3273 = vpop.f32.mrf.mxu0
  %v3274 = vpop.f32.mrf.mxu0
  %v3275 = vpop.f32.mrf.mxu0
  %3276 = vdwg.mxu0
  %v3277 = vadd.f32 %v3166, %v3272
  %s3278 = scalar_lea.vmem [#allocation3], 4
  %v3279 = vld [vmem:[%s3278] ss:$8 sm:$0xf]
  %v3280 = vld [vmem:[%s3278] ss:$8 sm:$0xf0]
  %v3281 = vor.u32 %v3279, %v3280
  %s3282 = scalar_lea.vmem %s8, 256
  %v3283 = vld [vmem:[%s3282] sm:$0xf]
  %v3284 = vld [vmem:[%s3282 + $0x4] sm:$0xf]
  %v3285 = vld [vmem:[%s3282 + $0x8] sm:$0xf]
  %v3286 = vld [vmem:[%s3282 + $0xc] sm:$0xf]
  %v3287 = vld [vmem:[%s3282 + $0x10] sm:$0xf]
  %v3288 = vld [vmem:[%s3282 + $0x14] sm:$0xf]
  %v3289 = vld [vmem:[%s3282 + $0x18] sm:$0xf]
  %v3290 = vld [vmem:[%s3282 + $0x1c] sm:$0xf]
  %v3291 = vld [vmem:[%s3282 + $0x20] sm:$0xf]
  %v3292 = vld [vmem:[%s3282 + $0x24] sm:$0xf]
  %v3293 = vld [vmem:[%s3282 + $0x28] sm:$0xf]
  %v3294 = vld [vmem:[%s3282 + $0x2c] sm:$0xf]
  %v3295 = vld [vmem:[%s3282 + $0x30] sm:$0xf]
  %v3296 = vld [vmem:[%s3282 + $0x34] sm:$0xf]
  %v3297 = vld [vmem:[%s3282 + $0x38] sm:$0xf]
  %v3298 = vld [vmem:[%s3282 + $0x3c] sm:$0xf]
  %v3299 = vpack.c.bf16 %v3281, %v3281
  %v3316 = vunpack.c.l.b16 %v3283
  %v3317 = vunpack.c.l.b16 %v3284
  %v3318 = vunpack.c.l.b16 %v3285
  %v3319 = vunpack.c.l.b16 %v3286
  %v3320 = vunpack.c.l.b16 %v3287
  %v3321 = vunpack.c.l.b16 %v3288
  %v3322 = vunpack.c.l.b16 %v3289
  %v3323 = vunpack.c.l.b16 %v3290
  %v3324 = vunpack.c.l.b16 %v3291
  %v3325 = vunpack.c.l.b16 %v3292
  %v3326 = vunpack.c.l.b16 %v3293
  %v3327 = vunpack.c.l.b16 %v3294
  %v3328 = vunpack.c.l.b16 %v3295
  %v3329 = vunpack.c.l.b16 %v3296
  %v3330 = vunpack.c.l.b16 %v3297
  %v3331 = vunpack.c.l.b16 %v3298
  %v3332 = vpack.c.b16 %v3317, %v3316
  %v3333 = vpack.c.b16 %v3319, %v3318
  %v3334 = vpack.c.b16 %v3321, %v3320
  %v3335 = vpack.c.b16 %v3323, %v3322
  %v3336 = vpack.c.b16 %v3325, %v3324
  %v3337 = vpack.c.b16 %v3327, %v3326
  %v3338 = vpack.c.b16 %v3329, %v3328
  %v3339 = vpack.c.b16 %v3331, %v3330
  %3348 = vmatprep.subr.bf16.mxu0 0
  %3349 = vmatpush1.bf16.msra.mxu0 %v3339
  %3350 = vmatprep.subr.bf16.mxu0 0
  %3351 = vmatpush1.bf16.msra.mxu0 %v3338
  %3352 = vmatprep.subr.bf16.mxu0 0
  %3353 = vmatpush1.bf16.msra.mxu0 %v3337
  %3354 = vmatprep.subr.bf16.mxu0 0
  %3355 = vmatpush1.bf16.msra.mxu0 %v3336
  %3356 = vmatprep.subr.bf16.mxu0 0
  %3357 = vmatpush1.bf16.msra.mxu0 %v3335
  %3358 = vmatprep.subr.bf16.mxu0 0
  %3359 = vmatpush1.bf16.msra.mxu0 %v3334
  %3360 = vmatprep.subr.bf16.mxu0 0
  %3361 = vmatpush1.bf16.msra.mxu0 %v3333
  %3362 = vmatprep.subr.bf16.mxu0 0
  %3363 = vmatpush1.bf16.msra.mxu0 %v3332
  %3364 = vmatprep.subr.bf16.mxu0 0
  %3365 = vmatpush2.bf16.msra.mxu0 0
  %3366 = vmatprep.subr.bf16.mxu0 0
  %3367 = vmatpush2.bf16.msra.mxu0 0
  %3368 = vmatprep.subr.bf16.mxu0 0
  %3369 = vmatpush2.bf16.msra.mxu0 0
  %3370 = vmatprep.subr.bf16.mxu0 0
  %3371 = vmatpush2.bf16.msra.mxu0 0
  %3372 = vmatprep.subr.bf16.mxu0 0
  %3373 = vmatpush2.bf16.msra.mxu0 0
  %3374 = vmatprep.subr.bf16.mxu0 0
  %3375 = vmatpush2.bf16.msra.mxu0 0
  %3376 = vmatprep.subr.bf16.mxu0 0
  %3377 = vmatpush2.bf16.msra.mxu0 0
  %3378 = vmatprep.subr.bf16.mxu0 0
  %3379 = vmatpush2.bf16.msra.mxu0 0
  %3380 = vmatprep.mubr.bf16.mxu0 0
  %3381 = vmatmul.mubr.bf16.gmra.mxu0 %v3299
  %v3382 = vpop.f32.mrf.mxu0
  %v3383 = vadd.f32 0.0, %v3382
  %v3384 = vpop.f32.mrf.mxu0
  %v3385 = vpop.f32.mrf.mxu0
  %v3386 = vpop.f32.mrf.mxu0
  %3387 = vdwg.mxu0
  %v3388 = vadd.f32 %v3277, %v3383
  %s3389 = scalar_lea.vmem [#allocation3], 5
  %v3390 = vld [vmem:[%s3389] ss:$8 sm:$0xf]
  %v3391 = vld [vmem:[%s3389] ss:$8 sm:$0xf0]
  %v3392 = vor.u32 %v3390, %v3391
  %s3393 = scalar_lea.vmem %s8, 320
  %v3394 = vld [vmem:[%s3393] sm:$0xf]
  %v3395 = vld [vmem:[%s3393 + $0x4] sm:$0xf]
  %v3396 = vld [vmem:[%s3393 + $0x8] sm:$0xf]
  %v3397 = vld [vmem:[%s3393 + $0xc] sm:$0xf]
  %v3398 = vld [vmem:[%s3393 + $0x10] sm:$0xf]
  %v3399 = vld [vmem:[%s3393 + $0x14] sm:$0xf]
  %v3400 = vld [vmem:[%s3393 + $0x18] sm:$0xf]
  %v3401 = vld [vmem:[%s3393 + $0x1c] sm:$0xf]
  %v3402 = vld [vmem:[%s3393 + $0x20] sm:$0xf]
  %v3403 = vld [vmem:[%s3393 + $0x24] sm:$0xf]
  %v3404 = vld [vmem:[%s3393 + $0x28] sm:$0xf]
  %v3405 = vld [vmem:[%s3393 + $0x2c] sm:$0xf]
  %v3406 = vld [vmem:[%s3393 + $0x30] sm:$0xf]
  %v3407 = vld [vmem:[%s3393 + $0x34] sm:$0xf]
  %v3408 = vld [vmem:[%s3393 + $0x38] sm:$0xf]
  %v3409 = vld [vmem:[%s3393 + $0x3c] sm:$0xf]
  %v3410 = vpack.c.bf16 %v3392, %v3392
  %v3427 = vunpack.c.l.b16 %v3394
  %v3428 = vunpack.c.l.b16 %v3395
  %v3429 = vunpack.c.l.b16 %v3396
  %v3430 = vunpack.c.l.b16 %v3397
  %v3431 = vunpack.c.l.b16 %v3398
  %v3432 = vunpack.c.l.b16 %v3399
  %v3433 = vunpack.c.l.b16 %v3400
  %v3434 = vunpack.c.l.b16 %v3401
  %v3435 = vunpack.c.l.b16 %v3402
  %v3436 = vunpack.c.l.b16 %v3403
  %v3437 = vunpack.c.l.b16 %v3404
  %v3438 = vunpack.c.l.b16 %v3405
  %v3439 = vunpack.c.l.b16 %v3406
  %v3440 = vunpack.c.l.b16 %v3407
  %v3441 = vunpack.c.l.b16 %v3408
  %v3442 = vunpack.c.l.b16 %v3409
  %v3443 = vpack.c.b16 %v3428, %v3427
  %v3444 = vpack.c.b16 %v3430, %v3429
  %v3445 = vpack.c.b16 %v3432, %v3431
  %v3446 = vpack.c.b16 %v3434, %v3433
  %v3447 = vpack.c.b16 %v3436, %v3435
  %v3448 = vpack.c.b16 %v3438, %v3437
  %v3449 = vpack.c.b16 %v3440, %v3439
  %v3450 = vpack.c.b16 %v3442, %v3441
  %3459 = vmatprep.subr.bf16.mxu0 0
  %3460 = vmatpush1.bf16.msra.mxu0 %v3450
  %3461 = vmatprep.subr.bf16.mxu0 0
  %3462 = vmatpush1.bf16.msra.mxu0 %v3449
  %3463 = vmatprep.subr.bf16.mxu0 0
  %3464 = vmatpush1.bf16.msra.mxu0 %v3448
  %3465 = vmatprep.subr.bf16.mxu0 0
  %3466 = vmatpush1.bf16.msra.mxu0 %v3447
  %3467 = vmatprep.subr.bf16.mxu0 0
  %3468 = vmatpush1.bf16.msra.mxu0 %v3446
  %3469 = vmatprep.subr.bf16.mxu0 0
  %3470 = vmatpush1.bf16.msra.mxu0 %v3445
  %3471 = vmatprep.subr.bf16.mxu0 0
  %3472 = vmatpush1.bf16.msra.mxu0 %v3444
  %3473 = vmatprep.subr.bf16.mxu0 0
  %3474 = vmatpush1.bf16.msra.mxu0 %v3443
  %3475 = vmatprep.subr.bf16.mxu0 0
  %3476 = vmatpush2.bf16.msra.mxu0 0
  %3477 = vmatprep.subr.bf16.mxu0 0
  %3478 = vmatpush2.bf16.msra.mxu0 0
  %3479 = vmatprep.subr.bf16.mxu0 0
  %3480 = vmatpush2.bf16.msra.mxu0 0
  %3481 = vmatprep.subr.bf16.mxu0 0
  %3482 = vmatpush2.bf16.msra.mxu0 0
  %3483 = vmatprep.subr.bf16.mxu0 0
  %3484 = vmatpush2.bf16.msra.mxu0 0
  %3485 = vmatprep.subr.bf16.mxu0 0
  %3486 = vmatpush2.bf16.msra.mxu0 0
  %3487 = vmatprep.subr.bf16.mxu0 0
  %3488 = vmatpush2.bf16.msra.mxu0 0
  %3489 = vmatprep.subr.bf16.mxu0 0
  %3490 = vmatpush2.bf16.msra.mxu0 0
  %3491 = vmatprep.mubr.bf16.mxu0 0
  %3492 = vmatmul.mubr.bf16.gmra.mxu0 %v3410
  %v3493 = vpop.f32.mrf.mxu0
  %v3494 = vadd.f32 0.0, %v3493
  %v3495 = vpop.f32.mrf.mxu0
  %v3496 = vpop.f32.mrf.mxu0
  %v3497 = vpop.f32.mrf.mxu0
  %3498 = vdwg.mxu0
  %v3499 = vadd.f32 %v3388, %v3494
  %v3500 = vmax.f32 %v3499, 0.0
  %v3501 = vld [vmem:[%s10] sm:$0xf]
  %v3502 = vld [vmem:[%s10 + $0x4] sm:$0xf]
  %v3503 = vld [vmem:[%s10 + $0x8] sm:$0xf]
  %v3504 = vld [vmem:[%s10 + $0xc] sm:$0xf]
  %v3505 = vpack.c.bf16 %v3500, %v3500
  %v3506 = vld [vmem:[%s11] sm:$0x1]
  %v3508 = vlaneseq
  %v3509 = vshrl.u32 %v3508, 7
  %v3510 = vsub.s32 0, %v3509
  %v3511 = vrot.slane %v3506, %v3510
  %v3517 = vunpack.c.l.b16 %v3501
  %v3518 = vunpack.c.l.b16 %v3502
  %v3519 = vunpack.c.l.b16 %v3503
  %v3520 = vunpack.c.l.b16 %v3504
  %v3521 = vpack.c.b16 %v3518, %v3517
  %v3522 = vpack.c.b16 %v3520, %v3519
  %vm3525 = vcmask 261120
  %v3527 = vsel %vm3525, %v3505, 0
  %3529 = vmatprep.subr.bf16.mxu0 0
  %3530 = vmatpush1.bf16.msra.mxu0 0
  %3531 = vmatprep.subr.bf16.mxu0 0
  %3532 = vmatpush1.bf16.msra.mxu0 0
  %3533 = vmatprep.subr.bf16.mxu0 0
  %3534 = vmatpush1.bf16.msra.mxu0 0
  %3535 = vmatprep.subr.bf16.mxu0 0
  %3536 = vmatpush1.bf16.msra.mxu0 0
  %3537 = vmatprep.subr.bf16.mxu0 0
  %3538 = vmatpush1.bf16.msra.mxu0 0
  %3539 = vmatprep.subr.bf16.mxu0 0
  %3540 = vmatpush1.bf16.msra.mxu0 0
  %3541 = vmatprep.subr.bf16.mxu0 0
  %3542 = vmatpush1.bf16.msra.mxu0 %v3522
  %3543 = vmatprep.subr.bf16.mxu0 0
  %3544 = vmatpush1.bf16.msra.mxu0 %v3521
  %3545 = vmatprep.subr.bf16.mxu0 0
  %3546 = vmatpush2.bf16.msra.mxu0 0
  %3547 = vmatprep.subr.bf16.mxu0 0
  %3548 = vmatpush2.bf16.msra.mxu0 0
  %3549 = vmatprep.subr.bf16.mxu0 0
  %3550 = vmatpush2.bf16.msra.mxu0 0
  %3551 = vmatprep.subr.bf16.mxu0 0
  %3552 = vmatpush2.bf16.msra.mxu0 0
  %3553 = vmatprep.subr.bf16.mxu0 0
  %3554 = vmatpush2.bf16.msra.mxu0 0
  %3555 = vmatprep.subr.bf16.mxu0 0
  %3556 = vmatpush2.bf16.msra.mxu0 0
  %3557 = vmatprep.subr.bf16.mxu0 0
  %3558 = vmatpush2.bf16.msra.mxu0 0
  %3559 = vmatprep.subr.bf16.mxu0 0
  %3560 = vmatpush2.bf16.msra.mxu0 0
  %3561 = vmatprep.mubr.bf16.mxu0 0
  %3562 = vmatmul.mubr.bf16.gmra.mxu0 %v3527
  %v3563 = vpop.f32.mrf.mxu0
  %v3564 = vadd.f32 %v3511, %v3563
  %v3565 = vpop.f32.mrf.mxu0
  %v3566 = vpop.f32.mrf.mxu0
  %v3567 = vpop.f32.mrf.mxu0
  %3568 = vdwg.mxu0
  %v3569 = vmax.f32 %v3564, 0.0
  %v3570 = vld [vmem:[%s12] sm:$0xf]
  %v3571 = vld [vmem:[%s12 + $0x4] sm:$0xf]
  %v3572 = vpack.c.bf16 %v3569, %v3569
  %v3573 = vld [vmem:[%s13] sm:$0x1]
  %v3575 = vlaneseq
  %v3576 = vshrl.u32 %v3575, 7
  %v3577 = vsub.s32 0, %v3576
  %v3578 = vrot.slane %v3573, %v3577
  %v3582 = vunpack.c.l.b16 %v3570
  %v3583 = vunpack.c.l.b16 %v3571
  %v3584 = vpack.c.b16 %v3583, %v3582
  %vm3586 = vcmask 130048
  %v3588 = vsel %vm3586, %v3572, 0
  %3590 = vmatprep.subr.bf16.mxu0 0
  %3591 = vmatpush1.bf16.msra.mxu0 0
  %3592 = vmatprep.subr.bf16.mxu0 0
  %3593 = vmatpush1.bf16.msra.mxu0 0
  %3594 = vmatprep.subr.bf16.mxu0 0
  %3595 = vmatpush1.bf16.msra.mxu0 0
  %3596 = vmatprep.subr.bf16.mxu0 0
  %3597 = vmatpush1.bf16.msra.mxu0 0
  %3598 = vmatprep.subr.bf16.mxu0 0
  %3599 = vmatpush1.bf16.msra.mxu0 0
  %3600 = vmatprep.subr.bf16.mxu0 0
  %3601 = vmatpush1.bf16.msra.mxu0 0
  %3602 = vmatprep.subr.bf16.mxu0 0
  %3603 = vmatpush1.bf16.msra.mxu0 0
  %3604 = vmatprep.subr.bf16.mxu0 0
  %3605 = vmatpush1.bf16.msra.mxu0 %v3584
  %3606 = vmatprep.subr.bf16.mxu0 0
  %3607 = vmatpush2.bf16.msra.mxu0 0
  %3608 = vmatprep.subr.bf16.mxu0 0
  %3609 = vmatpush2.bf16.msra.mxu0 0
  %3610 = vmatprep.subr.bf16.mxu0 0
  %3611 = vmatpush2.bf16.msra.mxu0 0
  %3612 = vmatprep.subr.bf16.mxu0 0
  %3613 = vmatpush2.bf16.msra.mxu0 0
  %3614 = vmatprep.subr.bf16.mxu0 0
  %3615 = vmatpush2.bf16.msra.mxu0 0
  %3616 = vmatprep.subr.bf16.mxu0 0
  %3617 = vmatpush2.bf16.msra.mxu0 0
  %3618 = vmatprep.subr.bf16.mxu0 0
  %3619 = vmatpush2.bf16.msra.mxu0 0
  %3620 = vmatprep.subr.bf16.mxu0 0
  %3621 = vmatpush2.bf16.msra.mxu0 0
  %3622 = vmatprep.mubr.bf16.mxu0 0
  %3623 = vmatmul.mubr.bf16.gmra.mxu0 %v3588
  %v3624 = vpop.f32.mrf.mxu0
  %v3625 = vadd.f32 %v3578, %v3624
  %v3626 = vpop.f32.mrf.mxu0
  %v3627 = vpop.f32.mrf.mxu0
  %v3628 = vpop.f32.mrf.mxu0
  %3629 = vdwg.mxu0
  %vm3630 = vcmask 15360
  %3631 = vst.msk [vmem:[%s14] sm:$0xff] %vm3630, %v3625
  // Predicated region
  $region62: #{tpu_custom_call.1} parent=0 // pred_check
    _
  $region63: #{tpu_custom_call.1} parent=0 // pred_check_branch
    %3633 = sbr.rel (0) target = $region65
  $region64: #{tpu_custom_call.1} parent=0 // pred_region
    _
  $region65: #{tpu_custom_call.1} parent=0 // pred_fallthru
    _
  // Predicated region
  $region66: #{tpu_custom_call.1} parent=0 // pred_check
    _
  $region67: #{tpu_custom_call.1} parent=0 // pred_check_branch
    %3635 = sbr.rel (0) target = $region69
  $region68: #{tpu_custom_call.1} parent=0 // pred_region
    _
  $region69: #{tpu_custom_call.1} parent=0 // pred_fallthru
    _

</llo_original>
